<compile_context>
chip_gen: v7x
topology: tpu7x:2x2x1
jax: 0.10.0
libtpu: 0.0.40
codegen_flags: <defaults>
</compile_context>

<pallas_src>
import math

import jax
import jax.numpy as jnp
from jax.experimental import pallas as pl
from jax.experimental.pallas import tpu as pltpu

# ----------------------------- small config -----------------------------
EMB_DIM   = 32          # scaled down from 128
EMB_D     = 8           # vtx descriptor dim (emb_d)
NV        = 64          # full vertex count (stand-in for 5023)
NC        = 16          # coarse vertex count (num_v_coarse)
LH        = 12          # hair blendshape dim (stand-in for 60)
B         = 2
H = W     = 16          # output image size
C_AE      = 16          # ae_proj output channels (stand-in for 256)
HF = WF   = 8           # autoencoder feature spatial size
NP        = (HF // 2) * (WF // 2)     # number of 2x2 patches
PATCH_DIM = C_AE * 2 * 2
NTOK      = NC + NP
NCONST    = 8 + NP                    # packed constant rows (8-aligned pos block)
DECA_SIZE = 224.0
TWO_PI    = 2.0 * math.pi
TEMP      = 10000.0


# ============================ fused Pallas kernel ============================

def _cvthead_fused_kernel(
        basis2d_ref, mean_ref, beta_exp_ref,
        src_v_ref, drv_v_ref, src_aff_ref, drv_aff_ref,
        patches_ref, pe_w_ref, pe_b_ref, vq_ref,
        dmat_ref, umat_ref, head_w_ref, head_b_ref, const_ref,
        src_out_ref, drv_out_ref, tok_out_ref, desc_out_ref):
    """One grid step == one batch element ('parallel' -> v7x uses both TCs).

    Fuses: blend-shape deform -> ortho-proj/flip/crop-transform (src & drv) ->
    coarse downsample -> sine vertex tokens -> patch embedding -> (identity
    transformer) -> reassociated upsample + descriptor head."""
    f32 = jnp.float32

    # ---- hair/shoulder blend shapes: einsum('bl,mkl->bmk') + mean ----------
    # beta is pre-expanded (wrapper) into a block-diagonal (3*LH, 3) matrix so
    # the whole per-batch blend is ONE MXU matmul whose result is already laid
    # out as (NV, 3) -- no per-batch Python loop, no in-kernel reshape.
    deform = jnp.dot(basis2d_ref[...], beta_exp_ref[0],
                     preferred_element_type=f32) + mean_ref[...]        # (NV, 3)

    # ---- batch_orth_proj + y/z flip + transform_points ---------------------
    # Camera scale/shift, 224-crop scale and the inverse tform are folded into
    # a per-batch affine  out = v @ W + d  (rows 0..2 = W, row 3 = d), expanded
    # here as three VPU broadcast-multiply-adds.  A K=3/N=3 matmul would occupy
    # a full MXU tile at <0.1% utilization.
    def transfer(v, aff):                                 # v:(NV,3)  aff:(4,3)
        return (v[:, 0:1] * aff[0:1, :]
                + v[:, 1:2] * aff[1:2, :]
                + v[:, 2:3] * aff[2:3, :]
                + aff[3:4, :])

    src_trans = transfer(src_v_ref[0] + deform, src_aff_ref[0])         # (NV, 3)
    drv_trans = transfer(drv_v_ref[0] + deform, drv_aff_ref[0])         # (NV, 3)
    src_out_ref[0] = src_trans
    drv_out_ref[0] = drv_trans

    # ---- coarse mesh downsample --------------------------------------------
    # TODO(synk): down_transform_list comes from transform.pkl; dense stand-in.
    coarse = jnp.dot(dmat_ref[...], src_trans,
                     preferred_element_type=f32)                         # (NC, 3)

    # ---- vertex tokens: uv + depth sine encodings ---------------------------
    # Phase-shift trick: cos(x) = sin(x + pi/2) -> single transcendental per
    # slot.  dim_t / 2*pi constants live in the packed constant tile (rows 0..3).
    cu = const_ref[0:1, :]          # 2*pi/dim_t on the u (second) half, else 0
    cv = const_ref[1:2, :]          # 2*pi/dim_t on the v (first) half, else 0
    cd = const_ref[2:3, :]          # 2*pi/dim_t, full-width depth encoding
    ph = const_ref[3:4, :]          # 0 for sin slots, pi/2 for cos slots
    u = 0.5 * coarse[:, 0:1] + 0.5
    v = 0.5 * coarse[:, 1:2] + 0.5
    z = 0.5 * coarse[:, 2:3] + 0.5
    uv_pos = jnp.sin(u * cu + v * cv + ph)                               # (NC, EMB)
    d_pos = jnp.sin(z * cd + ph)
    vtx_tok = vq_ref[0] + uv_pos + d_pos                                 # (NC, EMB)

    # ---- patch_to_embedding + sine position embedding -----------------------
    pos_img = const_ref[8:8 + NP, :]                                     # (NP, EMB)
    img_feat = (jnp.dot(patches_ref[0], pe_w_ref[...],
                        preferred_element_type=f32)
                + pe_b_ref[...] + pos_img)                               # (NP, EMB)

    # TODO(synk): 6-layer ViT Transformer (external module) not reproduced;
    # tokens pass through unchanged.
    # Two sublane-aligned sub-stores instead of a materialized concatenate.
    tok_out_ref[0, 0:NC, :] = vtx_tok
    tok_out_ref[0, NC:NTOK, :] = img_feat

    # ---- vtx_upsampler + vtx_descriptor_head (reassociated) -----------------
    # (umat @ tok) @ head_w == umat @ (tok @ head_w): doing the head first
    # shrinks the big matmul's N dim from EMB to EMB_D (fewer FLOPs; the win
    # grows with the real NV=5023).
    # TODO(synk): vtx_upsampler is a SpiralNet mesh decoder; dense stand-in.
    tmp = jnp.dot(vtx_tok, head_w_ref[...], preferred_element_type=f32)  # (NC, EMB_D)
    desc_out_ref[0] = (jnp.dot(umat_ref[...], tmp, preferred_element_type=f32)
                       + head_b_ref[...])                                # (NV, EMB_D)


def cvthead_fused(basis2d, mean, beta_exp, src_verts, drv_verts, src_aff,
                  drv_aff, patches, pe_w, pe_b, vtx_query, dmat, umat,
                  head_w, head_b, const_pack):
    bsz = src_verts.shape[0]
    shared2 = lambda b: (0, 0)
    shared3 = lambda b: (0, 0, 0)
    perb3 = lambda b: (b, 0, 0)

    in_specs = [
        pl.BlockSpec((NV, 3 * LH), shared2),          # basis2d
        pl.BlockSpec((NV, 3), shared2),               # deform mean
        pl.BlockSpec((1, 3 * LH, 3), perb3),          # block-diag beta
        pl.BlockSpec((1, NV, 3), perb3),              # src verts
        pl.BlockSpec((1, NV, 3), perb3),              # drv verts
        pl.BlockSpec((1, 4, 3), perb3),               # src affine (W ; d)
        pl.BlockSpec((1, 4, 3), perb3),               # drv affine (W ; d)
        pl.BlockSpec((1, NP, PATCH_DIM), perb3),      # patches
        pl.BlockSpec((PATCH_DIM, EMB_DIM), shared2),  # patch_to_embedding W
        pl.BlockSpec((1, EMB_DIM), shared2),          # patch_to_embedding b
        pl.BlockSpec((1, NC, EMB_DIM), shared3),      # vtx_query
        pl.BlockSpec((NC, NV), shared2),              # down transform
        pl.BlockSpec((NV, NC), shared2),              # up transform
        pl.BlockSpec((EMB_DIM, EMB_D), shared2),      # descriptor head W
        pl.BlockSpec((1, EMB_D), shared2),            # descriptor head b
        pl.BlockSpec((NCONST, EMB_DIM), shared2),     # packed constants
    ]
    out_specs = [
        pl.BlockSpec((1, NV, 3), perb3),              # src_trans_verts_aug
        pl.BlockSpec((1, NV, 3), perb3),              # drv_trans_verts_aug
        pl.BlockSpec((1, NTOK, EMB_DIM), perb3),      # tokens (transformer input)
        pl.BlockSpec((1, NV, EMB_D), perb3),          # vtx_descriptor
    ]
    out_shape = [
        jax.ShapeDtypeStruct((bsz, NV, 3), jnp.float32),
        jax.ShapeDtypeStruct((bsz, NV, 3), jnp.float32),
        jax.ShapeDtypeStruct((bsz, NTOK, EMB_DIM), jnp.float32),
        jax.ShapeDtypeStruct((bsz, NV, EMB_D), jnp.float32),
    ]
    args = (basis2d, mean, beta_exp, src_verts, drv_verts, src_aff, drv_aff,
            patches, pe_w, pe_b, vtx_query, dmat, umat, head_w, head_b,
            const_pack)

    flops_per_b = (2 * NV * (3 * LH) * 3            # blend-shape matmul
                   + 2 * 2 * NV * 3 * 4             # two affine transfers (VPU)
                   + 2 * NC * NV * 3                # coarse downsample
                   + 2 * NP * PATCH_DIM * EMB_DIM   # patch embedding
                   + 2 * NC * EMB_DIM * EMB_D       # head (reassociated)
                   + 2 * NV * NC * EMB_D            # upsample
                   + 12 * NC * EMB_DIM)             # token elementwise
    bytes_accessed = 4 * (sum(int(a.size) for a in args)
                          + sum(int(math.prod(s.shape)) for s in out_shape))
    cost = pl.CostEstimate(flops=int(bsz * flops_per_b),
                           transcendentals=int(bsz * 2 * NC * EMB_DIM),
                           bytes_accessed=int(bytes_accessed))

    return pl.pallas_call(
        _cvthead_fused_kernel,
        grid=(bsz,),
        in_specs=in_specs,
        out_specs=out_specs,
        out_shape=out_shape,
        compiler_params=pltpu.CompilerParams(
            dimension_semantics=("parallel",)),      # v7x: one batch per TC
        cost_estimate=cost,
    )(*args)


# =========================== JAX-side folding / setup ===========================

def fold_affine(cam, tform, h, w):
    """Fold batch_orth_proj + y/z flip + transform_points(points_scale=[224,224],
    out_scale=[h,w]) into a per-batch affine  out = verts @ W + d, packed as a
    (B, 4, 3) tile (rows 0..2 = W, row 3 = d) for the VPU path in the kernel."""
    f32 = jnp.float32
    b = cam.shape[0]
    s = cam[:, 0:1]                                             # (B,1)
    A = jnp.concatenate([s, -s, -s], axis=1)                    # scale * flip
    t3 = jnp.concatenate([cam[:, 1:3], jnp.zeros((b, 1), cam.dtype)], axis=1)
    Bv = A * t3
    Cv = jnp.array([0.5 * DECA_SIZE, 0.5 * DECA_SIZE, 0.0], f32)
    Dv = jnp.array([0.5 * DECA_SIZE, 0.5 * DECA_SIZE, 1.0], f32)
    A2 = A * Cv
    B2 = Bv * Cv + Dv
    # TODO(synk): no guard for near-singular tform (same as torch.inverse path).
    tfT = jnp.transpose(jnp.linalg.inv(tform), (0, 2, 1))       # (B,3,3)
    E = jnp.array([2.0 / w, 2.0 / h, 0.0], f32)
    AG = jnp.concatenate([jnp.zeros((b, 2), f32), -s], axis=1)  # A * [0,0,1]
    FBG = jnp.array([-1.0, -1.0, 0.0], f32)                     # Fv + Bv*[0,0,1]
    M = A2[:, :, None] * tfT                                    # diag(A2) @ tfT
    c = jnp.einsum('bk,bkj->bj', B2, tfT)
    Wm = M * E[None, None, :] + jnp.eye(3, dtype=f32)[None] * AG[:, None, :]
    d = c * E[None, :] + FBG[None, :]
    return jnp.concatenate([Wm, d[:, None, :]], axis=1).astype(f32)   # (B,4,3)


def make_sine_position_embedding(d_model, h, w, temperature=TEMP, scale=TWO_PI):
    area = jnp.ones((1, h, w), jnp.float32)
    y_embed = jnp.cumsum(area, axis=1)
    x_embed = jnp.cumsum(area, axis=2)
    one_dir = d_model // 2
    eps = 1e-6
    y_embed = y_embed / (y_embed[:, -1:, :] + eps) * scale
    x_embed = x_embed / (x_embed[:, :, -1:] + eps) * scale
    i = jnp.arange(one_dir)
    dim_t = temperature ** ((2 * (i // 2)).astype(jnp.float32) / one_dir)
    pos_x = x_embed[:, :, :, None] / dim_t
    pos_y = y_embed[:, :, :, None] / dim_t
    even = (jnp.arange(one_dir) % 2) == 0
    pos_x = jnp.where(even, jnp.sin(pos_x), jnp.cos(pos_x))
    pos_y = jnp.where(even, jnp.sin(pos_y), jnp.cos(pos_y))
    pos = jnp.concatenate([pos_y, pos_x], axis=3)               # (1,h,w,d)
    return pos.reshape(1, h * w, d_model)


def build_const_pack():
    """Pack the sine-encoding constants + image pos-embedding into one tile:
    rows 0..3 = cu, cv, cd, phase; rows 4..7 = padding (8-aligned); rows 8.. =
    sine position embedding (NP rows).  One shared VMEM input instead of 5+."""
    d2 = EMB_DIM // 2
    i = jnp.arange(EMB_DIM)
    j = i % d2
    dim_t_half = TEMP ** ((2 * (j // 2)).astype(jnp.float32) / d2)
    cv = jnp.where(i < d2, TWO_PI / dim_t_half, 0.0)[None, :]    # v -> first half
    cu = jnp.where(i >= d2, TWO_PI / dim_t_half, 0.0)[None, :]   # u -> second half
    dim_t_full = TEMP ** ((2 * (i // 2)).astype(jnp.float32) / EMB_DIM)
    cd = (TWO_PI / dim_t_full)[None, :]
    phase = ((i % 2).astype(jnp.float32) * (math.pi / 2.0))[None, :]
    pad = jnp.zeros((4, EMB_DIM), jnp.float32)
    pos = make_sine_position_embedding(EMB_DIM, HF // 2, WF // 2)[0]   # (NP, EMB)
    return jnp.concatenate([cu, cv, cd, phase, pad, pos], axis=0)      # (NCONST, EMB)


def to_patches(x):
    # rearrange 'b c (h p1) (w p2) -> b (h w) (p1 p2 c)', p1=p2=2   (NCHW input)
    b, c, hf, wf = x.shape
    h2, w2 = hf // 2, wf // 2
    x = x.reshape(b, c, h2, 2, w2, 2)
    x = jnp.transpose(x, (0, 2, 4, 3, 5, 1))
    return x.reshape(b, h2 * w2, 2 * 2 * c)


# ======================= plain-JAX glue (rasterization) =====================

def verts_to_proj_inds(verts, h, w):
    b, num_verts, _ = verts.shape
    depth_val = verts[:, :, 2]
    ind_sort = jnp.argsort(-depth_val, axis=-1)                 # descending depth
    u = jnp.take_along_axis(verts[:, :, 0], ind_sort, -1)
    v = jnp.take_along_axis(verts[:, :, 1], ind_sort, -1)
    u = jnp.clip(u * w / 2 + w / 2, 0, w - 1)
    v = jnp.clip(v * h / 2 + h / 2, 0, h - 1)
    # NOTE: row stride is `w` (reference code used `h`; equivalent only for h==w).
    uv_idx = jnp.round(v).astype(jnp.int32) * w + jnp.round(u).astype(jnp.int32)
    # Deterministic z-buffer: torch's sequential scatter_ lets the LAST write win,
    # i.e. the vertex at the largest depth-sorted position.  Emulate with a
    # scatter-max over (sorted position + 1); 0 marks empty pixels.
    pos = jnp.broadcast_to(jnp.arange(1, num_verts + 1, dtype=jnp.int32)[None, :],
                           (b, num_verts))
    batch_idx = jnp.arange(b)[:, None]
    occ = jnp.zeros((b, h * w), jnp.int32).at[batch_idx, uv_idx].max(pos)
    verts_ind_sorted = (ind_sort + 1).astype(jnp.int32)         # original id + 1
    padded = jnp.concatenate([jnp.zeros((b, 1), jnp.int32), verts_ind_sorted],
                             axis=1)
    verts_ind_img = jnp.take_along_axis(padded, occ, axis=1)
    return verts_ind_img.reshape(b, h, w), uv_idx


def verts_feature_assign(verts_ind_img, verts_feat, pad_val=0.0):
    b, h, w = verts_ind_img.shape
    c = verts_feat.shape[2]
    pad = jnp.full((b, 1, c), pad_val, verts_feat.dtype)
    feat = jnp.concatenate([pad, verts_feat], axis=1)           # (b, NV+1, c)
    inds = verts_ind_img.reshape(b, h * w)
    sample = jnp.take_along_axis(feat, inds[:, :, None], axis=1)  # (b, hw, c)
    return jnp.transpose(sample, (0, 2, 1)).reshape(b, c, h, w)


# ============================= full forward =============================

def cvthead_forward(params, src_verts, drv_verts, src_cam, drv_cam,
                    src_tform, drv_tform, beta_hair, ae_feat, hair_deform=True):
    outputs = {}
    bsz = src_verts.shape[0]
    # TODO(synk): FaceParsing, DECA encode/decode, ResNet50 hair model and the ROME
    # autoencoder + ae_proj are external pretrained networks and are not reproduced;
    # verts / cam / beta_hair / ae_feat are taken as inputs.

    if hair_deform:
        beta_in = beta_hair
        mean_in = params['deform_mean']
    else:
        beta_in = jnp.zeros_like(beta_hair)
        mean_in = jnp.zeros_like(params['deform_mean'])

    # Block-diagonal expansion: deform = basis2d @ beta_exp is one MXU matmul.
    eye3 = jnp.eye(3, dtype=beta_in.dtype)
    beta_exp = jnp.einsum('bl,kj->bklj', beta_in, eye3).reshape(bsz, 3 * LH, 3)
    basis2d = params['deform_basis'].reshape(NV, 3 * LH)

    src_aff = fold_affine(src_cam, src_tform, H, W)
    drv_aff = fold_affine(drv_cam, drv_tform, H, W)
    patches = to_patches(ae_feat)

    src_trans, drv_trans, tokens, vtx_descriptor = cvthead_fused(
        basis2d, mean_in, beta_exp, src_verts, drv_verts, src_aff, drv_aff,
        patches, params['pe_w'], params['pe_b'], params['vtx_query'],
        params['down_transform'], params['up_transform'],
        params['head_w'], params['head_b'], params['const_pack'])

    # ---- driver-side rasterization of vertex features (XLA glue) ----
    drv_ind_img, _ = verts_to_proj_inds(drv_trans, H, W)
    drv_depth_img = verts_feature_assign(drv_ind_img, drv_trans[:, :, 2:],
                                         pad_val=-2.0)
    drv_vtx_feat_image = verts_feature_assign(drv_ind_img, vtx_descriptor,
                                              pad_val=0.0)
    x = jnp.concatenate([drv_depth_img, drv_vtx_feat_image], axis=1)
    # TODO(synk): UNet generator (external module) not reproduced; its input
    # feature map is returned instead of pred_drv_img / pred_drv_mask.
    outputs['drv_depth_img'] = drv_depth_img
    outputs['drv_vtx_feat_image'] = drv_vtx_feat_image
    outputs['unet_input'] = x
    outputs['vtx_descriptor'] = vtx_descriptor
    outputs['tokens'] = tokens
    outputs['src_trans_verts_aug'] = src_trans
    outputs['drv_trans_verts_aug'] = drv_trans
    return outputs


# ================================= main =================================

if __name__ == "__main__":
    key = jax.random.PRNGKey(0)
    ks = jax.random.split(key, 20)

    params = {
        'deform_basis': 0.01 * jax.random.normal(ks[0], (NV, 3, LH), jnp.float32),
        'deform_mean':  0.01 * jax.random.normal(ks[1], (NV, 3), jnp.float32),
        'pe_w': 0.05 * jax.random.normal(ks[2], (PATCH_DIM, EMB_DIM), jnp.float32),
        'pe_b': jnp.zeros((1, EMB_DIM), jnp.float32),
        'vtx_query': jnp.zeros((1, NC, EMB_DIM), jnp.float32),   # nn.Parameter(zeros)
        'down_transform': 0.1 * jax.random.normal(ks[3], (NC, NV), jnp.float32),
        'up_transform':   0.1 * jax.random.normal(ks[4], (NV, NC), jnp.float32),
        'head_w': 0.1 * jax.random.normal(ks[5], (EMB_DIM, EMB_D), jnp.float32),
        'head_b': jnp.zeros((1, EMB_D), jnp.float32),
        'const_pack': build_const_pack(),
    }

    src_verts = 0.15 * jax.random.normal(ks[6], (B, NV, 3), jnp.float32)
    drv_verts = 0.15 * jax.random.normal(ks[7], (B, NV, 3), jnp.float32)
    src_cam = jnp.concatenate(
        [7.0 + 0.1 * jax.random.normal(ks[8], (B, 1), jnp.float32),
         0.02 * jax.random.normal(ks[9], (B, 2), jnp.float32)], axis=1)
    drv_cam = jnp.concatenate(
        [7.0 + 0.1 * jax.random.normal(ks[10], (B, 1), jnp.float32),
         0.02 * jax.random.normal(ks[11], (B, 2), jnp.float32)], axis=1)
    base_tform = jnp.diag(jnp.array([DECA_SIZE / W, DECA_SIZE / H, 1.0], jnp.float32))
    src_tform = base_tform[None] + 1e-3 * jax.random.normal(ks[12], (B, 3, 3), jnp.float32)
    drv_tform = base_tform[None] + 1e-3 * jax.random.normal(ks[13], (B, 3, 3), jnp.float32)
    beta_hair = jax.random.normal(ks[14], (B, LH), jnp.float32)
    ae_feat = jax.random.normal(ks[15], (B, C_AE, HF, WF), jnp.float32)

    fwd = jax.jit(cvthead_forward, static_argnames=('hair_deform',))
    out = fwd(params, src_verts, drv_verts, src_cam, drv_cam,
              src_tform, drv_tform, beta_hair, ae_feat, hair_deform=True)
    out = jax.block_until_ready(out)

    assert out['drv_depth_img'].shape == (B, 1, H, W)
    assert out['drv_vtx_feat_image'].shape == (B, EMB_D, H, W)
    assert out['unet_input'].shape == (B, 1 + EMB_D, H, W)
    assert out['vtx_descriptor'].shape == (B, NV, EMB_D)
    assert out['tokens'].shape == (B, NTOK, EMB_DIM)
    assert out['src_trans_verts_aug'].shape == (B, NV, 3)
    assert out['drv_trans_verts_aug'].shape == (B, NV, 3)
    assert all(bool(jnp.all(jnp.isfinite(v))) for v in out.values())

    print("KERNEL_OK")
</pallas_src>

<mosaic_0001>
module attributes {stable_mosaic.version = 11 : i64} {
  func.func private @main(%arg0: i32) attributes {dimension_semantics = [#tpu.dimension_semantics<core_parallel>], iteration_bounds = array<i64: 2>, tpu.core_type = #tpu.core_type<sc_scalar_subcore>, window_params = []} {
    return
  }
}

module attributes {stable_mosaic.version = 11 : i64} {
  func.func private @main(%arg0: i32) attributes {dimension_semantics = [#tpu.dimension_semantics<core_parallel>], iteration_bounds = array<i64: 2>, tpu.core_type = #tpu.core_type<sc_scalar_subcore>, window_params = []} {
    return
  }
}

module attributes {stable_mosaic.version = 11 : i64} {
  func.func @_cvthead_fused_kernel(%arg0: i32, %arg1: memref<64x36xf32, #tpu.memory_space<vmem>>, %arg2: memref<64x3xf32, #tpu.memory_space<vmem>>, %arg3: memref<1x36x3xf32, #tpu.memory_space<vmem>>, %arg4: memref<1x64x3xf32, #tpu.memory_space<vmem>>, %arg5: memref<1x64x3xf32, #tpu.memory_space<vmem>>, %arg6: memref<1x4x3xf32, #tpu.memory_space<vmem>>, %arg7: memref<1x4x3xf32, #tpu.memory_space<vmem>>, %arg8: memref<1x16x64xf32, #tpu.memory_space<vmem>>, %arg9: memref<64x32xf32, #tpu.memory_space<vmem>>, %arg10: memref<1x32xf32, #tpu.memory_space<vmem>>, %arg11: memref<1x16x32xf32, #tpu.memory_space<vmem>>, %arg12: memref<16x64xf32, #tpu.memory_space<vmem>>, %arg13: memref<64x16xf32, #tpu.memory_space<vmem>>, %arg14: memref<32x8xf32, #tpu.memory_space<vmem>>, %arg15: memref<1x8xf32, #tpu.memory_space<vmem>>, %arg16: memref<24x32xf32, #tpu.memory_space<vmem>>, %arg17: memref<1x64x3xf32, #tpu.memory_space<vmem>>, %arg18: memref<1x64x3xf32, #tpu.memory_space<vmem>>, %arg19: memref<1x32x32xf32, #tpu.memory_space<vmem>>, %arg20: memref<1x64x8xf32, #tpu.memory_space<vmem>>) attributes {dimension_semantics = [#tpu.dimension_semantics<parallel>], iteration_bounds = array<i64: 2>, scalar_prefetch = 0 : i64, scratch_operands = 0 : i64, tpu.core_type = #tpu.core_type<tc>, window_params = [{pipeline_mode = #tpu.pipeline_mode<synchronous>, transform_indices = @transform_0, window_bounds = array<i64: 64, 36>}, {pipeline_mode = #tpu.pipeline_mode<synchronous>, transform_indices = @transform_1, window_bounds = array<i64: 64, 3>}, {transform_indices = @transform_2, window_bounds = array<i64: 1, 36, 3>}, {transform_indices = @transform_3, window_bounds = array<i64: 1, 64, 3>}, {transform_indices = @transform_4, window_bounds = array<i64: 1, 64, 3>}, {transform_indices = @transform_5, window_bounds = array<i64: 1, 4, 3>}, {transform_indices = @transform_6, window_bounds = array<i64: 1, 4, 3>}, {transform_indices = @transform_7, window_bounds = array<i64: 1, 16, 64>}, {pipeline_mode = #tpu.pipeline_mode<synchronous>, transform_indices = @transform_8, window_bounds = array<i64: 64, 32>}, {pipeline_mode = #tpu.pipeline_mode<synchronous>, transform_indices = @transform_9, window_bounds = array<i64: 1, 32>}, {pipeline_mode = #tpu.pipeline_mode<synchronous>, transform_indices = @transform_10, window_bounds = array<i64: 1, 16, 32>}, {pipeline_mode = #tpu.pipeline_mode<synchronous>, transform_indices = @transform_11, window_bounds = array<i64: 16, 64>}, {pipeline_mode = #tpu.pipeline_mode<synchronous>, transform_indices = @transform_12, window_bounds = array<i64: 64, 16>}, {pipeline_mode = #tpu.pipeline_mode<synchronous>, transform_indices = @transform_13, window_bounds = array<i64: 32, 8>}, {pipeline_mode = #tpu.pipeline_mode<synchronous>, transform_indices = @transform_14, window_bounds = array<i64: 1, 8>}, {pipeline_mode = #tpu.pipeline_mode<synchronous>, transform_indices = @transform_15, window_bounds = array<i64: 24, 32>}, {transform_indices = @transform_16, window_bounds = array<i64: 1, 64, 3>}, {transform_indices = @transform_17, window_bounds = array<i64: 1, 64, 3>}, {transform_indices = @transform_18, window_bounds = array<i64: 1, 32, 32>}, {transform_indices = @transform_19, window_bounds = array<i64: 1, 64, 8>}]} {
    %c0 = arith.constant 0 : index
    %c0_0 = arith.constant 0 : index
    %0 = vector.load %arg1[%c0, %c0_0] : memref<64x36xf32, #tpu.memory_space<vmem>>, vector<64x36xf32>
    %c0_1 = arith.constant 0 : index
    %c0_2 = arith.constant 0 : index
    %c0_3 = arith.constant 0 : index
    %1 = vector.load %arg3[%c0_1, %c0_2, %c0_3] : memref<1x36x3xf32, #tpu.memory_space<vmem>>, vector<1x36x3xf32>
    %2 = vector.shape_cast %1 : vector<1x36x3xf32> to vector<36x3xf32>
    %cst = arith.constant dense<0.000000e+00> : vector<64x3xf32>
    %3 = tpu.matmul %0, %2, %cst {dimension_numbers = #tpu.dot_dimension_numbers<[1], [0], [0], [1], [0, 0, 1, 1], [], []>} : vector<64x36xf32>, vector<36x3xf32>, vector<64x3xf32> -> vector<64x3xf32>
    %c0_4 = arith.constant 0 : index
    %c0_5 = arith.constant 0 : index
    %4 = vector.load %arg2[%c0_4, %c0_5] : memref<64x3xf32, #tpu.memory_space<vmem>>, vector<64x3xf32>
    %5 = arith.addf %3, %4 : vector<64x3xf32>
    %c0_6 = arith.constant 0 : index
    %c0_7 = arith.constant 0 : index
    %c0_8 = arith.constant 0 : index
    %6 = vector.load %arg4[%c0_6, %c0_7, %c0_8] : memref<1x64x3xf32, #tpu.memory_space<vmem>>, vector<1x64x3xf32>
    %7 = vector.shape_cast %6 : vector<1x64x3xf32> to vector<64x3xf32>
    %8 = arith.addf %7, %5 : vector<64x3xf32>
    %c0_9 = arith.constant 0 : index
    %c0_10 = arith.constant 0 : index
    %c0_11 = arith.constant 0 : index
    %9 = vector.load %arg6[%c0_9, %c0_10, %c0_11] : memref<1x4x3xf32, #tpu.memory_space<vmem>>, vector<1x4x3xf32>
    %10 = vector.shape_cast %9 : vector<1x4x3xf32> to vector<4x3xf32>
    %11 = vector.extract_strided_slice %8 {offsets = [0, 0], sizes = [64, 1], strides = [1, 1]} : vector<64x3xf32> to vector<64x1xf32>
    %12 = vector.extract_strided_slice %10 {offsets = [0, 0], sizes = [1, 3], strides = [1, 1]} : vector<4x3xf32> to vector<1x3xf32>
    %13 = vector.broadcast %11 : vector<64x1xf32> to vector<64x3xf32>
    %14 = vector.broadcast %12 : vector<1x3xf32> to vector<64x3xf32>
    %15 = arith.mulf %13, %14 : vector<64x3xf32>
    %16 = vector.extract_strided_slice %8 {offsets = [0, 1], sizes = [64, 1], strides = [1, 1]} : vector<64x3xf32> to vector<64x1xf32>
    %17 = vector.extract_strided_slice %10 {offsets = [1, 0], sizes = [1, 3], strides = [1, 1]} : vector<4x3xf32> to vector<1x3xf32>
    %18 = vector.broadcast %16 : vector<64x1xf32> to vector<64x3xf32>
    %19 = vector.broadcast %17 : vector<1x3xf32> to vector<64x3xf32>
    %20 = arith.mulf %18, %19 : vector<64x3xf32>
    %21 = arith.addf %15, %20 : vector<64x3xf32>
    %22 = vector.extract_strided_slice %8 {offsets = [0, 2], sizes = [64, 1], strides = [1, 1]} : vector<64x3xf32> to vector<64x1xf32>
    %23 = vector.extract_strided_slice %10 {offsets = [2, 0], sizes = [1, 3], strides = [1, 1]} : vector<4x3xf32> to vector<1x3xf32>
    %24 = vector.broadcast %22 : vector<64x1xf32> to vector<64x3xf32>
    %25 = vector.broadcast %23 : vector<1x3xf32> to vector<64x3xf32>
    %26 = arith.mulf %24, %25 : vector<64x3xf32>
    %27 = arith.addf %21, %26 : vector<64x3xf32>
    %28 = vector.extract_strided_slice %10 {offsets = [3, 0], sizes = [1, 3], strides = [1, 1]} : vector<4x3xf32> to vector<1x3xf32>
    %29 = vector.broadcast %28 : vector<1x3xf32> to vector<64x3xf32>
    %30 = arith.addf %27, %29 : vector<64x3xf32>
    %c0_12 = arith.constant 0 : index
    %c0_13 = arith.constant 0 : index
    %c0_14 = arith.constant 0 : index
    %31 = vector.load %arg5[%c0_12, %c0_13, %c0_14] : memref<1x64x3xf32, #tpu.memory_space<vmem>>, vector<1x64x3xf32>
    %32 = vector.shape_cast %31 : vector<1x64x3xf32> to vector<64x3xf32>
    %33 = arith.addf %32, %5 : vector<64x3xf32>
    %c0_15 = arith.constant 0 : index
    %c0_16 = arith.constant 0 : index
    %c0_17 = arith.constant 0 : index
    %34 = vector.load %arg7[%c0_15, %c0_16, %c0_17] : memref<1x4x3xf32, #tpu.memory_space<vmem>>, vector<1x4x3xf32>
    %35 = vector.shape_cast %34 : vector<1x4x3xf32> to vector<4x3xf32>
    %36 = vector.extract_strided_slice %33 {offsets = [0, 0], sizes = [64, 1], strides = [1, 1]} : vector<64x3xf32> to vector<64x1xf32>
    %37 = vector.extract_strided_slice %35 {offsets = [0, 0], sizes = [1, 3], strides = [1, 1]} : vector<4x3xf32> to vector<1x3xf32>
    %38 = vector.broadcast %36 : vector<64x1xf32> to vector<64x3xf32>
    %39 = vector.broadcast %37 : vector<1x3xf32> to vector<64x3xf32>
    %40 = arith.mulf %38, %39 : vector<64x3xf32>
    %41 = vector.extract_strided_slice %33 {offsets = [0, 1], sizes = [64, 1], strides = [1, 1]} : vector<64x3xf32> to vector<64x1xf32>
    %42 = vector.extract_strided_slice %35 {offsets = [1, 0], sizes = [1, 3], strides = [1, 1]} : vector<4x3xf32> to vector<1x3xf32>
    %43 = vector.broadcast %41 : vector<64x1xf32> to vector<64x3xf32>
    %44 = vector.broadcast %42 : vector<1x3xf32> to vector<64x3xf32>
    %45 = arith.mulf %43, %44 : vector<64x3xf32>
    %46 = arith.addf %40, %45 : vector<64x3xf32>
    %47 = vector.extract_strided_slice %33 {offsets = [0, 2], sizes = [64, 1], strides = [1, 1]} : vector<64x3xf32> to vector<64x1xf32>
    %48 = vector.extract_strided_slice %35 {offsets = [2, 0], sizes = [1, 3], strides = [1, 1]} : vector<4x3xf32> to vector<1x3xf32>
    %49 = vector.broadcast %47 : vector<64x1xf32> to vector<64x3xf32>
    %50 = vector.broadcast %48 : vector<1x3xf32> to vector<64x3xf32>
    %51 = arith.mulf %49, %50 : vector<64x3xf32>
    %52 = arith.addf %46, %51 : vector<64x3xf32>
    %53 = vector.extract_strided_slice %35 {offsets = [3, 0], sizes = [1, 3], strides = [1, 1]} : vector<4x3xf32> to vector<1x3xf32>
    %54 = vector.broadcast %53 : vector<1x3xf32> to vector<64x3xf32>
    %55 = arith.addf %52, %54 : vector<64x3xf32>
    %c0_18 = arith.constant 0 : index
    %c0_19 = arith.constant 0 : index
    %c0_20 = arith.constant 0 : index
    %56 = vector.load %arg17[%c0_18, %c0_19, %c0_20] : memref<1x64x3xf32, #tpu.memory_space<vmem>>, vector<1x64x3xf32>
    %57 = vector.shape_cast %56 : vector<1x64x3xf32> to vector<64x3xf32>
    %58 = vector.shape_cast %30 : vector<64x3xf32> to vector<1x64x3xf32>
    tpu.vector_store %arg17[%c0_18, %c0_19, %c0_20], %58 {strides = array<i32>} : memref<1x64x3xf32, #tpu.memory_space<vmem>>, vector<1x64x3xf32>,
    %c0_21 = arith.constant 0 : index
    %c0_22 = arith.constant 0 : index
    %c0_23 = arith.constant 0 : index
    %59 = vector.load %arg18[%c0_21, %c0_22, %c0_23] : memref<1x64x3xf32, #tpu.memory_space<vmem>>, vector<1x64x3xf32>
    %60 = vector.shape_cast %59 : vector<1x64x3xf32> to vector<64x3xf32>
    %61 = vector.shape_cast %55 : vector<64x3xf32> to vector<1x64x3xf32>
    tpu.vector_store %arg18[%c0_21, %c0_22, %c0_23], %61 {strides = array<i32>} : memref<1x64x3xf32, #tpu.memory_space<vmem>>, vector<1x64x3xf32>,
    %c0_24 = arith.constant 0 : index
    %c0_25 = arith.constant 0 : index
    %62 = vector.load %arg12[%c0_24, %c0_25] : memref<16x64xf32, #tpu.memory_space<vmem>>, vector<16x64xf32>
    %cst_26 = arith.constant dense<0.000000e+00> : vector<16x3xf32>
    %63 = tpu.matmul %62, %30, %cst_26 {dimension_numbers = #tpu.dot_dimension_numbers<[1], [0], [0], [1], [0, 0, 1, 1], [], []>} : vector<16x64xf32>, vector<64x3xf32>, vector<16x3xf32> -> vector<16x3xf32>
    %c0_27 = arith.constant 0 : index
    %c0_28 = arith.constant 0 : index
    %64 = vector.load %arg16[%c0_27, %c0_28] : memref<24x32xf32, #tpu.memory_space<vmem>>, vector<1x32xf32>
    %c1 = arith.constant 1 : index
    %c0_29 = arith.constant 0 : index
    %65 = vector.load %arg16[%c1, %c0_29] : memref<24x32xf32, #tpu.memory_space<vmem>>, vector<1x32xf32>
    %c2 = arith.constant 2 : index
    %c0_30 = arith.constant 0 : index
    %66 = vector.load %arg16[%c2, %c0_30] : memref<24x32xf32, #tpu.memory_space<vmem>>, vector<1x32xf32>
    %c3 = arith.constant 3 : index
    %c0_31 = arith.constant 0 : index
    %67 = vector.load %arg16[%c3, %c0_31] : memref<24x32xf32, #tpu.memory_space<vmem>>, vector<1x32xf32>
    %68 = vector.extract_strided_slice %63 {offsets = [0, 0], sizes = [16, 1], strides = [1, 1]} : vector<16x3xf32> to vector<16x1xf32>
    %cst_32 = arith.constant 5.000000e-01 : f32
    %69 = vector.broadcast %cst_32 : f32 to vector<16x1xf32>
    %70 = arith.mulf %69, %68 : vector<16x1xf32>
    %cst_33 = arith.constant 5.000000e-01 : f32
    %71 = vector.broadcast %cst_33 : f32 to vector<16x1xf32>
    %72 = arith.addf %70, %71 : vector<16x1xf32>
    %73 = vector.extract_strided_slice %63 {offsets = [0, 1], sizes = [16, 1], strides = [1, 1]} : vector<16x3xf32> to vector<16x1xf32>
    %cst_34 = arith.constant 5.000000e-01 : f32
    %74 = vector.broadcast %cst_34 : f32 to vector<16x1xf32>
    %75 = arith.mulf %74, %73 : vector<16x1xf32>
    %cst_35 = arith.constant 5.000000e-01 : f32
    %76 = vector.broadcast %cst_35 : f32 to vector<16x1xf32>
    %77 = arith.addf %75, %76 : vector<16x1xf32>
    %78 = vector.extract_strided_slice %63 {offsets = [0, 2], sizes = [16, 1], strides = [1, 1]} : vector<16x3xf32> to vector<16x1xf32>
    %cst_36 = arith.constant 5.000000e-01 : f32
    %79 = vector.broadcast %cst_36 : f32 to vector<16x1xf32>
    %80 = arith.mulf %79, %78 : vector<16x1xf32>
    %cst_37 = arith.constant 5.000000e-01 : f32
    %81 = vector.broadcast %cst_37 : f32 to vector<16x1xf32>
    %82 = arith.addf %80, %81 : vector<16x1xf32>
    %83 = vector.broadcast %72 : vector<16x1xf32> to vector<16x32xf32>
    %84 = vector.broadcast %64 : vector<1x32xf32> to vector<16x32xf32>
    %85 = arith.mulf %83, %84 : vector<16x32xf32>
    %86 = vector.broadcast %77 : vector<16x1xf32> to vector<16x32xf32>
    %87 = vector.broadcast %65 : vector<1x32xf32> to vector<16x32xf32>
    %88 = arith.mulf %86, %87 : vector<16x32xf32>
    %89 = arith.addf %85, %88 : vector<16x32xf32>
    %90 = vector.broadcast %67 : vector<1x32xf32> to vector<16x32xf32>
    %91 = arith.addf %89, %90 : vector<16x32xf32>
    %92 = math.sin %91 : vector<16x32xf32>
    %93 = vector.broadcast %82 : vector<16x1xf32> to vector<16x32xf32>
    %94 = vector.broadcast %66 : vector<1x32xf32> to vector<16x32xf32>
    %95 = arith.mulf %93, %94 : vector<16x32xf32>
    %96 = vector.broadcast %67 : vector<1x32xf32> to vector<16x32xf32>
    %97 = arith.addf %95, %96 : vector<16x32xf32>
    %98 = math.sin %97 : vector<16x32xf32>
    %c0_38 = arith.constant 0 : index
    %c0_39 = arith.constant 0 : index
    %c0_40 = arith.constant 0 : index
    %99 = vector.load %arg11[%c0_38, %c0_39, %c0_40] : memref<1x16x32xf32, #tpu.memory_space<vmem>>, vector<1x16x32xf32>
    %100 = vector.shape_cast %99 : vector<1x16x32xf32> to vector<16x32xf32>
    %101 = arith.addf %100, %92 : vector<16x32xf32>
    %102 = arith.addf %101, %98 : vector<16x32xf32>
    %c8 = arith.constant 8 : index
    %c0_41 = arith.constant 0 : index
    %103 = vector.load %arg16[%c8, %c0_41] : memref<24x32xf32, #tpu.memory_space<vmem>>, vector<16x32xf32>
    %c0_42 = arith.constant 0 : index
    %c0_43 = arith.constant 0 : index
    %c0_44 = arith.constant 0 : index
    %104 = vector.load %arg8[%c0_42, %c0_43, %c0_44] : memref<1x16x64xf32, #tpu.memory_space<vmem>>, vector<1x16x64xf32>
    %105 = vector.shape_cast %104 : vector<1x16x64xf32> to vector<16x64xf32>
    %c0_45 = arith.constant 0 : index
    %c0_46 = arith.constant 0 : index
    %106 = vector.load %arg9[%c0_45, %c0_46] : memref<64x32xf32, #tpu.memory_space<vmem>>, vector<64x32xf32>
    %cst_47 = arith.constant dense<0.000000e+00> : vector<16x32xf32>
    %107 = tpu.matmul %105, %106, %cst_47 {dimension_numbers = #tpu.dot_dimension_numbers<[1], [0], [0], [1], [0, 0, 1, 1], [], []>} : vector<16x64xf32>, vector<64x32xf32>, vector<16x32xf32> -> vector<16x32xf32>
    %c0_48 = arith.constant 0 : index
    %c0_49 = arith.constant 0 : index
    %108 = vector.load %arg10[%c0_48, %c0_49] : memref<1x32xf32, #tpu.memory_space<vmem>>, vector<1x32xf32>
    %109 = vector.broadcast %108 : vector<1x32xf32> to vector<16x32xf32>
    %110 = arith.addf %107, %109 : vector<16x32xf32>
    %111 = arith.addf %110, %103 : vector<16x32xf32>
    %c0_50 = arith.constant 0 : index
    %c0_51 = arith.constant 0 : index
    %c0_52 = arith.constant 0 : index
    %112 = vector.load %arg19[%c0_50, %c0_51, %c0_52] : memref<1x32x32xf32, #tpu.memory_space<vmem>>, vector<1x16x32xf32>
    %113 = vector.shape_cast %112 : vector<1x16x32xf32> to vector<16x32xf32>
    %114 = vector.shape_cast %102 : vector<16x32xf32> to vector<1x16x32xf32>
    tpu.vector_store %arg19[%c0_50, %c0_51, %c0_52], %114 {strides = array<i32>} : memref<1x32x32xf32, #tpu.memory_space<vmem>>, vector<1x16x32xf32>,
    %c0_53 = arith.constant 0 : index
    %c16 = arith.constant 16 : index
    %c0_54 = arith.constant 0 : index
    %115 = vector.load %arg19[%c0_53, %c16, %c0_54] : memref<1x32x32xf32, #tpu.memory_space<vmem>>, vector<1x16x32xf32>
    %116 = vector.shape_cast %115 : vector<1x16x32xf32> to vector<16x32xf32>
    %117 = vector.shape_cast %111 : vector<16x32xf32> to vector<1x16x32xf32>
    tpu.vector_store %arg19[%c0_53, %c16, %c0_54], %117 {strides = array<i32>} : memref<1x32x32xf32, #tpu.memory_space<vmem>>, vector<1x16x32xf32>,
    %c0_55 = arith.constant 0 : index
    %c0_56 = arith.constant 0 : index
    %118 = vector.load %arg14[%c0_55, %c0_56] : memref<32x8xf32, #tpu.memory_space<vmem>>, vector<32x8xf32>
    %cst_57 = arith.constant dense<0.000000e+00> : vector<16x8xf32>
    %119 = tpu.matmul %102, %118, %cst_57 {dimension_numbers = #tpu.dot_dimension_numbers<[1], [0], [0], [1], [0, 0, 1, 1], [], []>} : vector<16x32xf32>, vector<32x8xf32>, vector<16x8xf32> -> vector<16x8xf32>
    %c0_58 = arith.constant 0 : index
    %c0_59 = arith.constant 0 : index
    %120 = vector.load %arg13[%c0_58, %c0_59] : memref<64x16xf32, #tpu.memory_space<vmem>>, vector<64x16xf32>
    %cst_60 = arith.constant dense<0.000000e+00> : vector<64x8xf32>
    %121 = tpu.matmul %120, %119, %cst_60 {dimension_numbers = #tpu.dot_dimension_numbers<[1], [0], [0], [1], [0, 0, 1, 1], [], []>} : vector<64x16xf32>, vector<16x8xf32>, vector<64x8xf32> -> vector<64x8xf32>
    %c0_61 = arith.constant 0 : index
    %c0_62 = arith.constant 0 : index
    %122 = vector.load %arg15[%c0_61, %c0_62] : memref<1x8xf32, #tpu.memory_space<vmem>>, vector<1x8xf32>
    %123 = vector.broadcast %122 : vector<1x8xf32> to vector<64x8xf32>
    %124 = arith.addf %121, %123 : vector<64x8xf32>
    %c0_63 = arith.constant 0 : index
    %c0_64 = arith.constant 0 : index
    %c0_65 = arith.constant 0 : index
    %125 = vector.load %arg20[%c0_63, %c0_64, %c0_65] : memref<1x64x8xf32, #tpu.memory_space<vmem>>, vector<1x64x8xf32>
    %126 = vector.shape_cast %125 : vector<1x64x8xf32> to vector<64x8xf32>
    %127 = vector.shape_cast %124 : vector<64x8xf32> to vector<1x64x8xf32>
    tpu.vector_store %arg20[%c0_63, %c0_64, %c0_65], %127 {strides = array<i32>} : memref<1x64x8xf32, #tpu.memory_space<vmem>>, vector<1x64x8xf32>,
    return
  }
  func.func @transform_0(%arg0: i32) -> (i32, i32) {
    %c0_i32 = arith.constant 0 : i32
    %c0_i32_0 = arith.constant 0 : i32
    %c0_i32_1 = arith.constant 0 : i32
    return %c0_i32, %c0_i32_0 : i32, i32
  }
  func.func @transform_1(%arg0: i32) -> (i32, i32) {
    %c0_i32 = arith.constant 0 : i32
    %c0_i32_0 = arith.constant 0 : i32
    %c0_i32_1 = arith.constant 0 : i32
    return %c0_i32, %c0_i32_0 : i32, i32
  }
  func.func @transform_2(%arg0: i32) -> (i32, i32, i32) {
    %c0_i32 = arith.constant 0 : i32
    %c0_i32_0 = arith.constant 0 : i32
    %c0_i32_1 = arith.constant 0 : i32
    return %arg0, %c0_i32, %c0_i32_0 : i32, i32, i32
  }
  func.func @transform_3(%arg0: i32) -> (i32, i32, i32) {
    %c0_i32 = arith.constant 0 : i32
    %c0_i32_0 = arith.constant 0 : i32
    %c0_i32_1 = arith.constant 0 : i32
    return %arg0, %c0_i32, %c0_i32_0 : i32, i32, i32
  }
  func.func @transform_4(%arg0: i32) -> (i32, i32, i32) {
    %c0_i32 = arith.constant 0 : i32
    %c0_i32_0 = arith.constant 0 : i32
    %c0_i32_1 = arith.constant 0 : i32
    return %arg0, %c0_i32, %c0_i32_0 : i32, i32, i32
  }
  func.func @transform_5(%arg0: i32) -> (i32, i32, i32) {
    %c0_i32 = arith.constant 0 : i32
    %c0_i32_0 = arith.constant 0 : i32
    %c0_i32_1 = arith.constant 0 : i32
    return %arg0, %c0_i32, %c0_i32_0 : i32, i32, i32
  }
  func.func @transform_6(%arg0: i32) -> (i32, i32, i32) {
    %c0_i32 = arith.constant 0 : i32
    %c0_i32_0 = arith.constant 0 : i32
    %c0_i32_1 = arith.constant 0 : i32
    return %arg0, %c0_i32, %c0_i32_0 : i32, i32, i32
  }
  func.func @transform_7(%arg0: i32) -> (i32, i32, i32) {
    %c0_i32 = arith.constant 0 : i32
    %c0_i32_0 = arith.constant 0 : i32
    %c0_i32_1 = arith.constant 0 : i32
    return %arg0, %c0_i32, %c0_i32_0 : i32, i32, i32
  }
  func.func @transform_8(%arg0: i32) -> (i32, i32) {
    %c0_i32 = arith.constant 0 : i32
    %c0_i32_0 = arith.constant 0 : i32
    %c0_i32_1 = arith.constant 0 : i32
    return %c0_i32, %c0_i32_0 : i32, i32
  }
  func.func @transform_9(%arg0: i32) -> (i32, i32) {
    %c0_i32 = arith.constant 0 : i32
    %c0_i32_0 = arith.constant 0 : i32
    %c0_i32_1 = arith.constant 0 : i32
    return %c0_i32, %c0_i32_0 : i32, i32
  }
  func.func @transform_10(%arg0: i32) -> (i32, i32, i32) {
    %c0_i32 = arith.constant 0 : i32
    %c0_i32_0 = arith.constant 0 : i32
    %c0_i32_1 = arith.constant 0 : i32
    %c0_i32_2 = arith.constant 0 : i32
    return %c0_i32, %c0_i32_0, %c0_i32_1 : i32, i32, i32
  }
  func.func @transform_11(%arg0: i32) -> (i32, i32) {
    %c0_i32 = arith.constant 0 : i32
    %c0_i32_0 = arith.constant 0 : i32
    %c0_i32_1 = arith.constant 0 : i32
    return %c0_i32, %c0_i32_0 : i32, i32
  }
  func.func @transform_12(%arg0: i32) -> (i32, i32) {
    %c0_i32 = arith.constant 0 : i32
    %c0_i32_0 = arith.constant 0 : i32
    %c0_i32_1 = arith.constant 0 : i32
    return %c0_i32, %c0_i32_0 : i32, i32
  }
  func.func @transform_13(%arg0: i32) -> (i32, i32) {
    %c0_i32 = arith.constant 0 : i32
    %c0_i32_0 = arith.constant 0 : i32
    %c0_i32_1 = arith.constant 0 : i32
    return %c0_i32, %c0_i32_0 : i32, i32
  }
  func.func @transform_14(%arg0: i32) -> (i32, i32) {
    %c0_i32 = arith.constant 0 : i32
    %c0_i32_0 = arith.constant 0 : i32
    %c0_i32_1 = arith.constant 0 : i32
    return %c0_i32, %c0_i32_0 : i32, i32
  }
  func.func @transform_15(%arg0: i32) -> (i32, i32) {
    %c0_i32 = arith.constant 0 : i32
    %c0_i32_0 = arith.constant 0 : i32
    %c0_i32_1 = arith.constant 0 : i32
    return %c0_i32, %c0_i32_0 : i32, i32
  }
  func.func @transform_16(%arg0: i32) -> (i32, i32, i32) {
    %c0_i32 = arith.constant 0 : i32
    %c0_i32_0 = arith.constant 0 : i32
    %c0_i32_1 = arith.constant 0 : i32
    return %arg0, %c0_i32, %c0_i32_0 : i32, i32, i32
  }
  func.func @transform_17(%arg0: i32) -> (i32, i32, i32) {
    %c0_i32 = arith.constant 0 : i32
    %c0_i32_0 = arith.constant 0 : i32
    %c0_i32_1 = arith.constant 0 : i32
    return %arg0, %c0_i32, %c0_i32_0 : i32, i32, i32
  }
  func.func @transform_18(%arg0: i32) -> (i32, i32, i32) {
    %c0_i32 = arith.constant 0 : i32
    %c0_i32_0 = arith.constant 0 : i32
    %c0_i32_1 = arith.constant 0 : i32
    return %arg0, %c0_i32, %c0_i32_0 : i32, i32, i32
  }
  func.func @transform_19(%arg0: i32) -> (i32, i32, i32) {
    %c0_i32 = arith.constant 0 : i32
    %c0_i32_0 = arith.constant 0 : i32
    %c0_i32_1 = arith.constant 0 : i32
    return %arg0, %c0_i32, %c0_i32_0 : i32, i32, i32
  }
}

</mosaic_0001>

<llo_original>
// kernel: custom-call.34
$region0: #{custom-call.34}
  %s0 = inlined_call_operand.vmem [shape: f32[2,3,3], index: 0, kind: input, shape index: {}]
  %s1 = inlined_call_operand.vmem [shape: f32[2,3,3], index: 1, kind: output, shape index: {0}]
  %s2 = inlined_call_operand.hbm [shape: s32[2,3], index: 2, kind: output, shape index: {1}]
  %s3 = inlined_call_operand.vmem [shape: s32[2,3], index: 3, kind: output, shape index: {2}]
  %4 = xla_tuple %s1, %s2, %s3
  $region1: #{custom-call.34} parent=0
    #allocation0 [shape = 'u8[4096]{0}', space=vmem, size = 0x1000, scoped, tag = 'operand span for operand 0']
    #allocation1 [shape = 'u8[4096]{0}', space=vmem, size = 0x1000, scoped, tag = 'packed  for operand 0']
    #allocation2 [shape = 'u8[4096]{0}', space=vmem, size = 0x1000, scoped, tag = 'operand span for operand 1']
    #allocation3 [shape = 'u8[4096]{0}', space=vmem, size = 0x1000, scoped, tag = 'packed  for operand 1']
    #allocation4 [shape = 'u8[4096]{0}', space=vmem, size = 0x1000, scoped, tag = 'operand span for operand 2']
    #allocation5 [shape = 'u8[2048]{0}', space=vmem, size = 0x800, scoped, tag = 'packed  for operand 2']
    #allocation6 [shape = 's32[2]{0}', space=sflag, size = 0x8, scoped, tag = 'scoped memory for custom-call.34']
    #allocation7 [shape = 'u8[4096]{0}', space=vmem, size = 0x1000, scoped, tag = 'operand span for operand 3']
    #allocation8 [shape = 'u8[2048]{0}', space=vmem, size = 0x800, scoped, tag = 'packed  for operand 3']
    %5 = vsyncpa [#allocation6], 0
    %s6 = scalar_lea.sflag [#allocation6], 1
    %7 = vsyncpa %s6, 0
    loop: start=0, step=1, limit=4
    $region2: #{custom-call.34} parent=1 // loop_pre_header
      _
    $region3: #{custom-call.34} parent=1 // loop_header
      %s9 = sphi 0, %s13
      %p10 = scmp.ge.s32.totalorder %s9, 4
      %s21 = sphi 0, %s23
      %s24 = sphi 0, %s21
      %s25 = sphi 0, %s24
      %s41 = sphi 0, %s25
      %s49 = sphi 0, %s51
      %s52 = sphi 0, %s49
      %s53 = sphi 0, %s52
      %s69 = sphi 0, %s53
    $region4: #{custom-call.34} parent=1 // loop_header_branch
      %12 = sbr.rel (%p10) target = $region8
    $region5: #{custom-call.34} parent=1 // loop_body
      %s14 = ssub.s32 %s9, 1
      %s15 = ssub.s32 %s9, 2
      %s16 = sadd.s32 %s9, 1
      %s17 = sshrl.u32 %s9, 3
      %s18 = sshrl.u32 %s16, 3
      %s19 = ssub.s32 %s17, %s18
      %p20 = scmp.eq.s32.totalorder %s19, 0
      %s22 = sadd.s32 %s21, 1
      %s23 = scalar_select %p20, %s21, %s22
      %p26 = pneg %p20
      %p27 = scmp.eq.s32.totalorder %s9, 1
      %p28 = por %p26, %p27
      %p29 = scmp.ne.s32.totalorder %s21, %s24
      %p30 = scmp.eq.s32.totalorder %s9, 0
      %p31 = por %p29, %p30
      %p32 = scmp.ne.s32.totalorder %s21, %s24
      %p33 = scmp.eq.s32.totalorder %s14, 1
      %p34 = por %p32, %p33
      %p35 = scmp.ne.s32.totalorder %s24, %s25
      %p36 = scmp.eq.s32.totalorder %s14, 0
      %p37 = por %p35, %p36
      %p38 = scmp.ne.s32.totalorder %s24, %s25
      %p39 = scmp.eq.s32.totalorder %s15, 1
      %p40 = por %p38, %p39
      %p42 = scmp.ne.s32.totalorder %s25, %s41
      %p43 = scmp.eq.s32.totalorder %s15, 0
      %p44 = por %p42, %p43
      %s45 = sshrl.u32 %s9, 3
      %s46 = sshrl.u32 %s16, 3
      %s47 = ssub.s32 %s45, %s46
      %p48 = scmp.eq.s32.totalorder %s47, 0
      %s50 = sadd.s32 %s49, 1
      %s51 = scalar_select %p48, %s49, %s50
      %p54 = pneg %p48
      %p55 = scmp.eq.s32.totalorder %s9, 1
      %p56 = por %p54, %p55
      %p57 = scmp.ne.s32.totalorder %s49, %s52
      %p58 = scmp.eq.s32.totalorder %s9, 0
      %p59 = por %p57, %p58
      %p60 = scmp.ne.s32.totalorder %s49, %s52
      %p61 = scmp.eq.s32.totalorder %s14, 1
      %p62 = por %p60, %p61
      %p63 = scmp.ne.s32.totalorder %s52, %s53
      %p64 = scmp.eq.s32.totalorder %s14, 0
      %p65 = por %p63, %p64
      %p66 = scmp.ne.s32.totalorder %s52, %s53
      %p67 = scmp.eq.s32.totalorder %s15, 1
      %p68 = por %p66, %p67
      %p70 = scmp.ne.s32.totalorder %s53, %s69
      %p71 = scmp.eq.s32.totalorder %s15, 0
      %p72 = por %p70, %p71
      %p73 = scmp.le.s32.totalorder 1, %s9
      %p74 = scmp.lt.s32.totalorder %s9, 3
      %p75 = pnand %p73, %p74
      %p76 = pneg %p75
      // Predicated region
      $region9: #{custom-call.34} parent=5 // pred_check
        _
      $region10: #{custom-call.34} parent=5 // pred_check_branch
        %78 = sbr.rel (%p75) target = $region12
      $region11: #{custom-call.34} parent=5 // pred_region
        %s79 = ssub.s32 %s9, 1
      $region12: #{custom-call.34} parent=5 // pred_fallthru
        _
      %p80 = scmp.lt.s32.totalorder %s9, 2
      // Predicated region
      $region13: #{custom-call.34} parent=5 // pred_check
        %p81 = pneg %p80
      $region14: #{custom-call.34} parent=5 // pred_check_branch
        %83 = sbr.rel (%p81) target = $region16
      $region15: #{custom-call.34} parent=5 // pred_region
        %s84 = sand.u32 %s9, 1
        %s85 = sand.u32 %s9, 1
        %s86 = smul.addr %s85, 4
        %s87 = scalar_lea.vmem [#allocation1], %s86
        %s88 = smul.addr %s9, 4
        %s89 = scalar_lea.vmem %s0, %s88
        // Predicated region
        $region17: #{custom-call.34} parent=15 // pred_check
          _
        $region18: #{custom-call.34} parent=15 // pred_check_branch
          %91 = sbr.rel (0) target = $region20
        $region19: #{custom-call.34} parent=15 // pred_region
          // Predicated region
          $region21: #{custom-call.34} parent=19 // pred_check
            _
          $region22: #{custom-call.34} parent=19 // pred_check_branch
            %93 = sbr.rel target = $region24
          $region23: #{custom-call.34} parent=19 // pred_region
            // Predicated region
            $region36: #{custom-call.34} parent=23 // pred_check
              _
            $region37: #{custom-call.34} parent=23 // pred_check_branch
              %108 = sbr.rel (0) target = $region39
            $region38: #{custom-call.34} parent=23 // pred_region
              loop: start=0, step=1, limit=1
              $region40: #{custom-call.34} parent=38 // loop_pre_header
                _
              $region41: #{custom-call.34} parent=38 // loop_header
                %s111 = sphi 0, %s115
                %p112 = scmp.ge.s32.totalorder %s111, 1
                %s116 = sphi %s89, %s89
                %s117 = sphi %s87, %s87
              $region42: #{custom-call.34} parent=38 // loop_header_branch
                %114 = sbr.rel (%p112) target = $region46
              $region43: #{custom-call.34} parent=38 // loop_body
                %v118 = vld [vmem:[%s116] sm:$0xf]
                %119 = vst [vmem:[%s117] sm:$0xf] %v118
              $region44: #{custom-call.34} parent=38 // loop_footer
                %s115 = sadd.s32 1, %s111
              $region45: #{custom-call.34} parent=38 // loop_footer_branch
                %110 = sbr.rel target = $region41
              $region46: #{custom-call.34} parent=38 // loop_exit
                _
            $region39: #{custom-call.34} parent=23 // pred_fallthru
              _
          $region24: #{custom-call.34} parent=19 // pred_fallthru
            _
          // Predicated region
          $region25: #{custom-call.34} parent=19 // pred_check
            _
          $region26: #{custom-call.34} parent=19 // pred_check_branch
            %95 = sbr.rel (0) target = $region28
          $region27: #{custom-call.34} parent=19 // pred_region
            loop: start=0, step=1, limit=1
            $region29: #{custom-call.34} parent=27 // loop_pre_header
              _
            $region30: #{custom-call.34} parent=27 // loop_header
              %s98 = sphi 0, %s102
              %p99 = scmp.ge.s32.totalorder %s98, 1
              %s103 = sphi %s89, %s89
              %s104 = sphi %s87, %s87
            $region31: #{custom-call.34} parent=27 // loop_header_branch
              %101 = sbr.rel (%p99) target = $region35
            $region32: #{custom-call.34} parent=27 // loop_body
              %v105 = vld [vmem:[%s103] sm:$0xf]
              %106 = vst [vmem:[%s104] sm:$0xf] %v105
            $region33: #{custom-call.34} parent=27 // loop_footer
              %s102 = sadd.s32 1, %s98
            $region34: #{custom-call.34} parent=27 // loop_footer_branch
              %97 = sbr.rel target = $region30
            $region35: #{custom-call.34} parent=27 // loop_exit
              _
          $region28: #{custom-call.34} parent=19 // pred_fallthru
            _
        $region20: #{custom-call.34} parent=15 // pred_fallthru
          _
        %120 = vnop
      $region16: #{custom-call.34} parent=5 // pred_fallthru
        _
      %p121 = scmp.le.s32.totalorder 1, %s9
      %p122 = scmp.lt.s32.totalorder %s9, 3
      %p123 = pnand %p121, %p122
      %p124 = pneg %p123
      // Predicated region
      $region47: #{custom-call.34} parent=5 // pred_check
        _
      $region48: #{custom-call.34} parent=5 // pred_check_branch
        %126 = sbr.rel (%p123) target = $region50
      $region49: #{custom-call.34} parent=5 // pred_region
        #allocation9 [shape = 's32[3,128]{1,0}', space=vmem, size = 0x1000, scoped, tag = 'scratch for permutations']
        %s127 = ssub.s32 %s9, 1
        %s128 = sand.u32 %s14, 1
        %s129 = sand.u32 %s14, 1
        %s130 = smul.addr %s129, 4
        %s131 = scalar_lea.vmem [#allocation1], %s130
        %s132 = sand.u32 %s14, 1
        %s133 = sand.u32 %s14, 1
        %s134 = smul.addr %s133, 4
        %s135 = scalar_lea.vmem [#allocation1], %s134
        %s136 = sand.u32 %s14, 1
        %s137 = sand.u32 %s14, 1
        %s138 = smul.addr %s137, 4
        %s139 = scalar_lea.vmem [#allocation3], %s138
        %p140 = pneg %p37
        %p141 = pneg %p34
        %s142 = sand.u32 %s24, 1
        %s143 = scalar_lea.sflag [#allocation6], %s142
        %s144 = sand.u32 %s24, 1
        %s145 = smul.addr %s144, 2
        %s146 = scalar_lea.vmem [#allocation5], %s145
        %p147 = pneg %p65
        %p148 = pneg %p62
        %s149 = sand.u32 %s52, 1
        %s150 = sand.u32 %s52, 1
        %s151 = smul.addr %s150, 2
        %s152 = scalar_lea.vmem [#allocation8], %s151
        %s154 = sshllo.u32 0, 4
        %v155 = vld [vmem:[%s135] sm:%s154]
        %156 = vst [vmem:[#allocation0] sm:%s154] %v155
        %s157 = sshrl.u32 %s14, 3
        %s158 = sshrl.u32 %s14, 3
        %v159 = vld [vmem:[#allocation0] sm:$0xff]
        %160 = vst [vmem:[#allocation2] sm:$0xff] %v159
        %s161 = sand.u32 %s14, 7
        %s162 = scalar_lea.vmem [#allocation4], %s161
        %s163 = sand.u32 %s14, 7
        %s164 = scalar_lea.vmem [#allocation7], %s163
        %165 = vst [vmem:[%s162] sm:$0x1] 0
        %v166 = vlaneseq
        %v167 = vshrl.u32 %v166, 7
        %v168 = vmov %v167
        %170 = vst [vmem:[#allocation9] sm:$0xff] %v168
        loop: start=0, step=1, limit=3
        $region52: #{custom-call.34} parent=49 // loop_pre_header
          _
        $region53: #{custom-call.34} parent=49 // loop_header
          %s172 = sphi 0, %s176
          %p173 = scmp.ge.s32.totalorder %s172, 3
        $region54: #{custom-call.34} parent=49 // loop_header_branch
          %175 = sbr.rel (%p173) target = $region58
        $region55: #{custom-call.34} parent=49 // loop_body
          %v177 = vstv %s172
          %v178 = vlaneseq
          %v179 = vshrl.u32 %v178, 7
          %v180 = vmov %v179
          %v181 = vld [vmem:[#allocation2] sm:$0xff]
          %v182 = vand.u32 2147483647, %v181
          %v184 = vstv %s172
          %vm185 = vcmp.ge.s32.totalorder %v180, %v184
          %vm186 = vcmp.lt.s32.totalorder %v180, 3
          %vm187 = vmand %vm185, %vm186
          %vm188 = vcmp.lt.f32.partialorder -inf, %v182
          %vm189 = vmand %vm187, %vm188
          %v190 = vsel %vm189, %v180, %v177
          %v191 = vsel %vm189, %v182, -inf
          %v192 = vrot.slane %v191, 1
          %v193 = vrot.slane %v190, 1
          %vm194 = vcmp.ge.f32.partialorder %v192, %v191
          %v195 = vsel %vm194, %v192, %v191
          %v196 = vsel %vm194, %v193, %v190
          %v197 = vrot.slane %v192, 1
          %v198 = vrot.slane %v193, 1
          %vm199 = vcmp.ge.f32.partialorder %v197, %v195
          %v200 = vsel %vm199, %v197, %v195
          %v201 = vsel %vm199, %v198, %v196
          %v202 = vrot.slane %v197, 1
          %v203 = vrot.slane %v198, 1
          %vm204 = vcmp.ge.f32.partialorder %v202, %v200
          %v205 = vsel %vm204, %v202, %v200
          %v206 = vsel %vm204, %v203, %v201
          %v207 = vrot.slane %v202, 1
          %v208 = vrot.slane %v203, 1
          %vm209 = vcmp.ge.f32.partialorder %v207, %v205
          %v210 = vsel %vm209, %v207, %v205
          %v211 = vsel %vm209, %v208, %v206
          %v212 = vrot.slane %v207, 1
          %v213 = vrot.slane %v208, 1
          %vm214 = vcmp.ge.f32.partialorder %v212, %v210
          %v215 = vsel %vm214, %v212, %v210
          %v216 = vsel %vm214, %v213, %v211
          %v217 = vrot.slane %v212, 1
          %v218 = vrot.slane %v213, 1
          %vm219 = vcmp.ge.f32.partialorder %v217, %v215
          %v220 = vsel %vm219, %v217, %v215
          %v221 = vsel %vm219, %v218, %v216
          %v222 = vrot.slane %v217, 1
          %v223 = vrot.slane %v218, 1
          %vm224 = vcmp.ge.f32.partialorder %v222, %v220
          %v225 = vsel %vm224, %v222, %v220
          %v226 = vsel %vm224, %v223, %v221
          %s227 = ssub.s32 128, %s172
          %228 = vrot.lane.b32.xlu0 %v226, %s227
          %v229 = vpop.permute.xlu0 %228
          %s230 = vtos %v229
          %v231 = vstv %s172
          %v232 = vlaneseq
          %v233 = vand.u32 %v232, 127
          %vm234 = vcmp.eq.s32.totalorder %v233, %v231
          %v235 = vstv %s230
          %v236 = vld [vmem:[%s162] ss:$0 sm:$0xff]
          %v237 = vsel %vm234, %v235, %v236
          %238 = vst [vmem:[%s162] sm:$0x1] %v237
          %s239 = scalar_lea.vmem [#allocation2], %s172
          %s240 = scalar_lea.vmem [#allocation2], %s230
          %v241 = vld [vmem:[%s239] ss:$0 sm:$0xff]
          %v242 = vld [vmem:[%s240] ss:$0 sm:$0xff]
          %243 = vst [vmem:[%s240] sm:$0x1] %v241
          %244 = vst [vmem:[%s239] sm:$0x1] %v242
          %s245 = scalar_lea.vmem [#allocation9], %s172
          %s246 = scalar_lea.vmem [#allocation9], %s230
          %v247 = vld [vmem:[%s245] ss:$0 sm:$0xff]
          %v248 = vld [vmem:[%s246] ss:$0 sm:$0xff]
          %249 = vst [vmem:[%s246] sm:$0x1] %v247
          %250 = vst [vmem:[%s245] sm:$0x1] %v248
          %vm251 = vcmp.ne.f32.partialorder %v242, 0.0
          %vm252 = vmand %vm234, %vm251
          %v253 = vsel %vm252, %v242, 1.0
          %v254 = vlaneseq
          %v255 = vand.u32 %v254, 127
          %v256 = vstv %s172
          %vm257 = vcmp.gt.s32.totalorder %v255, %v256
          %v258 = vsel %vm257, %v242, 0.0
          %v259 = vlaneseq
          %v260 = vshrl.u32 %v259, 7
          %v261 = vmov %v260
          %v262 = vld [vmem:[#allocation2] sm:$0xff]
          %v264 = vstv %s172
          %vm265 = vcmp.gt.s32.totalorder %v261, %v264
          %v266 = vsel %vm265, %v253, 1.0
          %v267 = vrcp.pop %v266
          %v268 = vmul.f32 %v262, %v267
          %vm269 = vmand %vm265, %vm234
          %v270 = vsel %vm269, %v268, 0.0
          %271 = vadd.xlane.f32.xlu0 %v270
          %v272 = vpop.xlane.xlu0 %271
          %v273 = vmul.f32 %v272, %v258
          %v274 = vsub.f32 %v268, %v273
          %275 = vst [vmem:[#allocation2] sm:$0xff] %v274
        $region56: #{custom-call.34} parent=49 // loop_footer
          %s176 = sadd.s32 1, %s172
        $region57: #{custom-call.34} parent=49 // loop_footer_branch
          %171 = sbr.rel target = $region53
        $region58: #{custom-call.34} parent=49 // loop_exit
          _
        %v276 = vld [vmem:[#allocation9] sm:$0xff]
        %s277 = scalar_lea.vmem [#allocation9], 8
        %s278 = scalar_lea.vmem [#allocation9], 16
        %s279 = scalar_lea.vmem [#allocation9], 24
        %s280 = scalar_lea.vmem [#allocation9], 32
        %s281 = scalar_lea.vmem [#allocation9], 40
        %s282 = scalar_lea.vmem [#allocation9], 48
        %s283 = scalar_lea.vmem [#allocation9], 56
        %s284 = scalar_lea.vmem [#allocation9], 64
        %s285 = scalar_lea.vmem [#allocation9], 72
        %s286 = scalar_lea.vmem [#allocation9], 80
        %s287 = scalar_lea.vmem [#allocation9], 88
        %s288 = scalar_lea.vmem [#allocation9], 96
        %s289 = scalar_lea.vmem [#allocation9], 104
        %s290 = scalar_lea.vmem [#allocation9], 112
        %s291 = scalar_lea.vmem [#allocation9], 120
        %292 = vxpose.xlu0.b32.start [1/16] %v276, 128
        %293 = vxpose.xlu0.b32.cont [2/16] 0, 128
        %294 = vxpose.xlu0.b32.cont [3/16] 0, 128
        %295 = vxpose.xlu0.b32.cont [4/16] 0, 128
        %296 = vxpose.xlu0.b32.cont [5/16] 0, 128
        %297 = vxpose.xlu0.b32.cont [6/16] 0, 128
        %298 = vxpose.xlu0.b32.cont [7/16] 0, 128
        %299 = vxpose.xlu0.b32.cont [8/16] 0, 128
        %300 = vxpose.xlu0.b32.cont [9/16] 0, 128
        %301 = vxpose.xlu0.b32.cont [10/16] 0, 128
        %302 = vxpose.xlu0.b32.cont [11/16] 0, 128
        %303 = vxpose.xlu0.b32.cont [12/16] 0, 128
        %304 = vxpose.xlu0.b32.cont [13/16] 0, 128
        %305 = vxpose.xlu0.b32.cont [14/16] 0, 128
        %306 = vxpose.xlu0.b32.cont [15/16] 0, 128
        %307 = vxpose.xlu0.b32.end [16/16] 0, 128
        %v308 = vpop.trf.xlu0
        %v309 = vpop.trf.xlu0
        %v310 = vpop.trf.xlu0
        %v311 = vpop.trf.xlu0
        %v312 = vpop.trf.xlu0
        %v313 = vpop.trf.xlu0
        %v314 = vpop.trf.xlu0
        %v315 = vpop.trf.xlu0
        %v316 = vpop.trf.xlu0
        %v317 = vpop.trf.xlu0
        %v318 = vpop.trf.xlu0
        %v319 = vpop.trf.xlu0
        %v320 = vpop.trf.xlu0
        %v321 = vpop.trf.xlu0
        %v322 = vpop.trf.xlu0
        %v323 = vpop.trf.xlu0
        %324 = vst [vmem:[%s164] sm:$0x1] %v308
        %s326 = sshllo.u32 0, 4
        %v328 = vld [vmem:[#allocation2] sm:%s326]
        %s329 = sshllo.u32 0, 4
        %330 = vst [vmem:[%s139] sm:%s329] %v328
        %s332 = sshllo.u32 0, 2
        %v334 = vld [vmem:[#allocation4] sm:%s332]
        %s335 = sshllo.u32 0, 2
        %336 = vst [vmem:[%s146] sm:%s335] %v334
        %s338 = sshllo.u32 0, 2
        %v340 = vld [vmem:[#allocation7] sm:%s338]
        %s341 = sshllo.u32 0, 2
        %342 = vst [vmem:[%s152] sm:%s341] %v340
        %s343 = sand.u32 %s14, 1
        %s344 = sand.u32 %s14, 1
        %s345 = smul.addr %s344, 4
        %s346 = scalar_lea.vmem [#allocation3], %s345
        %s347 = sand.u32 %s24, 1
        %s348 = scalar_lea.sflag [#allocation6], %s347
        %s349 = sand.u32 %s24, 1
        %s350 = smul.addr %s349, 2
        %s351 = scalar_lea.vmem [#allocation5], %s350
        %s352 = sand.u32 %s52, 1
        %s353 = sand.u32 %s52, 1
        %s354 = smul.addr %s353, 2
        %s355 = scalar_lea.vmem [#allocation8], %s354
        %s356 = smul.addr %s14, 4
        %s357 = scalar_lea.vmem %s1, %s356
        // Predicated region
        $region59: #{custom-call.34} parent=49 // pred_check
          _
        $region60: #{custom-call.34} parent=49 // pred_check_branch
          %359 = sbr.rel (0) target = $region62
        $region61: #{custom-call.34} parent=49 // pred_region
          // Predicated region
          $region63: #{custom-call.34} parent=61 // pred_check
            _
          $region64: #{custom-call.34} parent=61 // pred_check_branch
            %361 = sbr.rel target = $region66
          $region65: #{custom-call.34} parent=61 // pred_region
            // Predicated region
            $region78: #{custom-call.34} parent=65 // pred_check
              _
            $region79: #{custom-call.34} parent=65 // pred_check_branch
              %376 = sbr.rel (0) target = $region81
            $region80: #{custom-call.34} parent=65 // pred_region
              loop: start=0, step=1, limit=1
              $region82: #{custom-call.34} parent=80 // loop_pre_header
                _
              $region83: #{custom-call.34} parent=80 // loop_header
                %s379 = sphi 0, %s383
                %p380 = scmp.ge.s32.totalorder %s379, 1
                %s384 = sphi %s346, %s346
                %s385 = sphi %s357, %s357
              $region84: #{custom-call.34} parent=80 // loop_header_branch
                %382 = sbr.rel (%p380) target = $region88
              $region85: #{custom-call.34} parent=80 // loop_body
                %v386 = vld [vmem:[%s384] sm:$0xf]
                %387 = vst [vmem:[%s385] sm:$0xf] %v386
              $region86: #{custom-call.34} parent=80 // loop_footer
                %s383 = sadd.s32 1, %s379
              $region87: #{custom-call.34} parent=80 // loop_footer_branch
                %378 = sbr.rel target = $region83
              $region88: #{custom-call.34} parent=80 // loop_exit
                _
            $region81: #{custom-call.34} parent=65 // pred_fallthru
              _
          $region66: #{custom-call.34} parent=61 // pred_fallthru
            _
          // Predicated region
          $region67: #{custom-call.34} parent=61 // pred_check
            _
          $region68: #{custom-call.34} parent=61 // pred_check_branch
            %363 = sbr.rel (0) target = $region70
          $region69: #{custom-call.34} parent=61 // pred_region
            loop: start=0, step=1, limit=1
            $region71: #{custom-call.34} parent=69 // loop_pre_header
              _
            $region72: #{custom-call.34} parent=69 // loop_header
              %s366 = sphi 0, %s370
              %p367 = scmp.ge.s32.totalorder %s366, 1
              %s371 = sphi %s346, %s346
              %s372 = sphi %s357, %s357
            $region73: #{custom-call.34} parent=69 // loop_header_branch
              %369 = sbr.rel (%p367) target = $region77
            $region74: #{custom-call.34} parent=69 // loop_body
              %v373 = vld [vmem:[%s371] sm:$0xf]
              %374 = vst [vmem:[%s372] sm:$0xf] %v373
            $region75: #{custom-call.34} parent=69 // loop_footer
              %s370 = sadd.s32 1, %s366
            $region76: #{custom-call.34} parent=69 // loop_footer_branch
              %365 = sbr.rel target = $region72
            $region77: #{custom-call.34} parent=69 // loop_exit
              _
          $region70: #{custom-call.34} parent=61 // pred_fallthru
            _
        $region62: #{custom-call.34} parent=49 // pred_fallthru
          _
        %388 = vnop
        // Predicated region
        $region89: #{custom-call.34} parent=49 // pred_check
          %p389 = pneg %p34
        $region90: #{custom-call.34} parent=49 // pred_check_branch
          %391 = sbr.rel (%p389) target = $region92
        $region91: #{custom-call.34} parent=49 // pred_region
          %s392 = sshrl.u32 %s14, 3
          %s394 = ssub.s32 32, 32
          %395 = vsyncadd %s348, %s394
          %s396 = smul.addr %s392, 32
          %s397 = scalar_lea.hbm %s2, %s396
          %s399 = sshll.u32 %s351, 4
          %s400 = int_to_ptr.vmem [resolvable:$true] %s399
          %402 = dma.vmem_to_hbm [thread:$0]  %s400, 32, %s397, %s348
        $region92: #{custom-call.34} parent=49 // pred_fallthru
          _
        // Predicated region
        $region93: #{custom-call.34} parent=49 // pred_check
          %p403 = pneg %p62
        $region94: #{custom-call.34} parent=49 // pred_check_branch
          %405 = sbr.rel (%p403) target = $region96
        $region95: #{custom-call.34} parent=49 // pred_region
          %s406 = sshrl.u32 %s14, 3
          %s407 = smul.addr %s406, 2
          %s408 = scalar_lea.vmem %s3, %s407
          // Predicated region
          $region97: #{custom-call.34} parent=95 // pred_check
            _
          $region98: #{custom-call.34} parent=95 // pred_check_branch
            %410 = sbr.rel (0) target = $region100
          $region99: #{custom-call.34} parent=95 // pred_region
            // Predicated region
            $region101: #{custom-call.34} parent=99 // pred_check
              _
            $region102: #{custom-call.34} parent=99 // pred_check_branch
              %412 = sbr.rel target = $region104
            $region103: #{custom-call.34} parent=99 // pred_region
              // Predicated region
              $region116: #{custom-call.34} parent=103 // pred_check
                _
              $region117: #{custom-call.34} parent=103 // pred_check_branch
                %427 = sbr.rel (0) target = $region119
              $region118: #{custom-call.34} parent=103 // pred_region
                loop: start=0, step=1, limit=1
                $region120: #{custom-call.34} parent=118 // loop_pre_header
                  _
                $region121: #{custom-call.34} parent=118 // loop_header
                  %s430 = sphi 0, %s434
                  %p431 = scmp.ge.s32.totalorder %s430, 1
                  %s435 = sphi %s355, %s355
                  %s436 = sphi %s408, %s408
                $region122: #{custom-call.34} parent=118 // loop_header_branch
                  %433 = sbr.rel (%p431) target = $region126
                $region123: #{custom-call.34} parent=118 // loop_body
                  %v437 = vld [vmem:[%s435] sm:$0x3]
                  %438 = vst [vmem:[%s436] sm:$0x3] %v437
                $region124: #{custom-call.34} parent=118 // loop_footer
                  %s434 = sadd.s32 1, %s430
                $region125: #{custom-call.34} parent=118 // loop_footer_branch
                  %429 = sbr.rel target = $region121
                $region126: #{custom-call.34} parent=118 // loop_exit
                  _
              $region119: #{custom-call.34} parent=103 // pred_fallthru
                _
            $region104: #{custom-call.34} parent=99 // pred_fallthru
              _
            // Predicated region
            $region105: #{custom-call.34} parent=99 // pred_check
              _
            $region106: #{custom-call.34} parent=99 // pred_check_branch
              %414 = sbr.rel (0) target = $region108
            $region107: #{custom-call.34} parent=99 // pred_region
              loop: start=0, step=1, limit=1
              $region109: #{custom-call.34} parent=107 // loop_pre_header
                _
              $region110: #{custom-call.34} parent=107 // loop_header
                %s417 = sphi 0, %s421
                %p418 = scmp.ge.s32.totalorder %s417, 1
                %s422 = sphi %s355, %s355
                %s423 = sphi %s408, %s408
              $region111: #{custom-call.34} parent=107 // loop_header_branch
                %420 = sbr.rel (%p418) target = $region115
              $region112: #{custom-call.34} parent=107 // loop_body
                %v424 = vld [vmem:[%s422] sm:$0x3]
                %425 = vst [vmem:[%s423] sm:$0x3] %v424
              $region113: #{custom-call.34} parent=107 // loop_footer
                %s421 = sadd.s32 1, %s417
              $region114: #{custom-call.34} parent=107 // loop_footer_branch
                %416 = sbr.rel target = $region110
              $region115: #{custom-call.34} parent=107 // loop_exit
                _
            $region108: #{custom-call.34} parent=99 // pred_fallthru
              _
          $region100: #{custom-call.34} parent=95 // pred_fallthru
            _
          %439 = vnop
        $region96: #{custom-call.34} parent=49 // pred_fallthru
          _
      $region50: #{custom-call.34} parent=5 // pred_fallthru
        _
      %p440 = scmp.le.s32.totalorder 2, %s9
      // Predicated region
      $region127: #{custom-call.34} parent=5 // pred_check
        %p441 = pneg %p440
      $region128: #{custom-call.34} parent=5 // pred_check_branch
        %443 = sbr.rel (%p441) target = $region130
      $region129: #{custom-call.34} parent=5 // pred_region
        %s444 = ssub.s32 %s9, 2
        %s445 = sand.u32 %s15, 1
        %s446 = sand.u32 %s15, 1
        %s447 = smul.addr %s446, 4
        %s448 = scalar_lea.vmem [#allocation3], %s447
        // Predicated region
        $region131: #{custom-call.34} parent=129 // pred_check
          %p449 = pneg %p40
        $region132: #{custom-call.34} parent=129 // pred_check_branch
          %451 = sbr.rel (%p449) target = $region134
        $region133: #{custom-call.34} parent=129 // pred_region
          %s452 = sand.u32 %s25, 1
          %s453 = scalar_lea.sflag [#allocation6], %s452
          %s454 = sand.u32 %s25, 1
          %s455 = smul.addr %s454, 2
          %s456 = scalar_lea.vmem [#allocation5], %s455
          %457 = dma.done %s453, 32
        $region134: #{custom-call.34} parent=129 // pred_fallthru
          _
        // Predicated region
        $region135: #{custom-call.34} parent=129 // pred_check
          %p458 = pneg %p68
        $region136: #{custom-call.34} parent=129 // pred_check_branch
          %460 = sbr.rel (%p458) target = $region138
        $region137: #{custom-call.34} parent=129 // pred_region
          %s461 = sand.u32 %s53, 1
          %s462 = sand.u32 %s53, 1
          %s463 = smul.addr %s462, 2
          %s464 = scalar_lea.vmem [#allocation8], %s463
        $region138: #{custom-call.34} parent=129 // pred_fallthru
          _
      $region130: #{custom-call.34} parent=5 // pred_fallthru
        _
    $region6: #{custom-call.34} parent=1 // loop_footer
      %s13 = sadd.s32 1, %s9
    $region7: #{custom-call.34} parent=1 // loop_footer_branch
      %8 = sbr.rel target = $region3
    $region8: #{custom-call.34} parent=1 // loop_exit
      _
    %465 = vsyncpa [#allocation6], 1
    %s466 = scalar_lea.sflag [#allocation6], 1
    %467 = vsyncpa %s466, 1

// kernel: custom-call.35
$region0: #{custom-call.35}
  %s0 = inlined_call_operand.vmem [shape: f32[2,1,3,3], index: 0, kind: input, shape index: {}]
  %s1 = inlined_call_operand.vmem [shape: f32[2,1,3,3], index: 1, kind: output, shape index: {}]
  $region1: #{custom-call.35} parent=0
    #allocation0 [shape = 'u8[4096]{0}', space=vmem, size = 0x1000, scoped, tag = 'operand span for operand 0']
    #allocation1 [shape = 'u8[4096]{0}', space=vmem, size = 0x1000, scoped, tag = 'packed  for operand 0']
    #allocation2 [shape = 'u8[4096]{0}', space=vmem, size = 0x1000, scoped, tag = 'operand span for operand 1']
    #allocation3 [shape = 'u8[4096]{0}', space=vmem, size = 0x1000, scoped, tag = 'packed  for operand 1']
    loop: start=0, step=1, limit=4
    $region2: #{custom-call.35} parent=1 // loop_pre_header
      _
    $region3: #{custom-call.35} parent=1 // loop_header
      %s3 = sphi 0, %s7
      %p4 = scmp.ge.s32.totalorder %s3, 4
      %s10 = sphi 0, %s36
      %s11 = sphi 0, %s32
      %s12 = sphi 0, %s28
      %s13 = sphi 0, %s24
      %s14 = sphi 0, %s10
      %s15 = sphi 0, %s11
      %s16 = sphi 0, %s12
      %s17 = sphi 0, %s13
      %s18 = sphi 0, %s14
      %s19 = sphi 0, %s15
      %s20 = sphi 0, %s16
      %s21 = sphi 0, %s17
    $region4: #{custom-call.35} parent=1 // loop_header_branch
      %6 = sbr.rel (%p4) target = $region8
    $region5: #{custom-call.35} parent=1 // loop_body
      %s8 = ssub.s32 %s3, 1
      %s9 = ssub.s32 %s3, 2
      %s22 = sadd.s32 1, %s13
      %p23 = scmp.ge.s32.totalorder %s22, 1
      %s24 = scalar_select %p23, 0, %s22
      %s25 = sadd.s32 1, %s12
      %s26 = scalar_select %p23, %s25, %s12
      %p27 = scmp.ge.s32.totalorder %s26, 1
      %s28 = scalar_select %p27, 0, %s26
      %s29 = sadd.s32 1, %s11
      %s30 = scalar_select %p27, %s29, %s11
      %p31 = scmp.ge.s32.totalorder %s30, 1
      %s32 = scalar_select %p31, 0, %s30
      %s33 = sadd.s32 1, %s10
      %s34 = scalar_select %p31, %s33, %s10
      %p35 = scmp.ge.s32.totalorder %s34, 2
      %s36 = scalar_select %p35, 0, %s34
      %p37 = scmp.le.s32.totalorder 1, %s3
      %p38 = scmp.lt.s32.totalorder %s3, 3
      %p39 = pnand %p37, %p38
      %p40 = pneg %p39
      // Predicated region
      $region9: #{custom-call.35} parent=5 // pred_check
        _
      $region10: #{custom-call.35} parent=5 // pred_check_branch
        %42 = sbr.rel (%p39) target = $region12
      $region11: #{custom-call.35} parent=5 // pred_region
        %s43 = ssub.s32 %s3, 1
      $region12: #{custom-call.35} parent=5 // pred_fallthru
        _
      %p44 = scmp.lt.s32.totalorder %s3, 2
      // Predicated region
      $region13: #{custom-call.35} parent=5 // pred_check
        %p45 = pneg %p44
      $region14: #{custom-call.35} parent=5 // pred_check_branch
        %47 = sbr.rel (%p45) target = $region16
      $region15: #{custom-call.35} parent=5 // pred_region
        %s48 = sand.u32 %s3, 1
        %s49 = sand.u32 %s3, 1
        %s50 = smul.addr %s49, 4
        %s51 = scalar_lea.vmem [#allocation1], %s50
        %s52 = sadd.s32 %s13, %s12
        %s53 = sadd.s32 %s52, %s11
        %s54 = sadd.s32 %s53, %s10
        %s55 = smul.addr %s54, 4
        %s56 = scalar_lea.vmem %s0, %s55
        // Predicated region
        $region17: #{custom-call.35} parent=15 // pred_check
          _
        $region18: #{custom-call.35} parent=15 // pred_check_branch
          %58 = sbr.rel (0) target = $region20
        $region19: #{custom-call.35} parent=15 // pred_region
          // Predicated region
          $region21: #{custom-call.35} parent=19 // pred_check
            _
          $region22: #{custom-call.35} parent=19 // pred_check_branch
            %60 = sbr.rel target = $region24
          $region23: #{custom-call.35} parent=19 // pred_region
            // Predicated region
            $region36: #{custom-call.35} parent=23 // pred_check
              _
            $region37: #{custom-call.35} parent=23 // pred_check_branch
              %75 = sbr.rel (0) target = $region39
            $region38: #{custom-call.35} parent=23 // pred_region
              loop: start=0, step=1, limit=1
              $region40: #{custom-call.35} parent=38 // loop_pre_header
                _
              $region41: #{custom-call.35} parent=38 // loop_header
                %s78 = sphi 0, %s82
                %p79 = scmp.ge.s32.totalorder %s78, 1
                %s83 = sphi %s56, %s56
                %s84 = sphi %s51, %s51
              $region42: #{custom-call.35} parent=38 // loop_header_branch
                %81 = sbr.rel (%p79) target = $region46
              $region43: #{custom-call.35} parent=38 // loop_body
                %v85 = vld [vmem:[%s83] sm:$0xf]
                %86 = vst [vmem:[%s84] sm:$0xf] %v85
              $region44: #{custom-call.35} parent=38 // loop_footer
                %s82 = sadd.s32 1, %s78
              $region45: #{custom-call.35} parent=38 // loop_footer_branch
                %77 = sbr.rel target = $region41
              $region46: #{custom-call.35} parent=38 // loop_exit
                _
            $region39: #{custom-call.35} parent=23 // pred_fallthru
              _
          $region24: #{custom-call.35} parent=19 // pred_fallthru
            _
          // Predicated region
          $region25: #{custom-call.35} parent=19 // pred_check
            _
          $region26: #{custom-call.35} parent=19 // pred_check_branch
            %62 = sbr.rel (0) target = $region28
          $region27: #{custom-call.35} parent=19 // pred_region
            loop: start=0, step=1, limit=1
            $region29: #{custom-call.35} parent=27 // loop_pre_header
              _
            $region30: #{custom-call.35} parent=27 // loop_header
              %s65 = sphi 0, %s69
              %p66 = scmp.ge.s32.totalorder %s65, 1
              %s70 = sphi %s56, %s56
              %s71 = sphi %s51, %s51
            $region31: #{custom-call.35} parent=27 // loop_header_branch
              %68 = sbr.rel (%p66) target = $region35
            $region32: #{custom-call.35} parent=27 // loop_body
              %v72 = vld [vmem:[%s70] sm:$0xf]
              %73 = vst [vmem:[%s71] sm:$0xf] %v72
            $region33: #{custom-call.35} parent=27 // loop_footer
              %s69 = sadd.s32 1, %s65
            $region34: #{custom-call.35} parent=27 // loop_footer_branch
              %64 = sbr.rel target = $region30
            $region35: #{custom-call.35} parent=27 // loop_exit
              _
          $region28: #{custom-call.35} parent=19 // pred_fallthru
            _
        $region20: #{custom-call.35} parent=15 // pred_fallthru
          _
        %87 = vnop
      $region16: #{custom-call.35} parent=5 // pred_fallthru
        _
      %p88 = scmp.le.s32.totalorder 1, %s3
      %p89 = scmp.lt.s32.totalorder %s3, 3
      %p90 = pnand %p88, %p89
      %p91 = pneg %p90
      // Predicated region
      $region47: #{custom-call.35} parent=5 // pred_check
        _
      $region48: #{custom-call.35} parent=5 // pred_check_branch
        %93 = sbr.rel (%p90) target = $region50
      $region49: #{custom-call.35} parent=5 // pred_region
        #allocation4 [shape = 'f32[3,3]{1,0}', space=vmem, size = 0x1000, scoped, tag = 'rescaled input a']
        %s94 = ssub.s32 %s3, 1
        %s95 = sand.u32 %s8, 1
        %s96 = sand.u32 %s8, 1
        %s97 = smul.addr %s96, 4
        %s98 = scalar_lea.vmem [#allocation1], %s97
        %s99 = sand.u32 %s8, 1
        %s100 = sand.u32 %s8, 1
        %s101 = smul.addr %s100, 4
        %s102 = scalar_lea.vmem [#allocation1], %s101
        %s103 = sand.u32 %s8, 1
        %s104 = sand.u32 %s8, 1
        %s105 = smul.addr %s104, 4
        %s106 = scalar_lea.vmem [#allocation3], %s105
        %s108 = sshllo.u32 0, 4
        %v109 = vld [vmem:[%s102] sm:%s108]
        %110 = vst [vmem:[#allocation0] sm:%s108] %v109
        %v111 = vlaneseq
        %v112 = vand.u32 %v111, 127
        %vm113 = vcmp.lt.s32.totalorder %v112, 3
        %v114 = vlaneseq
        %v115 = vshrl.u32 %v114, 7
        %vm117 = vcmp.eq.s32.totalorder %v115, %v112
        %v118 = vld [vmem:[#allocation0] sm:$0xff]
        %v119 = vsel %vm117, %v118, 0.0
        %120 = vadd.xlane.f32.xlu0 %v119
        %v121 = vpop.xlane.xlu0 %120
        %vm122 = vcmp.le.s32.totalorder %v115, %v112
        %vm123 = vmand %vm122, %vm113
        %v124 = vsel %vm123, %v118, 0.0
        %v125 = vrcp.pop %v121
        %v126 = vmul.f32 %v124, %v125
        %127 = vst [vmem:[#allocation4] sm:$0xff] %v126
        %v128 = vlaneseq
        %v129 = vand.u32 %v128, 127
        %v130 = vlaneseq
        %v131 = vshrl.u32 %v130, 7
        %vm133 = vcmp.eq.s32.totalorder %v129, %v131
        %v134 = vlaneseq
        %v135 = vand.u32 %v134, 127
        %vm136 = vcmp.eq.s32.totalorder %v135, 2
        %v137 = vsel %vm136, 1.0, -1.0
        %v138 = vsel %vm133, %v137, 0.0
        %s139 = scalar_lea.vmem [#allocation4], 1
        %v140 = vld [vmem:[%s139] ss:$0 sm:$0xff]
        %v141 = vxor.u32 %v140, 2147483648
        %v142 = vlaneseq
        %v143 = vand.u32 %v142, 127
        %vm144 = vcmp.eq.s32.totalorder %v143, 1
        %v145 = vmul.f32 %v141, %v138
        %146 = vadd.xlane.f32.xlu0 %v145
        %v147 = vpop.xlane.xlu0 %146
        %v148 = vsel %vm144, %v147, %v138
        %v149 = vld [vmem:[#allocation4] ss:$0 sm:$0xff]
        %v150 = vxor.u32 %v149, 2147483648
        %v151 = vlaneseq
        %v152 = vand.u32 %v151, 127
        %vm153 = vcmp.eq.s32.totalorder %v152, 0
        %v154 = vmul.f32 %v150, %v148
        %155 = vadd.xlane.f32.xlu0 %v154
        %v156 = vpop.xlane.xlu0 %155
        %v157 = vsel %vm153, %v156, %v148
        %v158 = vrcp.pop %v121
        %v159 = vmul.f32 %v157, %v158
        %vm160 = vweird.f32 %v121
        %v161 = vsel %vm160, %v157, %v159
        %162 = vst [vmem:[#allocation2] sm:$0xff] %v161
        %s164 = sshllo.u32 0, 4
        %v166 = vld [vmem:[#allocation2] sm:%s164]
        %s167 = sshllo.u32 0, 4
        %168 = vst [vmem:[%s106] sm:%s167] %v166
        %s169 = sand.u32 %s8, 1
        %s170 = sand.u32 %s8, 1
        %s171 = smul.addr %s170, 4
        %s172 = scalar_lea.vmem [#allocation3], %s171
        %s173 = sadd.s32 %s17, %s16
        %s174 = sadd.s32 %s173, %s15
        %s175 = sadd.s32 %s174, %s14
        %s176 = smul.addr %s175, 4
        %s177 = scalar_lea.vmem %s1, %s176
        // Predicated region
        $region51: #{custom-call.35} parent=49 // pred_check
          _
        $region52: #{custom-call.35} parent=49 // pred_check_branch
          %179 = sbr.rel (0) target = $region54
        $region53: #{custom-call.35} parent=49 // pred_region
          // Predicated region
          $region55: #{custom-call.35} parent=53 // pred_check
            _
          $region56: #{custom-call.35} parent=53 // pred_check_branch
            %181 = sbr.rel target = $region58
          $region57: #{custom-call.35} parent=53 // pred_region
            // Predicated region
            $region70: #{custom-call.35} parent=57 // pred_check
              _
            $region71: #{custom-call.35} parent=57 // pred_check_branch
              %196 = sbr.rel (0) target = $region73
            $region72: #{custom-call.35} parent=57 // pred_region
              loop: start=0, step=1, limit=1
              $region74: #{custom-call.35} parent=72 // loop_pre_header
                _
              $region75: #{custom-call.35} parent=72 // loop_header
                %s199 = sphi 0, %s203
                %p200 = scmp.ge.s32.totalorder %s199, 1
                %s204 = sphi %s172, %s172
                %s205 = sphi %s177, %s177
              $region76: #{custom-call.35} parent=72 // loop_header_branch
                %202 = sbr.rel (%p200) target = $region80
              $region77: #{custom-call.35} parent=72 // loop_body
                %v206 = vld [vmem:[%s204] sm:$0xf]
                %207 = vst [vmem:[%s205] sm:$0xf] %v206
              $region78: #{custom-call.35} parent=72 // loop_footer
                %s203 = sadd.s32 1, %s199
              $region79: #{custom-call.35} parent=72 // loop_footer_branch
                %198 = sbr.rel target = $region75
              $region80: #{custom-call.35} parent=72 // loop_exit
                _
            $region73: #{custom-call.35} parent=57 // pred_fallthru
              _
          $region58: #{custom-call.35} parent=53 // pred_fallthru
            _
          // Predicated region
          $region59: #{custom-call.35} parent=53 // pred_check
            _
          $region60: #{custom-call.35} parent=53 // pred_check_branch
            %183 = sbr.rel (0) target = $region62
          $region61: #{custom-call.35} parent=53 // pred_region
            loop: start=0, step=1, limit=1
            $region63: #{custom-call.35} parent=61 // loop_pre_header
              _
            $region64: #{custom-call.35} parent=61 // loop_header
              %s186 = sphi 0, %s190
              %p187 = scmp.ge.s32.totalorder %s186, 1
              %s191 = sphi %s172, %s172
              %s192 = sphi %s177, %s177
            $region65: #{custom-call.35} parent=61 // loop_header_branch
              %189 = sbr.rel (%p187) target = $region69
            $region66: #{custom-call.35} parent=61 // loop_body
              %v193 = vld [vmem:[%s191] sm:$0xf]
              %194 = vst [vmem:[%s192] sm:$0xf] %v193
            $region67: #{custom-call.35} parent=61 // loop_footer
              %s190 = sadd.s32 1, %s186
            $region68: #{custom-call.35} parent=61 // loop_footer_branch
              %185 = sbr.rel target = $region64
            $region69: #{custom-call.35} parent=61 // loop_exit
              _
          $region62: #{custom-call.35} parent=53 // pred_fallthru
            _
        $region54: #{custom-call.35} parent=49 // pred_fallthru
          _
        %208 = vnop
      $region50: #{custom-call.35} parent=5 // pred_fallthru
        _
      %p209 = scmp.le.s32.totalorder 2, %s3
      // Predicated region
      $region81: #{custom-call.35} parent=5 // pred_check
        %p210 = pneg %p209
      $region82: #{custom-call.35} parent=5 // pred_check_branch
        %212 = sbr.rel (%p210) target = $region84
      $region83: #{custom-call.35} parent=5 // pred_region
        %s213 = ssub.s32 %s3, 2
        %s214 = sand.u32 %s9, 1
        %s215 = sand.u32 %s9, 1
        %s216 = smul.addr %s215, 4
        %s217 = scalar_lea.vmem [#allocation3], %s216
      $region84: #{custom-call.35} parent=5 // pred_fallthru
        _
    $region6: #{custom-call.35} parent=1 // loop_footer
      %s7 = sadd.s32 1, %s3
    $region7: #{custom-call.35} parent=1 // loop_footer_branch
      %2 = sbr.rel target = $region3
    $region8: #{custom-call.35} parent=1 // loop_exit
      _

// kernel: custom-call.36
$region0: #{custom-call.36}
  %s0 = inlined_call_operand.vmem [shape: f32[2,1,3,3], index: 0, kind: input, shape index: {}]
  %s1 = inlined_call_operand.vmem [shape: f32[2,1,3,3], index: 1, kind: output, shape index: {}]
  $region1: #{custom-call.36} parent=0
    #allocation0 [shape = 'u8[4096]{0}', space=vmem, size = 0x1000, scoped, tag = 'operand span for operand 0']
    #allocation1 [shape = 'u8[4096]{0}', space=vmem, size = 0x1000, scoped, tag = 'packed  for operand 0']
    #allocation2 [shape = 'u8[4096]{0}', space=vmem, size = 0x1000, scoped, tag = 'operand span for operand 1']
    #allocation3 [shape = 'u8[4096]{0}', space=vmem, size = 0x1000, scoped, tag = 'packed  for operand 1']
    loop: start=0, step=1, limit=4
    $region2: #{custom-call.36} parent=1 // loop_pre_header
      _
    $region3: #{custom-call.36} parent=1 // loop_header
      %s3 = sphi 0, %s7
      %p4 = scmp.ge.s32.totalorder %s3, 4
      %s10 = sphi 0, %s36
      %s11 = sphi 0, %s32
      %s12 = sphi 0, %s28
      %s13 = sphi 0, %s24
      %s14 = sphi 0, %s10
      %s15 = sphi 0, %s11
      %s16 = sphi 0, %s12
      %s17 = sphi 0, %s13
      %s18 = sphi 0, %s14
      %s19 = sphi 0, %s15
      %s20 = sphi 0, %s16
      %s21 = sphi 0, %s17
    $region4: #{custom-call.36} parent=1 // loop_header_branch
      %6 = sbr.rel (%p4) target = $region8
    $region5: #{custom-call.36} parent=1 // loop_body
      %s8 = ssub.s32 %s3, 1
      %s9 = ssub.s32 %s3, 2
      %s22 = sadd.s32 1, %s13
      %p23 = scmp.ge.s32.totalorder %s22, 1
      %s24 = scalar_select %p23, 0, %s22
      %s25 = sadd.s32 1, %s12
      %s26 = scalar_select %p23, %s25, %s12
      %p27 = scmp.ge.s32.totalorder %s26, 1
      %s28 = scalar_select %p27, 0, %s26
      %s29 = sadd.s32 1, %s11
      %s30 = scalar_select %p27, %s29, %s11
      %p31 = scmp.ge.s32.totalorder %s30, 1
      %s32 = scalar_select %p31, 0, %s30
      %s33 = sadd.s32 1, %s10
      %s34 = scalar_select %p31, %s33, %s10
      %p35 = scmp.ge.s32.totalorder %s34, 2
      %s36 = scalar_select %p35, 0, %s34
      %p37 = scmp.le.s32.totalorder 1, %s3
      %p38 = scmp.lt.s32.totalorder %s3, 3
      %p39 = pnand %p37, %p38
      %p40 = pneg %p39
      // Predicated region
      $region9: #{custom-call.36} parent=5 // pred_check
        _
      $region10: #{custom-call.36} parent=5 // pred_check_branch
        %42 = sbr.rel (%p39) target = $region12
      $region11: #{custom-call.36} parent=5 // pred_region
        %s43 = ssub.s32 %s3, 1
      $region12: #{custom-call.36} parent=5 // pred_fallthru
        _
      %p44 = scmp.lt.s32.totalorder %s3, 2
      // Predicated region
      $region13: #{custom-call.36} parent=5 // pred_check
        %p45 = pneg %p44
      $region14: #{custom-call.36} parent=5 // pred_check_branch
        %47 = sbr.rel (%p45) target = $region16
      $region15: #{custom-call.36} parent=5 // pred_region
        %s48 = sand.u32 %s3, 1
        %s49 = sand.u32 %s3, 1
        %s50 = smul.addr %s49, 4
        %s51 = scalar_lea.vmem [#allocation1], %s50
        %s52 = sadd.s32 %s13, %s12
        %s53 = sadd.s32 %s52, %s11
        %s54 = sadd.s32 %s53, %s10
        %s55 = smul.addr %s54, 4
        %s56 = scalar_lea.vmem %s0, %s55
        // Predicated region
        $region17: #{custom-call.36} parent=15 // pred_check
          _
        $region18: #{custom-call.36} parent=15 // pred_check_branch
          %58 = sbr.rel (0) target = $region20
        $region19: #{custom-call.36} parent=15 // pred_region
          // Predicated region
          $region21: #{custom-call.36} parent=19 // pred_check
            _
          $region22: #{custom-call.36} parent=19 // pred_check_branch
            %60 = sbr.rel target = $region24
          $region23: #{custom-call.36} parent=19 // pred_region
            // Predicated region
            $region36: #{custom-call.36} parent=23 // pred_check
              _
            $region37: #{custom-call.36} parent=23 // pred_check_branch
              %75 = sbr.rel (0) target = $region39
            $region38: #{custom-call.36} parent=23 // pred_region
              loop: start=0, step=1, limit=1
              $region40: #{custom-call.36} parent=38 // loop_pre_header
                _
              $region41: #{custom-call.36} parent=38 // loop_header
                %s78 = sphi 0, %s82
                %p79 = scmp.ge.s32.totalorder %s78, 1
                %s83 = sphi %s56, %s56
                %s84 = sphi %s51, %s51
              $region42: #{custom-call.36} parent=38 // loop_header_branch
                %81 = sbr.rel (%p79) target = $region46
              $region43: #{custom-call.36} parent=38 // loop_body
                %v85 = vld [vmem:[%s83] sm:$0xf]
                %86 = vst [vmem:[%s84] sm:$0xf] %v85
              $region44: #{custom-call.36} parent=38 // loop_footer
                %s82 = sadd.s32 1, %s78
              $region45: #{custom-call.36} parent=38 // loop_footer_branch
                %77 = sbr.rel target = $region41
              $region46: #{custom-call.36} parent=38 // loop_exit
                _
            $region39: #{custom-call.36} parent=23 // pred_fallthru
              _
          $region24: #{custom-call.36} parent=19 // pred_fallthru
            _
          // Predicated region
          $region25: #{custom-call.36} parent=19 // pred_check
            _
          $region26: #{custom-call.36} parent=19 // pred_check_branch
            %62 = sbr.rel (0) target = $region28
          $region27: #{custom-call.36} parent=19 // pred_region
            loop: start=0, step=1, limit=1
            $region29: #{custom-call.36} parent=27 // loop_pre_header
              _
            $region30: #{custom-call.36} parent=27 // loop_header
              %s65 = sphi 0, %s69
              %p66 = scmp.ge.s32.totalorder %s65, 1
              %s70 = sphi %s56, %s56
              %s71 = sphi %s51, %s51
            $region31: #{custom-call.36} parent=27 // loop_header_branch
              %68 = sbr.rel (%p66) target = $region35
            $region32: #{custom-call.36} parent=27 // loop_body
              %v72 = vld [vmem:[%s70] sm:$0xf]
              %73 = vst [vmem:[%s71] sm:$0xf] %v72
            $region33: #{custom-call.36} parent=27 // loop_footer
              %s69 = sadd.s32 1, %s65
            $region34: #{custom-call.36} parent=27 // loop_footer_branch
              %64 = sbr.rel target = $region30
            $region35: #{custom-call.36} parent=27 // loop_exit
              _
          $region28: #{custom-call.36} parent=19 // pred_fallthru
            _
        $region20: #{custom-call.36} parent=15 // pred_fallthru
          _
        %87 = vnop
      $region16: #{custom-call.36} parent=5 // pred_fallthru
        _
      %p88 = scmp.le.s32.totalorder 1, %s3
      %p89 = scmp.lt.s32.totalorder %s3, 3
      %p90 = pnand %p88, %p89
      %p91 = pneg %p90
      // Predicated region
      $region47: #{custom-call.36} parent=5 // pred_check
        _
      $region48: #{custom-call.36} parent=5 // pred_check_branch
        %93 = sbr.rel (%p90) target = $region50
      $region49: #{custom-call.36} parent=5 // pred_region
        #allocation4 [shape = 'f32[3,3]{1,0}', space=vmem, size = 0x1000, scoped, tag = 'rescaled input a']
        %s94 = ssub.s32 %s3, 1
        %s95 = sand.u32 %s8, 1
        %s96 = sand.u32 %s8, 1
        %s97 = smul.addr %s96, 4
        %s98 = scalar_lea.vmem [#allocation1], %s97
        %s99 = sand.u32 %s8, 1
        %s100 = sand.u32 %s8, 1
        %s101 = smul.addr %s100, 4
        %s102 = scalar_lea.vmem [#allocation1], %s101
        %s103 = sand.u32 %s8, 1
        %s104 = sand.u32 %s8, 1
        %s105 = smul.addr %s104, 4
        %s106 = scalar_lea.vmem [#allocation3], %s105
        %s108 = sshllo.u32 0, 4
        %v109 = vld [vmem:[%s102] sm:%s108]
        %110 = vst [vmem:[#allocation0] sm:%s108] %v109
        %v111 = vlaneseq
        %v112 = vand.u32 %v111, 127
        %vm113 = vcmp.lt.s32.totalorder %v112, 3
        %v114 = vlaneseq
        %v115 = vshrl.u32 %v114, 7
        %vm117 = vcmp.eq.s32.totalorder %v115, %v112
        %v118 = vld [vmem:[#allocation0] sm:$0xff]
        %v119 = vsel %vm117, %v118, 0.0
        %120 = vadd.xlane.f32.xlu0 %v119
        %v121 = vpop.xlane.xlu0 %120
        %vm122 = vcmp.ge.s32.totalorder %v115, %v112
        %vm123 = vmand %vm122, %vm113
        %v124 = vsel %vm123, %v118, 0.0
        %v125 = vrcp.pop %v121
        %v126 = vmul.f32 %v124, %v125
        %127 = vst [vmem:[#allocation4] sm:$0xff] %v126
        %v128 = vlaneseq
        %v129 = vand.u32 %v128, 127
        %v130 = vlaneseq
        %v131 = vshrl.u32 %v130, 7
        %vm133 = vcmp.eq.s32.totalorder %v129, %v131
        %v134 = vlaneseq
        %v135 = vand.u32 %v134, 127
        %vm136 = vcmp.eq.s32.totalorder %v135, 0
        %v137 = vsel %vm136, 1.0, -1.0
        %v138 = vsel %vm133, %v137, 0.0
        %s139 = scalar_lea.vmem [#allocation4], 1
        %v140 = vld [vmem:[%s139] ss:$0 sm:$0xff]
        %v141 = vxor.u32 %v140, 2147483648
        %v142 = vlaneseq
        %v143 = vand.u32 %v142, 127
        %vm144 = vcmp.eq.s32.totalorder %v143, 1
        %v145 = vmul.f32 %v141, %v138
        %146 = vadd.xlane.f32.xlu0 %v145
        %v147 = vpop.xlane.xlu0 %146
        %v148 = vsel %vm144, %v147, %v138
        %s149 = scalar_lea.vmem [#allocation4], 2
        %v150 = vld [vmem:[%s149] ss:$0 sm:$0xff]
        %v151 = vxor.u32 %v150, 2147483648
        %v152 = vlaneseq
        %v153 = vand.u32 %v152, 127
        %vm154 = vcmp.eq.s32.totalorder %v153, 2
        %v155 = vmul.f32 %v151, %v148
        %156 = vadd.xlane.f32.xlu0 %v155
        %v157 = vpop.xlane.xlu0 %156
        %v158 = vsel %vm154, %v157, %v148
        %v159 = vrcp.pop %v121
        %v160 = vmul.f32 %v158, %v159
        %vm161 = vweird.f32 %v121
        %v162 = vsel %vm161, %v158, %v160
        %163 = vst [vmem:[#allocation2] sm:$0xff] %v162
        %s165 = sshllo.u32 0, 4
        %v167 = vld [vmem:[#allocation2] sm:%s165]
        %s168 = sshllo.u32 0, 4
        %169 = vst [vmem:[%s106] sm:%s168] %v167
        %s170 = sand.u32 %s8, 1
        %s171 = sand.u32 %s8, 1
        %s172 = smul.addr %s171, 4
        %s173 = scalar_lea.vmem [#allocation3], %s172
        %s174 = sadd.s32 %s17, %s16
        %s175 = sadd.s32 %s174, %s15
        %s176 = sadd.s32 %s175, %s14
        %s177 = smul.addr %s176, 4
        %s178 = scalar_lea.vmem %s1, %s177
        // Predicated region
        $region51: #{custom-call.36} parent=49 // pred_check
          _
        $region52: #{custom-call.36} parent=49 // pred_check_branch
          %180 = sbr.rel (0) target = $region54
        $region53: #{custom-call.36} parent=49 // pred_region
          // Predicated region
          $region55: #{custom-call.36} parent=53 // pred_check
            _
          $region56: #{custom-call.36} parent=53 // pred_check_branch
            %182 = sbr.rel target = $region58
          $region57: #{custom-call.36} parent=53 // pred_region
            // Predicated region
            $region70: #{custom-call.36} parent=57 // pred_check
              _
            $region71: #{custom-call.36} parent=57 // pred_check_branch
              %197 = sbr.rel (0) target = $region73
            $region72: #{custom-call.36} parent=57 // pred_region
              loop: start=0, step=1, limit=1
              $region74: #{custom-call.36} parent=72 // loop_pre_header
                _
              $region75: #{custom-call.36} parent=72 // loop_header
                %s200 = sphi 0, %s204
                %p201 = scmp.ge.s32.totalorder %s200, 1
                %s205 = sphi %s173, %s173
                %s206 = sphi %s178, %s178
              $region76: #{custom-call.36} parent=72 // loop_header_branch
                %203 = sbr.rel (%p201) target = $region80
              $region77: #{custom-call.36} parent=72 // loop_body
                %v207 = vld [vmem:[%s205] sm:$0xf]
                %208 = vst [vmem:[%s206] sm:$0xf] %v207
              $region78: #{custom-call.36} parent=72 // loop_footer
                %s204 = sadd.s32 1, %s200
              $region79: #{custom-call.36} parent=72 // loop_footer_branch
                %199 = sbr.rel target = $region75
              $region80: #{custom-call.36} parent=72 // loop_exit
                _
            $region73: #{custom-call.36} parent=57 // pred_fallthru
              _
          $region58: #{custom-call.36} parent=53 // pred_fallthru
            _
          // Predicated region
          $region59: #{custom-call.36} parent=53 // pred_check
            _
          $region60: #{custom-call.36} parent=53 // pred_check_branch
            %184 = sbr.rel (0) target = $region62
          $region61: #{custom-call.36} parent=53 // pred_region
            loop: start=0, step=1, limit=1
            $region63: #{custom-call.36} parent=61 // loop_pre_header
              _
            $region64: #{custom-call.36} parent=61 // loop_header
              %s187 = sphi 0, %s191
              %p188 = scmp.ge.s32.totalorder %s187, 1
              %s192 = sphi %s173, %s173
              %s193 = sphi %s178, %s178
            $region65: #{custom-call.36} parent=61 // loop_header_branch
              %190 = sbr.rel (%p188) target = $region69
            $region66: #{custom-call.36} parent=61 // loop_body
              %v194 = vld [vmem:[%s192] sm:$0xf]
              %195 = vst [vmem:[%s193] sm:$0xf] %v194
            $region67: #{custom-call.36} parent=61 // loop_footer
              %s191 = sadd.s32 1, %s187
            $region68: #{custom-call.36} parent=61 // loop_footer_branch
              %186 = sbr.rel target = $region64
            $region69: #{custom-call.36} parent=61 // loop_exit
              _
          $region62: #{custom-call.36} parent=53 // pred_fallthru
            _
        $region54: #{custom-call.36} parent=49 // pred_fallthru
          _
        %209 = vnop
      $region50: #{custom-call.36} parent=5 // pred_fallthru
        _
      %p210 = scmp.le.s32.totalorder 2, %s3
      // Predicated region
      $region81: #{custom-call.36} parent=5 // pred_check
        %p211 = pneg %p210
      $region82: #{custom-call.36} parent=5 // pred_check_branch
        %213 = sbr.rel (%p211) target = $region84
      $region83: #{custom-call.36} parent=5 // pred_region
        %s214 = ssub.s32 %s3, 2
        %s215 = sand.u32 %s9, 1
        %s216 = sand.u32 %s9, 1
        %s217 = smul.addr %s216, 4
        %s218 = scalar_lea.vmem [#allocation3], %s217
      $region84: #{custom-call.36} parent=5 // pred_fallthru
        _
    $region6: #{custom-call.36} parent=1 // loop_footer
      %s7 = sadd.s32 1, %s3
    $region7: #{custom-call.36} parent=1 // loop_footer_branch
      %2 = sbr.rel target = $region3
    $region8: #{custom-call.36} parent=1 // loop_exit
      _

// kernel: cvthead_forward.1
$region0: #{cvthead_forward.1}
  #allocation0 [shape = 'u32[]', space=smem, size = 0x4, offset = 0x4, fixed_abs, tag = 'smem constant byte address 0x4 - core index']
  #allocation1 [shape = 'u32[144,128]{1,0:T(1,128)}', space=vmem, size = 0x12000, scoped, tag = 'internal scratch']
  %s0 = inlined_call_operand.vmem [shape: f32[64,36], index: 0, kind: input, shape index: {}]
  %s1 = inlined_call_operand.vmem [shape: f32[64,3], index: 1, kind: input, shape index: {}]
  %s2 = inlined_call_operand.vmem [shape: f32[2,36,3], index: 2, kind: input, shape index: {}]
  %s3 = inlined_call_operand.vmem [shape: f32[2,64,3], index: 3, kind: input, shape index: {}]
  %s4 = inlined_call_operand.vmem [shape: f32[2,64,3], index: 4, kind: input, shape index: {}]
  %s5 = inlined_call_operand.vmem [shape: f32[2,4,3], index: 5, kind: input, shape index: {}]
  %s6 = inlined_call_operand.vmem [shape: f32[2,4,3], index: 6, kind: input, shape index: {}]
  %s7 = inlined_call_operand.vmem [shape: f32[2,16,64], index: 7, kind: input, shape index: {}]
  %s8 = inlined_call_operand.vmem [shape: f32[64,32], index: 8, kind: input, shape index: {}]
  %s9 = inlined_call_operand.vmem [shape: f32[1,32], index: 9, kind: input, shape index: {}]
  %s10 = inlined_call_operand.vmem [shape: f32[1,16,32], index: 10, kind: input, shape index: {}]
  %s11 = inlined_call_operand.vmem [shape: f32[16,64], index: 11, kind: input, shape index: {}]
  %s12 = inlined_call_operand.vmem [shape: f32[64,16], index: 12, kind: input, shape index: {}]
  %s13 = inlined_call_operand.vmem [shape: f32[32,8], index: 13, kind: input, shape index: {}]
  %s14 = inlined_call_operand.vmem [shape: f32[1,8], index: 14, kind: input, shape index: {}]
  %s15 = inlined_call_operand.vmem [shape: f32[24,32], index: 15, kind: input, shape index: {}]
  %s16 = inlined_call_operand.vmem [shape: f32[2,64,3], index: 16, kind: output, shape index: {0}]
  %s17 = inlined_call_operand.vmem [shape: f32[2,64,3], index: 17, kind: output, shape index: {1}]
  %s18 = inlined_call_operand.hbm [shape: f32[2,32,32], index: 18, kind: output, shape index: {2}]
  %s19 = inlined_call_operand.vmem [shape: f32[2,64,8], index: 19, kind: output, shape index: {3}]
  %20 = xla_tuple %s16, %s17, %s18, %s19
  %s21 = sld [smem:[#allocation0]]
  $region121: #{cvthead_forward.1} parent=0
    _
  %s23 = ssub.s32 1, %s21
  %s24 = scalar_select 0, %s23, %s21
  $region1: #{cvthead_forward.1} parent=0
    #allocation2 [shape = 'u8[32768]{0}', space=vmem, size = 0x8000, scoped, tag = 'output window, operand 2']
    #allocation3 [shape = 's32[2]{0}', space=sflag, size = 0x8, scoped, tag = 'scoped memory for cvthead_forward.1']
    %25 = vsyncpa [#allocation3], 0
    %s26 = scalar_lea.sflag [#allocation3], 1
    %27 = vsyncpa %s26, 0
    loop: start=0, step=1, limit=4
    $region2: #{cvthead_forward.1} parent=1 // loop_pre_header
      _
    $region3: #{cvthead_forward.1} parent=1 // loop_header
      %s29 = sphi 0, %s33
      %p30 = scmp.ge.s32.totalorder %s29, 4
      %s37 = sphi 0, %s37
      %s39 = sphi 0, %s37
      %s40 = sphi 0, %s39
      %s54 = sphi 0, %s40
      %s58 = sphi 0, %s58
      %s60 = sphi 0, %s58
      %s61 = sphi 0, %s60
      %s75 = sphi 0, %s61
      %s81 = sphi 0, %s83
      %s84 = sphi 0, %s81
      %s85 = sphi 0, %s84
      %s101 = sphi 0, %s85
      %s107 = sphi 0, %s109
      %s110 = sphi 0, %s107
      %s111 = sphi 0, %s110
      %s127 = sphi 0, %s111
      %s133 = sphi 0, %s135
      %s136 = sphi 0, %s133
      %s137 = sphi 0, %s136
      %s153 = sphi 0, %s137
      %s159 = sphi 0, %s161
      %s162 = sphi 0, %s159
      %s163 = sphi 0, %s162
      %s179 = sphi 0, %s163
      %s185 = sphi 0, %s187
      %s188 = sphi 0, %s185
      %s189 = sphi 0, %s188
      %s205 = sphi 0, %s189
      %s211 = sphi 0, %s213
      %s214 = sphi 0, %s211
      %s215 = sphi 0, %s214
      %s231 = sphi 0, %s215
      %s235 = sphi 0, %s235
      %s237 = sphi 0, %s235
      %s238 = sphi 0, %s237
      %s252 = sphi 0, %s238
      %s256 = sphi 0, %s256
      %s258 = sphi 0, %s256
      %s259 = sphi 0, %s258
      %s273 = sphi 0, %s259
      %s277 = sphi 0, %s277
      %s279 = sphi 0, %s277
      %s280 = sphi 0, %s279
      %s294 = sphi 0, %s280
      %s298 = sphi 0, %s298
      %s300 = sphi 0, %s298
      %s301 = sphi 0, %s300
      %s315 = sphi 0, %s301
      %s319 = sphi 0, %s319
      %s321 = sphi 0, %s319
      %s322 = sphi 0, %s321
      %s336 = sphi 0, %s322
      %s340 = sphi 0, %s340
      %s342 = sphi 0, %s340
      %s343 = sphi 0, %s342
      %s357 = sphi 0, %s343
      %s361 = sphi 0, %s361
      %s363 = sphi 0, %s361
      %s364 = sphi 0, %s363
      %s378 = sphi 0, %s364
      %s382 = sphi 0, %s382
      %s384 = sphi 0, %s382
      %s385 = sphi 0, %s384
      %s399 = sphi 0, %s385
      %s405 = sphi 0, %s407
      %s408 = sphi 0, %s405
      %s409 = sphi 0, %s408
      %s425 = sphi 0, %s409
      %s431 = sphi 0, %s433
      %s434 = sphi 0, %s431
      %s435 = sphi 0, %s434
      %s451 = sphi 0, %s435
      %s457 = sphi 0, %s459
      %s460 = sphi 0, %s457
      %s461 = sphi 0, %s460
      %s477 = sphi 0, %s461
      %s483 = sphi 0, %s485
      %s486 = sphi 0, %s483
      %s487 = sphi 0, %s486
      %s503 = sphi 0, %s487
    $region4: #{cvthead_forward.1} parent=1 // loop_header_branch
      %32 = sbr.rel (%p30) target = $region8
    $region5: #{cvthead_forward.1} parent=1 // loop_body
      %s34 = ssub.s32 %s29, 1
      %s35 = ssub.s32 %s29, 2
      %s36 = sadd.s32 %s29, 1
      %s38 = sadd.s32 %s37, 1
      %p41 = scmp.eq.s32.totalorder %s29, 1
      %p42 = scmp.ne.s32.totalorder %s37, %s39
      %p43 = scmp.eq.s32.totalorder %s29, 0
      %p44 = por %p42, %p43
      %p45 = scmp.ne.s32.totalorder %s37, %s39
      %p46 = scmp.eq.s32.totalorder %s34, 1
      %p47 = por %p45, %p46
      %p48 = scmp.ne.s32.totalorder %s39, %s40
      %p49 = scmp.eq.s32.totalorder %s34, 0
      %p50 = por %p48, %p49
      %p51 = scmp.ne.s32.totalorder %s39, %s40
      %p52 = scmp.eq.s32.totalorder %s35, 1
      %p53 = por %p51, %p52
      %p55 = scmp.ne.s32.totalorder %s40, %s54
      %p56 = scmp.eq.s32.totalorder %s35, 0
      %p57 = por %p55, %p56
      %s59 = sadd.s32 %s58, 1
      %p62 = scmp.eq.s32.totalorder %s29, 1
      %p63 = scmp.ne.s32.totalorder %s58, %s60
      %p64 = scmp.eq.s32.totalorder %s29, 0
      %p65 = por %p63, %p64
      %p66 = scmp.ne.s32.totalorder %s58, %s60
      %p67 = scmp.eq.s32.totalorder %s34, 1
      %p68 = por %p66, %p67
      %p69 = scmp.ne.s32.totalorder %s60, %s61
      %p70 = scmp.eq.s32.totalorder %s34, 0
      %p71 = por %p69, %p70
      %p72 = scmp.ne.s32.totalorder %s60, %s61
      %p73 = scmp.eq.s32.totalorder %s35, 1
      %p74 = por %p72, %p73
      %p76 = scmp.ne.s32.totalorder %s61, %s75
      %p77 = scmp.eq.s32.totalorder %s35, 0
      %p78 = por %p76, %p77
      %s79 = ssub.s32 %s29, %s36
      %p80 = scmp.eq.s32.totalorder %s79, 0
      %s82 = sadd.s32 %s81, 1
      %s83 = scalar_select %p80, %s81, %s82
      %p86 = pneg %p80
      %p87 = scmp.eq.s32.totalorder %s29, 1
      %p88 = por %p86, %p87
      %p89 = scmp.ne.s32.totalorder %s81, %s84
      %p90 = scmp.eq.s32.totalorder %s29, 0
      %p91 = por %p89, %p90
      %p92 = scmp.ne.s32.totalorder %s81, %s84
      %p93 = scmp.eq.s32.totalorder %s34, 1
      %p94 = por %p92, %p93
      %p95 = scmp.ne.s32.totalorder %s84, %s85
      %p96 = scmp.eq.s32.totalorder %s34, 0
      %p97 = por %p95, %p96
      %p98 = scmp.ne.s32.totalorder %s84, %s85
      %p99 = scmp.eq.s32.totalorder %s35, 1
      %p100 = por %p98, %p99
      %p102 = scmp.ne.s32.totalorder %s85, %s101
      %p103 = scmp.eq.s32.totalorder %s35, 0
      %p104 = por %p102, %p103
      %s105 = ssub.s32 %s29, %s36
      %p106 = scmp.eq.s32.totalorder %s105, 0
      %s108 = sadd.s32 %s107, 1
      %s109 = scalar_select %p106, %s107, %s108
      %p112 = pneg %p106
      %p113 = scmp.eq.s32.totalorder %s29, 1
      %p114 = por %p112, %p113
      %p115 = scmp.ne.s32.totalorder %s107, %s110
      %p116 = scmp.eq.s32.totalorder %s29, 0
      %p117 = por %p115, %p116
      %p118 = scmp.ne.s32.totalorder %s107, %s110
      %p119 = scmp.eq.s32.totalorder %s34, 1
      %p120 = por %p118, %p119
      %p121 = scmp.ne.s32.totalorder %s110, %s111
      %p122 = scmp.eq.s32.totalorder %s34, 0
      %p123 = por %p121, %p122
      %p124 = scmp.ne.s32.totalorder %s110, %s111
      %p125 = scmp.eq.s32.totalorder %s35, 1
      %p126 = por %p124, %p125
      %p128 = scmp.ne.s32.totalorder %s111, %s127
      %p129 = scmp.eq.s32.totalorder %s35, 0
      %p130 = por %p128, %p129
      %s131 = ssub.s32 %s29, %s36
      %p132 = scmp.eq.s32.totalorder %s131, 0
      %s134 = sadd.s32 %s133, 1
      %s135 = scalar_select %p132, %s133, %s134
      %p138 = pneg %p132
      %p139 = scmp.eq.s32.totalorder %s29, 1
      %p140 = por %p138, %p139
      %p141 = scmp.ne.s32.totalorder %s133, %s136
      %p142 = scmp.eq.s32.totalorder %s29, 0
      %p143 = por %p141, %p142
      %p144 = scmp.ne.s32.totalorder %s133, %s136
      %p145 = scmp.eq.s32.totalorder %s34, 1
      %p146 = por %p144, %p145
      %p147 = scmp.ne.s32.totalorder %s136, %s137
      %p148 = scmp.eq.s32.totalorder %s34, 0
      %p149 = por %p147, %p148
      %p150 = scmp.ne.s32.totalorder %s136, %s137
      %p151 = scmp.eq.s32.totalorder %s35, 1
      %p152 = por %p150, %p151
      %p154 = scmp.ne.s32.totalorder %s137, %s153
      %p155 = scmp.eq.s32.totalorder %s35, 0
      %p156 = por %p154, %p155
      %s157 = ssub.s32 %s29, %s36
      %p158 = scmp.eq.s32.totalorder %s157, 0
      %s160 = sadd.s32 %s159, 1
      %s161 = scalar_select %p158, %s159, %s160
      %p164 = pneg %p158
      %p165 = scmp.eq.s32.totalorder %s29, 1
      %p166 = por %p164, %p165
      %p167 = scmp.ne.s32.totalorder %s159, %s162
      %p168 = scmp.eq.s32.totalorder %s29, 0
      %p169 = por %p167, %p168
      %p170 = scmp.ne.s32.totalorder %s159, %s162
      %p171 = scmp.eq.s32.totalorder %s34, 1
      %p172 = por %p170, %p171
      %p173 = scmp.ne.s32.totalorder %s162, %s163
      %p174 = scmp.eq.s32.totalorder %s34, 0
      %p175 = por %p173, %p174
      %p176 = scmp.ne.s32.totalorder %s162, %s163
      %p177 = scmp.eq.s32.totalorder %s35, 1
      %p178 = por %p176, %p177
      %p180 = scmp.ne.s32.totalorder %s163, %s179
      %p181 = scmp.eq.s32.totalorder %s35, 0
      %p182 = por %p180, %p181
      %s183 = ssub.s32 %s29, %s36
      %p184 = scmp.eq.s32.totalorder %s183, 0
      %s186 = sadd.s32 %s185, 1
      %s187 = scalar_select %p184, %s185, %s186
      %p190 = pneg %p184
      %p191 = scmp.eq.s32.totalorder %s29, 1
      %p192 = por %p190, %p191
      %p193 = scmp.ne.s32.totalorder %s185, %s188
      %p194 = scmp.eq.s32.totalorder %s29, 0
      %p195 = por %p193, %p194
      %p196 = scmp.ne.s32.totalorder %s185, %s188
      %p197 = scmp.eq.s32.totalorder %s34, 1
      %p198 = por %p196, %p197
      %p199 = scmp.ne.s32.totalorder %s188, %s189
      %p200 = scmp.eq.s32.totalorder %s34, 0
      %p201 = por %p199, %p200
      %p202 = scmp.ne.s32.totalorder %s188, %s189
      %p203 = scmp.eq.s32.totalorder %s35, 1
      %p204 = por %p202, %p203
      %p206 = scmp.ne.s32.totalorder %s189, %s205
      %p207 = scmp.eq.s32.totalorder %s35, 0
      %p208 = por %p206, %p207
      %s209 = ssub.s32 %s29, %s36
      %p210 = scmp.eq.s32.totalorder %s209, 0
      %s212 = sadd.s32 %s211, 1
      %s213 = scalar_select %p210, %s211, %s212
      %p216 = pneg %p210
      %p217 = scmp.eq.s32.totalorder %s29, 1
      %p218 = por %p216, %p217
      %p219 = scmp.ne.s32.totalorder %s211, %s214
      %p220 = scmp.eq.s32.totalorder %s29, 0
      %p221 = por %p219, %p220
      %p222 = scmp.ne.s32.totalorder %s211, %s214
      %p223 = scmp.eq.s32.totalorder %s34, 1
      %p224 = por %p222, %p223
      %p225 = scmp.ne.s32.totalorder %s214, %s215
      %p226 = scmp.eq.s32.totalorder %s34, 0
      %p227 = por %p225, %p226
      %p228 = scmp.ne.s32.totalorder %s214, %s215
      %p229 = scmp.eq.s32.totalorder %s35, 1
      %p230 = por %p228, %p229
      %p232 = scmp.ne.s32.totalorder %s215, %s231
      %p233 = scmp.eq.s32.totalorder %s35, 0
      %p234 = por %p232, %p233
      %s236 = sadd.s32 %s235, 1
      %p239 = scmp.eq.s32.totalorder %s29, 1
      %p240 = scmp.ne.s32.totalorder %s235, %s237
      %p241 = scmp.eq.s32.totalorder %s29, 0
      %p242 = por %p240, %p241
      %p243 = scmp.ne.s32.totalorder %s235, %s237
      %p244 = scmp.eq.s32.totalorder %s34, 1
      %p245 = por %p243, %p244
      %p246 = scmp.ne.s32.totalorder %s237, %s238
      %p247 = scmp.eq.s32.totalorder %s34, 0
      %p248 = por %p246, %p247
      %p249 = scmp.ne.s32.totalorder %s237, %s238
      %p250 = scmp.eq.s32.totalorder %s35, 1
      %p251 = por %p249, %p250
      %p253 = scmp.ne.s32.totalorder %s238, %s252
      %p254 = scmp.eq.s32.totalorder %s35, 0
      %p255 = por %p253, %p254
      %s257 = sadd.s32 %s256, 1
      %p260 = scmp.eq.s32.totalorder %s29, 1
      %p261 = scmp.ne.s32.totalorder %s256, %s258
      %p262 = scmp.eq.s32.totalorder %s29, 0
      %p263 = por %p261, %p262
      %p264 = scmp.ne.s32.totalorder %s256, %s258
      %p265 = scmp.eq.s32.totalorder %s34, 1
      %p266 = por %p264, %p265
      %p267 = scmp.ne.s32.totalorder %s258, %s259
      %p268 = scmp.eq.s32.totalorder %s34, 0
      %p269 = por %p267, %p268
      %p270 = scmp.ne.s32.totalorder %s258, %s259
      %p271 = scmp.eq.s32.totalorder %s35, 1
      %p272 = por %p270, %p271
      %p274 = scmp.ne.s32.totalorder %s259, %s273
      %p275 = scmp.eq.s32.totalorder %s35, 0
      %p276 = por %p274, %p275
      %s278 = sadd.s32 %s277, 1
      %p281 = scmp.eq.s32.totalorder %s29, 1
      %p282 = scmp.ne.s32.totalorder %s277, %s279
      %p283 = scmp.eq.s32.totalorder %s29, 0
      %p284 = por %p282, %p283
      %p285 = scmp.ne.s32.totalorder %s277, %s279
      %p286 = scmp.eq.s32.totalorder %s34, 1
      %p287 = por %p285, %p286
      %p288 = scmp.ne.s32.totalorder %s279, %s280
      %p289 = scmp.eq.s32.totalorder %s34, 0
      %p290 = por %p288, %p289
      %p291 = scmp.ne.s32.totalorder %s279, %s280
      %p292 = scmp.eq.s32.totalorder %s35, 1
      %p293 = por %p291, %p292
      %p295 = scmp.ne.s32.totalorder %s280, %s294
      %p296 = scmp.eq.s32.totalorder %s35, 0
      %p297 = por %p295, %p296
      %s299 = sadd.s32 %s298, 1
      %p302 = scmp.eq.s32.totalorder %s29, 1
      %p303 = scmp.ne.s32.totalorder %s298, %s300
      %p304 = scmp.eq.s32.totalorder %s29, 0
      %p305 = por %p303, %p304
      %p306 = scmp.ne.s32.totalorder %s298, %s300
      %p307 = scmp.eq.s32.totalorder %s34, 1
      %p308 = por %p306, %p307
      %p309 = scmp.ne.s32.totalorder %s300, %s301
      %p310 = scmp.eq.s32.totalorder %s34, 0
      %p311 = por %p309, %p310
      %p312 = scmp.ne.s32.totalorder %s300, %s301
      %p313 = scmp.eq.s32.totalorder %s35, 1
      %p314 = por %p312, %p313
      %p316 = scmp.ne.s32.totalorder %s301, %s315
      %p317 = scmp.eq.s32.totalorder %s35, 0
      %p318 = por %p316, %p317
      %s320 = sadd.s32 %s319, 1
      %p323 = scmp.eq.s32.totalorder %s29, 1
      %p324 = scmp.ne.s32.totalorder %s319, %s321
      %p325 = scmp.eq.s32.totalorder %s29, 0
      %p326 = por %p324, %p325
      %p327 = scmp.ne.s32.totalorder %s319, %s321
      %p328 = scmp.eq.s32.totalorder %s34, 1
      %p329 = por %p327, %p328
      %p330 = scmp.ne.s32.totalorder %s321, %s322
      %p331 = scmp.eq.s32.totalorder %s34, 0
      %p332 = por %p330, %p331
      %p333 = scmp.ne.s32.totalorder %s321, %s322
      %p334 = scmp.eq.s32.totalorder %s35, 1
      %p335 = por %p333, %p334
      %p337 = scmp.ne.s32.totalorder %s322, %s336
      %p338 = scmp.eq.s32.totalorder %s35, 0
      %p339 = por %p337, %p338
      %s341 = sadd.s32 %s340, 1
      %p344 = scmp.eq.s32.totalorder %s29, 1
      %p345 = scmp.ne.s32.totalorder %s340, %s342
      %p346 = scmp.eq.s32.totalorder %s29, 0
      %p347 = por %p345, %p346
      %p348 = scmp.ne.s32.totalorder %s340, %s342
      %p349 = scmp.eq.s32.totalorder %s34, 1
      %p350 = por %p348, %p349
      %p351 = scmp.ne.s32.totalorder %s342, %s343
      %p352 = scmp.eq.s32.totalorder %s34, 0
      %p353 = por %p351, %p352
      %p354 = scmp.ne.s32.totalorder %s342, %s343
      %p355 = scmp.eq.s32.totalorder %s35, 1
      %p356 = por %p354, %p355
      %p358 = scmp.ne.s32.totalorder %s343, %s357
      %p359 = scmp.eq.s32.totalorder %s35, 0
      %p360 = por %p358, %p359
      %s362 = sadd.s32 %s361, 1
      %p365 = scmp.eq.s32.totalorder %s29, 1
      %p366 = scmp.ne.s32.totalorder %s361, %s363
      %p367 = scmp.eq.s32.totalorder %s29, 0
      %p368 = por %p366, %p367
      %p369 = scmp.ne.s32.totalorder %s361, %s363
      %p370 = scmp.eq.s32.totalorder %s34, 1
      %p371 = por %p369, %p370
      %p372 = scmp.ne.s32.totalorder %s363, %s364
      %p373 = scmp.eq.s32.totalorder %s34, 0
      %p374 = por %p372, %p373
      %p375 = scmp.ne.s32.totalorder %s363, %s364
      %p376 = scmp.eq.s32.totalorder %s35, 1
      %p377 = por %p375, %p376
      %p379 = scmp.ne.s32.totalorder %s364, %s378
      %p380 = scmp.eq.s32.totalorder %s35, 0
      %p381 = por %p379, %p380
      %s383 = sadd.s32 %s382, 1
      %p386 = scmp.eq.s32.totalorder %s29, 1
      %p387 = scmp.ne.s32.totalorder %s382, %s384
      %p388 = scmp.eq.s32.totalorder %s29, 0
      %p389 = por %p387, %p388
      %p390 = scmp.ne.s32.totalorder %s382, %s384
      %p391 = scmp.eq.s32.totalorder %s34, 1
      %p392 = por %p390, %p391
      %p393 = scmp.ne.s32.totalorder %s384, %s385
      %p394 = scmp.eq.s32.totalorder %s34, 0
      %p395 = por %p393, %p394
      %p396 = scmp.ne.s32.totalorder %s384, %s385
      %p397 = scmp.eq.s32.totalorder %s35, 1
      %p398 = por %p396, %p397
      %p400 = scmp.ne.s32.totalorder %s385, %s399
      %p401 = scmp.eq.s32.totalorder %s35, 0
      %p402 = por %p400, %p401
      %s403 = ssub.s32 %s29, %s36
      %p404 = scmp.eq.s32.totalorder %s403, 0
      %s406 = sadd.s32 %s405, 1
      %s407 = scalar_select %p404, %s405, %s406
      %p410 = pneg %p404
      %p411 = scmp.eq.s32.totalorder %s29, 1
      %p412 = por %p410, %p411
      %p413 = scmp.ne.s32.totalorder %s405, %s408
      %p414 = scmp.eq.s32.totalorder %s29, 0
      %p415 = por %p413, %p414
      %p416 = scmp.ne.s32.totalorder %s405, %s408
      %p417 = scmp.eq.s32.totalorder %s34, 1
      %p418 = por %p416, %p417
      %p419 = scmp.ne.s32.totalorder %s408, %s409
      %p420 = scmp.eq.s32.totalorder %s34, 0
      %p421 = por %p419, %p420
      %p422 = scmp.ne.s32.totalorder %s408, %s409
      %p423 = scmp.eq.s32.totalorder %s35, 1
      %p424 = por %p422, %p423
      %p426 = scmp.ne.s32.totalorder %s409, %s425
      %p427 = scmp.eq.s32.totalorder %s35, 0
      %p428 = por %p426, %p427
      %s429 = ssub.s32 %s29, %s36
      %p430 = scmp.eq.s32.totalorder %s429, 0
      %s432 = sadd.s32 %s431, 1
      %s433 = scalar_select %p430, %s431, %s432
      %p436 = pneg %p430
      %p437 = scmp.eq.s32.totalorder %s29, 1
      %p438 = por %p436, %p437
      %p439 = scmp.ne.s32.totalorder %s431, %s434
      %p440 = scmp.eq.s32.totalorder %s29, 0
      %p441 = por %p439, %p440
      %p442 = scmp.ne.s32.totalorder %s431, %s434
      %p443 = scmp.eq.s32.totalorder %s34, 1
      %p444 = por %p442, %p443
      %p445 = scmp.ne.s32.totalorder %s434, %s435
      %p446 = scmp.eq.s32.totalorder %s34, 0
      %p447 = por %p445, %p446
      %p448 = scmp.ne.s32.totalorder %s434, %s435
      %p449 = scmp.eq.s32.totalorder %s35, 1
      %p450 = por %p448, %p449
      %p452 = scmp.ne.s32.totalorder %s435, %s451
      %p453 = scmp.eq.s32.totalorder %s35, 0
      %p454 = por %p452, %p453
      %s455 = ssub.s32 %s29, %s36
      %p456 = scmp.eq.s32.totalorder %s455, 0
      %s458 = sadd.s32 %s457, 1
      %s459 = scalar_select %p456, %s457, %s458
      %p462 = pneg %p456
      %p463 = scmp.eq.s32.totalorder %s29, 1
      %p464 = por %p462, %p463
      %p465 = scmp.ne.s32.totalorder %s457, %s460
      %p466 = scmp.eq.s32.totalorder %s29, 0
      %p467 = por %p465, %p466
      %p468 = scmp.ne.s32.totalorder %s457, %s460
      %p469 = scmp.eq.s32.totalorder %s34, 1
      %p470 = por %p468, %p469
      %p471 = scmp.ne.s32.totalorder %s460, %s461
      %p472 = scmp.eq.s32.totalorder %s34, 0
      %p473 = por %p471, %p472
      %p474 = scmp.ne.s32.totalorder %s460, %s461
      %p475 = scmp.eq.s32.totalorder %s35, 1
      %p476 = por %p474, %p475
      %p478 = scmp.ne.s32.totalorder %s461, %s477
      %p479 = scmp.eq.s32.totalorder %s35, 0
      %p480 = por %p478, %p479
      %s481 = ssub.s32 %s29, %s36
      %p482 = scmp.eq.s32.totalorder %s481, 0
      %s484 = sadd.s32 %s483, 1
      %s485 = scalar_select %p482, %s483, %s484
      %p488 = pneg %p482
      %p489 = scmp.eq.s32.totalorder %s29, 1
      %p490 = por %p488, %p489
      %p491 = scmp.ne.s32.totalorder %s483, %s486
      %p492 = scmp.eq.s32.totalorder %s29, 0
      %p493 = por %p491, %p492
      %p494 = scmp.ne.s32.totalorder %s483, %s486
      %p495 = scmp.eq.s32.totalorder %s34, 1
      %p496 = por %p494, %p495
      %p497 = scmp.ne.s32.totalorder %s486, %s487
      %p498 = scmp.eq.s32.totalorder %s34, 0
      %p499 = por %p497, %p498
      %p500 = scmp.ne.s32.totalorder %s486, %s487
      %p501 = scmp.eq.s32.totalorder %s35, 1
      %p502 = por %p500, %p501
      %p504 = scmp.ne.s32.totalorder %s487, %s503
      %p505 = scmp.eq.s32.totalorder %s35, 0
      %p506 = por %p504, %p505
      %p507 = scmp.le.s32.totalorder 1, %s29
      %p508 = scmp.lt.s32.totalorder %s29, 3
      %p509 = pnand %p507, %p508
      %p510 = pneg %p509
      // Predicated region
      $region9: #{cvthead_forward.1} parent=5 // pred_check
        _
      $region10: #{cvthead_forward.1} parent=5 // pred_check_branch
        %512 = sbr.rel (%p509) target = $region12
      $region11: #{cvthead_forward.1} parent=5 // pred_region
        %s513 = ssub.s32 %s29, 1
        // Predicated region
        $region13: #{cvthead_forward.1} parent=11 // pred_check
          %p514 = pneg %p50
        $region14: #{cvthead_forward.1} parent=11 // pred_check_branch
          %516 = sbr.rel (%p514) target = $region16
        $region15: #{cvthead_forward.1} parent=11 // pred_region
          _
        $region16: #{cvthead_forward.1} parent=11 // pred_fallthru
          _
        // Predicated region
        $region17: #{cvthead_forward.1} parent=11 // pred_check
          %p517 = pneg %p71
        $region18: #{cvthead_forward.1} parent=11 // pred_check_branch
          %519 = sbr.rel (%p517) target = $region20
        $region19: #{cvthead_forward.1} parent=11 // pred_region
          _
        $region20: #{cvthead_forward.1} parent=11 // pred_fallthru
          _
        // Predicated region
        $region21: #{cvthead_forward.1} parent=11 // pred_check
          %p520 = pneg %p248
        $region22: #{cvthead_forward.1} parent=11 // pred_check_branch
          %522 = sbr.rel (%p520) target = $region24
        $region23: #{cvthead_forward.1} parent=11 // pred_region
          _
        $region24: #{cvthead_forward.1} parent=11 // pred_fallthru
          _
        // Predicated region
        $region25: #{cvthead_forward.1} parent=11 // pred_check
          %p523 = pneg %p269
        $region26: #{cvthead_forward.1} parent=11 // pred_check_branch
          %525 = sbr.rel (%p523) target = $region28
        $region27: #{cvthead_forward.1} parent=11 // pred_region
          _
        $region28: #{cvthead_forward.1} parent=11 // pred_fallthru
          _
        // Predicated region
        $region29: #{cvthead_forward.1} parent=11 // pred_check
          %p526 = pneg %p290
        $region30: #{cvthead_forward.1} parent=11 // pred_check_branch
          %528 = sbr.rel (%p526) target = $region32
        $region31: #{cvthead_forward.1} parent=11 // pred_region
          _
        $region32: #{cvthead_forward.1} parent=11 // pred_fallthru
          _
        // Predicated region
        $region33: #{cvthead_forward.1} parent=11 // pred_check
          %p529 = pneg %p311
        $region34: #{cvthead_forward.1} parent=11 // pred_check_branch
          %531 = sbr.rel (%p529) target = $region36
        $region35: #{cvthead_forward.1} parent=11 // pred_region
          _
        $region36: #{cvthead_forward.1} parent=11 // pred_fallthru
          _
        // Predicated region
        $region37: #{cvthead_forward.1} parent=11 // pred_check
          %p532 = pneg %p332
        $region38: #{cvthead_forward.1} parent=11 // pred_check_branch
          %534 = sbr.rel (%p532) target = $region40
        $region39: #{cvthead_forward.1} parent=11 // pred_region
          _
        $region40: #{cvthead_forward.1} parent=11 // pred_fallthru
          _
        // Predicated region
        $region41: #{cvthead_forward.1} parent=11 // pred_check
          %p535 = pneg %p353
        $region42: #{cvthead_forward.1} parent=11 // pred_check_branch
          %537 = sbr.rel (%p535) target = $region44
        $region43: #{cvthead_forward.1} parent=11 // pred_region
          _
        $region44: #{cvthead_forward.1} parent=11 // pred_fallthru
          _
        // Predicated region
        $region45: #{cvthead_forward.1} parent=11 // pred_check
          %p538 = pneg %p374
        $region46: #{cvthead_forward.1} parent=11 // pred_check_branch
          %540 = sbr.rel (%p538) target = $region48
        $region47: #{cvthead_forward.1} parent=11 // pred_region
          _
        $region48: #{cvthead_forward.1} parent=11 // pred_fallthru
          _
        // Predicated region
        $region49: #{cvthead_forward.1} parent=11 // pred_check
          %p541 = pneg %p395
        $region50: #{cvthead_forward.1} parent=11 // pred_check_branch
          %543 = sbr.rel (%p541) target = $region52
        $region51: #{cvthead_forward.1} parent=11 // pred_region
          _
        $region52: #{cvthead_forward.1} parent=11 // pred_fallthru
          _
      $region12: #{cvthead_forward.1} parent=5 // pred_fallthru
        _
      %p544 = scmp.lt.s32.totalorder %s29, 2
      // Predicated region
      $region53: #{cvthead_forward.1} parent=5 // pred_check
        %p545 = pneg %p544
      $region54: #{cvthead_forward.1} parent=5 // pred_check_branch
        %547 = sbr.rel (%p545) target = $region56
      $region55: #{cvthead_forward.1} parent=5 // pred_region
        // Predicated region
        $region57: #{cvthead_forward.1} parent=55 // pred_check
          %p548 = pneg %p91
        $region58: #{cvthead_forward.1} parent=55 // pred_check_branch
          %550 = sbr.rel (%p548) target = $region60
        $region59: #{cvthead_forward.1} parent=55 // pred_region
          %p551 = scmp.lt.s32.totalorder %s29, 1
          %s552 = scalar_select %p551, %s29, 1
          %s553 = smul.addr %s552, 5
          %s554 = smul.addr %s553, 8
          %s555 = scalar_lea.vmem %s2, %s554
        $region60: #{cvthead_forward.1} parent=55 // pred_fallthru
          _
        // Predicated region
        $region61: #{cvthead_forward.1} parent=55 // pred_check
          %p556 = pneg %p117
        $region62: #{cvthead_forward.1} parent=55 // pred_check_branch
          %558 = sbr.rel (%p556) target = $region64
        $region63: #{cvthead_forward.1} parent=55 // pred_region
          %p559 = scmp.lt.s32.totalorder %s29, 1
          %s560 = scalar_select %p559, %s29, 1
          %s561 = smul.addr %s560, 8
          %s562 = smul.addr %s561, 8
          %s563 = scalar_lea.vmem %s3, %s562
        $region64: #{cvthead_forward.1} parent=55 // pred_fallthru
          _
        // Predicated region
        $region65: #{cvthead_forward.1} parent=55 // pred_check
          %p564 = pneg %p143
        $region66: #{cvthead_forward.1} parent=55 // pred_check_branch
          %566 = sbr.rel (%p564) target = $region68
        $region67: #{cvthead_forward.1} parent=55 // pred_region
          %p567 = scmp.lt.s32.totalorder %s29, 1
          %s568 = scalar_select %p567, %s29, 1
          %s569 = smul.addr %s568, 8
          %s570 = smul.addr %s569, 8
          %s571 = scalar_lea.vmem %s4, %s570
        $region68: #{cvthead_forward.1} parent=55 // pred_fallthru
          _
        // Predicated region
        $region69: #{cvthead_forward.1} parent=55 // pred_check
          %p572 = pneg %p169
        $region70: #{cvthead_forward.1} parent=55 // pred_check_branch
          %574 = sbr.rel (%p572) target = $region72
        $region71: #{cvthead_forward.1} parent=55 // pred_region
          %p575 = scmp.lt.s32.totalorder %s29, 1
          %s576 = scalar_select %p575, %s29, 1
          %s577 = smul.addr %s576, 4
          %s578 = scalar_lea.vmem %s5, %s577
        $region72: #{cvthead_forward.1} parent=55 // pred_fallthru
          _
        // Predicated region
        $region73: #{cvthead_forward.1} parent=55 // pred_check
          %p579 = pneg %p195
        $region74: #{cvthead_forward.1} parent=55 // pred_check_branch
          %581 = sbr.rel (%p579) target = $region76
        $region75: #{cvthead_forward.1} parent=55 // pred_region
          %p582 = scmp.lt.s32.totalorder %s29, 1
          %s583 = scalar_select %p582, %s29, 1
          %s584 = smul.addr %s583, 4
          %s585 = scalar_lea.vmem %s6, %s584
        $region76: #{cvthead_forward.1} parent=55 // pred_fallthru
          _
        // Predicated region
        $region77: #{cvthead_forward.1} parent=55 // pred_check
          %p586 = pneg %p221
        $region78: #{cvthead_forward.1} parent=55 // pred_check_branch
          %588 = sbr.rel (%p586) target = $region80
        $region79: #{cvthead_forward.1} parent=55 // pred_region
          %p589 = scmp.lt.s32.totalorder %s29, 1
          %s590 = scalar_select %p589, %s29, 1
          %s591 = smul.addr %s590, 2
          %s592 = smul.addr %s591, 8
          %s593 = scalar_lea.vmem %s7, %s592
        $region80: #{cvthead_forward.1} parent=55 // pred_fallthru
          _
      $region56: #{cvthead_forward.1} parent=5 // pred_fallthru
        _
      %p594 = scmp.le.s32.totalorder 1, %s29
      %p595 = scmp.lt.s32.totalorder %s29, 3
      %p596 = pnand %p594, %p595
      %p597 = pneg %p596
      // Predicated region
      $region81: #{cvthead_forward.1} parent=5 // pred_check
        _
      $region82: #{cvthead_forward.1} parent=5 // pred_check_branch
        %599 = sbr.rel (%p596) target = $region84
      $region83: #{cvthead_forward.1} parent=5 // pred_region
        %s600 = ssub.s32 %s29, 1
        %p601 = pneg %p50
        %p602 = pneg %p47
        %p603 = pneg %p71
        %p604 = pneg %p68
        %p605 = scmp.lt.s32.totalorder %s34, 1
        %s606 = scalar_select %p605, %s34, 1
        %s607 = smul.addr %s606, 5
        %s608 = smul.addr %s607, 8
        %s609 = scalar_lea.vmem %s2, %s608
        %p610 = pneg %p97
        %p611 = pneg %p94
        %p612 = scmp.lt.s32.totalorder %s34, 1
        %s613 = scalar_select %p612, %s34, 1
        %s614 = smul.addr %s613, 8
        %s615 = smul.addr %s614, 8
        %s616 = scalar_lea.vmem %s3, %s615
        %p617 = pneg %p123
        %p618 = pneg %p120
        %p619 = scmp.lt.s32.totalorder %s34, 1
        %s620 = scalar_select %p619, %s34, 1
        %s621 = smul.addr %s620, 8
        %s622 = smul.addr %s621, 8
        %s623 = scalar_lea.vmem %s4, %s622
        %p624 = pneg %p149
        %p625 = pneg %p146
        %p626 = scmp.lt.s32.totalorder %s34, 1
        %s627 = scalar_select %p626, %s34, 1
        %s628 = smul.addr %s627, 4
        %s629 = scalar_lea.vmem %s5, %s628
        %p630 = pneg %p175
        %p631 = pneg %p172
        %p632 = scmp.lt.s32.totalorder %s34, 1
        %s633 = scalar_select %p632, %s34, 1
        %s634 = smul.addr %s633, 4
        %s635 = scalar_lea.vmem %s6, %s634
        %p636 = pneg %p201
        %p637 = pneg %p198
        %p638 = scmp.lt.s32.totalorder %s34, 1
        %s639 = scalar_select %p638, %s34, 1
        %s640 = smul.addr %s639, 2
        %s641 = smul.addr %s640, 8
        %s642 = scalar_lea.vmem %s7, %s641
        %p643 = pneg %p227
        %p644 = pneg %p224
        %p645 = pneg %p248
        %p646 = pneg %p245
        %p647 = pneg %p269
        %p648 = pneg %p266
        %p649 = pneg %p290
        %p650 = pneg %p287
        %p651 = pneg %p311
        %p652 = pneg %p308
        %p653 = pneg %p332
        %p654 = pneg %p329
        %p655 = pneg %p353
        %p656 = pneg %p350
        %p657 = pneg %p374
        %p658 = pneg %p371
        %p659 = pneg %p395
        %p660 = pneg %p392
        %p661 = pneg %p421
        %p662 = pneg %p418
        %p663 = scmp.lt.s32.totalorder %s34, 1
        %s664 = scalar_select %p663, %s34, 1
        %s665 = smul.addr %s664, 8
        %s666 = smul.addr %s665, 8
        %s667 = scalar_lea.vmem %s16, %s666
        %p668 = pneg %p447
        %p669 = pneg %p444
        %p670 = scmp.lt.s32.totalorder %s34, 1
        %s671 = scalar_select %p670, %s34, 1
        %s672 = smul.addr %s671, 8
        %s673 = smul.addr %s672, 8
        %s674 = scalar_lea.vmem %s17, %s673
        %p675 = pneg %p473
        %p676 = pneg %p470
        %s677 = sand.u32 %s460, 1
        %s678 = scalar_lea.sflag [#allocation3], %s677
        %s679 = sand.u32 %s460, 1
        %s680 = smul.addr %s679, 32
        %s681 = scalar_lea.vmem [#allocation2], %s680
        %p682 = pneg %p499
        %p683 = pneg %p496
        %p684 = scmp.lt.s32.totalorder %s34, 1
        %s685 = scalar_select %p684, %s34, 1
        %s686 = smul.addr %s685, 8
        %s687 = smul.addr %s686, 8
        %s688 = scalar_lea.vmem %s19, %s687
        %p689 = scmp.lt.s32.totalorder %s34, 1
        %s690 = scalar_select %p689, %s34, 1
        %s691 = smul.addr %s690, 5
        %s692 = smul.addr %s691, 8
        %s693 = scalar_lea.vmem %s2, %s692
        %p694 = scmp.lt.s32.totalorder %s34, 1
        %s695 = scalar_select %p694, %s34, 1
        %s696 = smul.addr %s695, 8
        %s697 = smul.addr %s696, 8
        %s698 = scalar_lea.vmem %s3, %s697
        %p699 = scmp.lt.s32.totalorder %s34, 1
        %s700 = scalar_select %p699, %s34, 1
        %s701 = smul.addr %s700, 8
        %s702 = smul.addr %s701, 8
        %s703 = scalar_lea.vmem %s4, %s702
        %p704 = scmp.lt.s32.totalorder %s34, 1
        %s705 = scalar_select %p704, %s34, 1
        %s706 = smul.addr %s705, 4
        %s707 = scalar_lea.vmem %s5, %s706
        %p708 = scmp.lt.s32.totalorder %s34, 1
        %s709 = scalar_select %p708, %s34, 1
        %s710 = smul.addr %s709, 4
        %s711 = scalar_lea.vmem %s6, %s710
        %p712 = scmp.lt.s32.totalorder %s34, 1
        %s713 = scalar_select %p712, %s34, 1
        %s714 = smul.addr %s713, 2
        %s715 = smul.addr %s714, 8
        %s716 = scalar_lea.vmem %s7, %s715
        %p717 = scmp.lt.s32.totalorder %s34, 1
        %s718 = scalar_select %p717, %s34, 1
        %s719 = smul.addr %s718, 8
        %s720 = smul.addr %s719, 8
        %s721 = scalar_lea.vmem %s16, %s720
        %p722 = scmp.lt.s32.totalorder %s34, 1
        %s723 = scalar_select %p722, %s34, 1
        %s724 = smul.addr %s723, 8
        %s725 = smul.addr %s724, 8
        %s726 = scalar_lea.vmem %s17, %s725
        %p727 = scmp.lt.s32.totalorder %s34, 1
        %s728 = scalar_select %p727, %s34, 1
        %s729 = smul.addr %s728, 8
        %s730 = smul.addr %s729, 8
        %s731 = scalar_lea.vmem %s19, %s730
        %v732 = vld [vmem:[%s0] sm:$0xff]
        %v733 = vld [vmem:[%s0 + $0x8] sm:$0xff]
        %v734 = vld [vmem:[%s0 + $0x10] sm:$0xff]
        %v735 = vld [vmem:[%s0 + $0x18] sm:$0xff]
        %v736 = vld [vmem:[%s0 + $0x20] sm:$0xff]
        %v737 = vld [vmem:[%s0 + $0x28] sm:$0xff]
        %v738 = vld [vmem:[%s0 + $0x30] sm:$0xff]
        %v739 = vld [vmem:[%s0 + $0x38] sm:$0xff]
        %v740 = vld [vmem:[%s693] sm:$0xff]
        %v741 = vld [vmem:[%s693 + $0x8] sm:$0xff]
        %v742 = vld [vmem:[%s693 + $0x10] sm:$0xff]
        %v743 = vld [vmem:[%s693 + $0x18] sm:$0xff]
        %v744 = vld [vmem:[%s693 + $0x20] sm:$0xf]
        %v745 = vld [vmem:[%s1] sm:$0xff]
        %v746 = vld [vmem:[%s1 + $0x8] sm:$0xff]
        %v747 = vld [vmem:[%s1 + $0x10] sm:$0xff]
        %v748 = vld [vmem:[%s1 + $0x18] sm:$0xff]
        %v749 = vld [vmem:[%s1 + $0x20] sm:$0xff]
        %v750 = vld [vmem:[%s1 + $0x28] sm:$0xff]
        %v751 = vld [vmem:[%s1 + $0x30] sm:$0xff]
        %v752 = vld [vmem:[%s1 + $0x38] sm:$0xff]
        %vm753 = vcmask 293888
        %v755 = vsel %vm753, %v732, 0
        %v758 = vsel %vm753, %v733, 0
        %v761 = vsel %vm753, %v734, 0
        %v764 = vsel %vm753, %v735, 0
        %v767 = vsel %vm753, %v736, 0
        %v770 = vsel %vm753, %v737, 0
        %v773 = vsel %vm753, %v738, 0
        %v776 = vsel %vm753, %v739, 0
        %vm778 = vcmask 1043456
        %v780 = vsel %vm778, %v744, 0
        %782 = vmatprep.subr.mxu0 0.0
        %783 = vmatpush1.msra.mxu0 %v740
        %784 = vmatprep.subr.mxu0 0.0
        %785 = vmatpush1.msra.mxu0 %v741
        %786 = vmatprep.subr.mxu0 0.0
        %787 = vmatpush1.msra.mxu0 %v742
        %788 = vmatprep.subr.mxu0 0.0
        %789 = vmatpush1.msra.mxu0 %v743
        %790 = vmatprep.subr.mxu0 0.0
        %791 = vmatpush1.msra.mxu0 %v780
        %792 = vmatprep.subr.mxu0 0.0
        %793 = vmatpush1.msra.mxu0 0.0
        %794 = vmatprep.subr.mxu0 0.0
        %795 = vmatpush1.msra.mxu0 0.0
        %796 = vmatprep.subr.mxu0 0.0
        %797 = vmatpush1.msra.mxu0 0.0
        %798 = vmatprep.subr.mxu0 0.0
        %799 = vmatpush1.msra.mxu0 0.0
        %800 = vmatprep.subr.mxu0 0.0
        %801 = vmatpush1.msra.mxu0 0.0
        %802 = vmatprep.subr.mxu0 0.0
        %803 = vmatpush1.msra.mxu0 0.0
        %804 = vmatprep.subr.mxu0 0.0
        %805 = vmatpush1.msra.mxu0 0.0
        %806 = vmatprep.subr.mxu0 0.0
        %807 = vmatpush1.msra.mxu0 0.0
        %808 = vmatprep.subr.mxu0 0.0
        %809 = vmatpush1.msra.mxu0 0.0
        %810 = vmatprep.subr.mxu0 0.0
        %811 = vmatpush1.msra.mxu0 0.0
        %812 = vmatprep.subr.mxu0 0.0
        %813 = vmatpush1.msra.mxu0 0.0
        %814 = vmatprep.subr.mxu0 0.0
        %815 = vmatpush1.msra.mxu0 0.0
        %816 = vmatprep.subr.mxu0 0.0
        %817 = vmatpush1.msra.mxu0 0.0
        %818 = vmatprep.subr.mxu0 0.0
        %819 = vmatpush1.msra.mxu0 0.0
        %820 = vmatprep.subr.mxu0 0.0
        %821 = vmatpush1.msra.mxu0 0.0
        %822 = vmatprep.subr.mxu0 0.0
        %823 = vmatpush1.msra.mxu0 0.0
        %824 = vmatprep.subr.mxu0 0.0
        %825 = vmatpush1.msra.mxu0 0.0
        %826 = vmatprep.subr.mxu0 0.0
        %827 = vmatpush1.msra.mxu0 0.0
        %828 = vmatprep.subr.mxu0 0.0
        %829 = vmatpush1.msra.mxu0 0.0
        %830 = vmatprep.subr.mxu0 0.0
        %831 = vmatpush1.msra.mxu0 0.0
        %832 = vmatprep.subr.mxu0 0.0
        %833 = vmatpush1.msra.mxu0 0.0
        %834 = vmatprep.subr.mxu0 0.0
        %835 = vmatpush1.msra.mxu0 0.0
        %836 = vmatprep.subr.mxu0 0.0
        %837 = vmatpush1.msra.mxu0 0.0
        %838 = vmatprep.subr.mxu0 0.0
        %839 = vmatpush1.msra.mxu0 0.0
        %840 = vmatprep.subr.mxu0 0.0
        %841 = vmatpush1.msra.mxu0 0.0
        %842 = vmatprep.subr.mxu0 0.0
        %843 = vmatpush1.msra.mxu0 0.0
        %844 = vmatprep.subr.mxu0 0.0
        %845 = vmatpush1.msra.mxu0 0.0
        %846 = vmatprep.mubr.f32.mxu0 0.0
        %847 = vmatmul.mubr.f32.gmra.mrb[0].mxu0 %v755
        %v848 = vpop.f32.mrb[0].mxu0
        %v849 = vadd.f32 %v745, %v848
        %v850 = vpop.f32.mrb[0].mxu0
        %851 = vmatprep.mubr.f32.mxu0 0.0
        %852 = vmatmul.mubr.f32.gmra.mrb[0].mxu0 %v758
        %v853 = vpop.f32.mrb[0].mxu0
        %v854 = vadd.f32 %v746, %v853
        %v855 = vpop.f32.mrb[0].mxu0
        %856 = vmatprep.mubr.f32.mxu0 0.0
        %857 = vmatmul.mubr.f32.gmra.mrb[0].mxu0 %v761
        %v858 = vpop.f32.mrb[0].mxu0
        %v859 = vadd.f32 %v747, %v858
        %v860 = vpop.f32.mrb[0].mxu0
        %861 = vmatprep.mubr.f32.mxu0 0.0
        %862 = vmatmul.mubr.f32.gmra.mrb[0].mxu0 %v764
        %v863 = vpop.f32.mrb[0].mxu0
        %v864 = vadd.f32 %v748, %v863
        %v865 = vpop.f32.mrb[0].mxu0
        %866 = vmatprep.mubr.f32.mxu0 0.0
        %867 = vmatmul.mubr.f32.gmra.mrb[0].mxu0 %v767
        %v868 = vpop.f32.mrb[0].mxu0
        %v869 = vadd.f32 %v749, %v868
        %v870 = vpop.f32.mrb[0].mxu0
        %871 = vmatprep.mubr.f32.mxu0 0.0
        %872 = vmatmul.mubr.f32.gmra.mrb[0].mxu0 %v770
        %v873 = vpop.f32.mrb[0].mxu0
        %v874 = vadd.f32 %v750, %v873
        %v875 = vpop.f32.mrb[0].mxu0
        %876 = vmatprep.mubr.f32.mxu0 0.0
        %877 = vmatmul.mubr.f32.gmra.mrb[0].mxu0 %v773
        %v878 = vpop.f32.mrb[0].mxu0
        %v879 = vadd.f32 %v751, %v878
        %v880 = vpop.f32.mrb[0].mxu0
        %881 = vmatprep.mubr.f32.mxu0 0.0
        %882 = vmatmul.mubr.f32.gmra.mrb[0].mxu0 %v776
        %v883 = vpop.f32.mrb[0].mxu0
        %v884 = vadd.f32 %v752, %v883
        %v885 = vpop.f32.mrb[0].mxu0
        %886 = vdwg.mxu0
        %v887 = vld [vmem:[%s698] sm:$0xff]
        %v888 = vld [vmem:[%s698 + $0x8] sm:$0xff]
        %v889 = vld [vmem:[%s698 + $0x10] sm:$0xff]
        %v890 = vld [vmem:[%s698 + $0x18] sm:$0xff]
        %v891 = vld [vmem:[%s698 + $0x20] sm:$0xff]
        %v892 = vld [vmem:[%s698 + $0x28] sm:$0xff]
        %v893 = vld [vmem:[%s698 + $0x30] sm:$0xff]
        %v894 = vld [vmem:[%s698 + $0x38] sm:$0xff]
        %v895 = vadd.f32 %v887, %v849
        %v896 = vadd.f32 %v888, %v854
        %v897 = vadd.f32 %v889, %v859
        %v898 = vadd.f32 %v890, %v864
        %v899 = vadd.f32 %v891, %v869
        %v900 = vadd.f32 %v892, %v874
        %v901 = vadd.f32 %v893, %v879
        %v902 = vadd.f32 %v894, %v884
        %v903 = vld [vmem:[%s707] sm:$0xf]
        %905 = vset.pattern.permute.xlu0 0
        %906 = vperm.xlu0 %905, %v895
        %v907 = vpop.permute.xlu0 %906
        %910 = vset.pattern.permute.xlu0 0
        %911 = vperm.xlu0 %910, %v896
        %v912 = vpop.permute.xlu0 %911
        %915 = vset.pattern.permute.xlu0 0
        %916 = vperm.xlu0 %915, %v897
        %v917 = vpop.permute.xlu0 %916
        %920 = vset.pattern.permute.xlu0 0
        %921 = vperm.xlu0 %920, %v898
        %v922 = vpop.permute.xlu0 %921
        %925 = vset.pattern.permute.xlu0 0
        %926 = vperm.xlu0 %925, %v899
        %v927 = vpop.permute.xlu0 %926
        %930 = vset.pattern.permute.xlu0 0
        %931 = vperm.xlu0 %930, %v900
        %v932 = vpop.permute.xlu0 %931
        %935 = vset.pattern.permute.xlu0 0
        %936 = vperm.xlu0 %935, %v901
        %v937 = vpop.permute.xlu0 %936
        %940 = vset.pattern.permute.xlu0 0
        %941 = vperm.xlu0 %940, %v902
        %v942 = vpop.permute.xlu0 %941
        %v944 = vlaneseq
        %v945 = vshrl.u32 %v944, 7
        %v946 = vsub.s32 0, %v945
        %v947 = vrot.slane %v903, %v946
        %v948 = vmul.f32 %v907, %v947
        %v949 = vmul.f32 %v912, %v947
        %v950 = vmul.f32 %v917, %v947
        %v951 = vmul.f32 %v922, %v947
        %v952 = vmul.f32 %v927, %v947
        %v953 = vmul.f32 %v932, %v947
        %v954 = vmul.f32 %v937, %v947
        %v955 = vmul.f32 %v942, %v947
        %956 = vset.pattern.permute.xlu0 1
        %957 = vperm.xlu0 %956, %v895
        %v958 = vpop.permute.xlu0 %957
        %960 = vset.pattern.permute.xlu0 1
        %961 = vperm.xlu0 %960, %v896
        %v962 = vpop.permute.xlu0 %961
        %964 = vset.pattern.permute.xlu0 1
        %965 = vperm.xlu0 %964, %v897
        %v966 = vpop.permute.xlu0 %965
        %968 = vset.pattern.permute.xlu0 1
        %969 = vperm.xlu0 %968, %v898
        %v970 = vpop.permute.xlu0 %969
        %972 = vset.pattern.permute.xlu0 1
        %973 = vperm.xlu0 %972, %v899
        %v974 = vpop.permute.xlu0 %973
        %976 = vset.pattern.permute.xlu0 1
        %977 = vperm.xlu0 %976, %v900
        %v978 = vpop.permute.xlu0 %977
        %980 = vset.pattern.permute.xlu0 1
        %981 = vperm.xlu0 %980, %v901
        %v982 = vpop.permute.xlu0 %981
        %984 = vset.pattern.permute.xlu0 1
        %985 = vperm.xlu0 %984, %v902
        %v986 = vpop.permute.xlu0 %985
        %v988 = vlaneseq
        %v989 = vshrl.u32 %v988, 7
        %v990 = vsub.s32 1, %v989
        %v991 = vrot.slane %v903, %v990
        %v992 = vmul.f32 %v958, %v991
        %v993 = vmul.f32 %v962, %v991
        %v994 = vmul.f32 %v966, %v991
        %v995 = vmul.f32 %v970, %v991
        %v996 = vmul.f32 %v974, %v991
        %v997 = vmul.f32 %v978, %v991
        %v998 = vmul.f32 %v982, %v991
        %v999 = vmul.f32 %v986, %v991
        %v1000 = vadd.f32 %v948, %v992
        %v1001 = vadd.f32 %v949, %v993
        %v1002 = vadd.f32 %v950, %v994
        %v1003 = vadd.f32 %v951, %v995
        %v1004 = vadd.f32 %v952, %v996
        %v1005 = vadd.f32 %v953, %v997
        %v1006 = vadd.f32 %v954, %v998
        %v1007 = vadd.f32 %v955, %v999
        %1008 = vset.pattern.permute.xlu0 2
        %1009 = vperm.xlu0 %1008, %v895
        %v1010 = vpop.permute.xlu0 %1009
        %1012 = vset.pattern.permute.xlu0 2
        %1013 = vperm.xlu0 %1012, %v896
        %v1014 = vpop.permute.xlu0 %1013
        %1016 = vset.pattern.permute.xlu0 2
        %1017 = vperm.xlu0 %1016, %v897
        %v1018 = vpop.permute.xlu0 %1017
        %1020 = vset.pattern.permute.xlu0 2
        %1021 = vperm.xlu0 %1020, %v898
        %v1022 = vpop.permute.xlu0 %1021
        %1024 = vset.pattern.permute.xlu0 2
        %1025 = vperm.xlu0 %1024, %v899
        %v1026 = vpop.permute.xlu0 %1025
        %1028 = vset.pattern.permute.xlu0 2
        %1029 = vperm.xlu0 %1028, %v900
        %v1030 = vpop.permute.xlu0 %1029
        %1032 = vset.pattern.permute.xlu0 2
        %1033 = vperm.xlu0 %1032, %v901
        %v1034 = vpop.permute.xlu0 %1033
        %1036 = vset.pattern.permute.xlu0 2
        %1037 = vperm.xlu0 %1036, %v902
        %v1038 = vpop.permute.xlu0 %1037
        %v1040 = vlaneseq
        %v1041 = vshrl.u32 %v1040, 7
        %v1042 = vsub.s32 2, %v1041
        %v1043 = vrot.slane %v903, %v1042
        %v1044 = vmul.f32 %v1010, %v1043
        %v1045 = vmul.f32 %v1014, %v1043
        %v1046 = vmul.f32 %v1018, %v1043
        %v1047 = vmul.f32 %v1022, %v1043
        %v1048 = vmul.f32 %v1026, %v1043
        %v1049 = vmul.f32 %v1030, %v1043
        %v1050 = vmul.f32 %v1034, %v1043
        %v1051 = vmul.f32 %v1038, %v1043
        %v1052 = vadd.f32 %v1000, %v1044
        %v1053 = vadd.f32 %v1001, %v1045
        %v1054 = vadd.f32 %v1002, %v1046
        %v1055 = vadd.f32 %v1003, %v1047
        %v1056 = vadd.f32 %v1004, %v1048
        %v1057 = vadd.f32 %v1005, %v1049
        %v1058 = vadd.f32 %v1006, %v1050
        %v1059 = vadd.f32 %v1007, %v1051
        %v1060 = vlaneseq
        %v1061 = vshrl.u32 %v1060, 7
        %v1062 = vsub.s32 3, %v1061
        %v1063 = vrot.slane %v903, %v1062
        %v1064 = vadd.f32 %v1052, %v1063
        %v1065 = vadd.f32 %v1053, %v1063
        %v1066 = vadd.f32 %v1054, %v1063
        %v1067 = vadd.f32 %v1055, %v1063
        %v1068 = vadd.f32 %v1056, %v1063
        %v1069 = vadd.f32 %v1057, %v1063
        %v1070 = vadd.f32 %v1058, %v1063
        %v1071 = vadd.f32 %v1059, %v1063
        %v1072 = vld [vmem:[%s703] sm:$0xff]
        %v1073 = vld [vmem:[%s703 + $0x8] sm:$0xff]
        %v1074 = vld [vmem:[%s703 + $0x10] sm:$0xff]
        %v1075 = vld [vmem:[%s703 + $0x18] sm:$0xff]
        %v1076 = vld [vmem:[%s703 + $0x20] sm:$0xff]
        %v1077 = vld [vmem:[%s703 + $0x28] sm:$0xff]
        %v1078 = vld [vmem:[%s703 + $0x30] sm:$0xff]
        %v1079 = vld [vmem:[%s703 + $0x38] sm:$0xff]
        %v1080 = vadd.f32 %v1072, %v849
        %v1081 = vadd.f32 %v1073, %v854
        %v1082 = vadd.f32 %v1074, %v859
        %v1083 = vadd.f32 %v1075, %v864
        %v1084 = vadd.f32 %v1076, %v869
        %v1085 = vadd.f32 %v1077, %v874
        %v1086 = vadd.f32 %v1078, %v879
        %v1087 = vadd.f32 %v1079, %v884
        %v1088 = vld [vmem:[%s711] sm:$0xf]
        %1090 = vset.pattern.permute.xlu0 0
        %1091 = vperm.xlu0 %1090, %v1080
        %v1092 = vpop.permute.xlu0 %1091
        %1095 = vset.pattern.permute.xlu0 0
        %1096 = vperm.xlu0 %1095, %v1081
        %v1097 = vpop.permute.xlu0 %1096
        %1100 = vset.pattern.permute.xlu0 0
        %1101 = vperm.xlu0 %1100, %v1082
        %v1102 = vpop.permute.xlu0 %1101
        %1105 = vset.pattern.permute.xlu0 0
        %1106 = vperm.xlu0 %1105, %v1083
        %v1107 = vpop.permute.xlu0 %1106
        %1110 = vset.pattern.permute.xlu0 0
        %1111 = vperm.xlu0 %1110, %v1084
        %v1112 = vpop.permute.xlu0 %1111
        %1115 = vset.pattern.permute.xlu0 0
        %1116 = vperm.xlu0 %1115, %v1085
        %v1117 = vpop.permute.xlu0 %1116
        %1120 = vset.pattern.permute.xlu0 0
        %1121 = vperm.xlu0 %1120, %v1086
        %v1122 = vpop.permute.xlu0 %1121
        %1125 = vset.pattern.permute.xlu0 0
        %1126 = vperm.xlu0 %1125, %v1087
        %v1127 = vpop.permute.xlu0 %1126
        %v1129 = vlaneseq
        %v1130 = vshrl.u32 %v1129, 7
        %v1131 = vsub.s32 0, %v1130
        %v1132 = vrot.slane %v1088, %v1131
        %v1133 = vmul.f32 %v1092, %v1132
        %v1134 = vmul.f32 %v1097, %v1132
        %v1135 = vmul.f32 %v1102, %v1132
        %v1136 = vmul.f32 %v1107, %v1132
        %v1137 = vmul.f32 %v1112, %v1132
        %v1138 = vmul.f32 %v1117, %v1132
        %v1139 = vmul.f32 %v1122, %v1132
        %v1140 = vmul.f32 %v1127, %v1132
        %1141 = vset.pattern.permute.xlu0 1
        %1142 = vperm.xlu0 %1141, %v1080
        %v1143 = vpop.permute.xlu0 %1142
        %1145 = vset.pattern.permute.xlu0 1
        %1146 = vperm.xlu0 %1145, %v1081
        %v1147 = vpop.permute.xlu0 %1146
        %1149 = vset.pattern.permute.xlu0 1
        %1150 = vperm.xlu0 %1149, %v1082
        %v1151 = vpop.permute.xlu0 %1150
        %1153 = vset.pattern.permute.xlu0 1
        %1154 = vperm.xlu0 %1153, %v1083
        %v1155 = vpop.permute.xlu0 %1154
        %1157 = vset.pattern.permute.xlu0 1
        %1158 = vperm.xlu0 %1157, %v1084
        %v1159 = vpop.permute.xlu0 %1158
        %1161 = vset.pattern.permute.xlu0 1
        %1162 = vperm.xlu0 %1161, %v1085
        %v1163 = vpop.permute.xlu0 %1162
        %1165 = vset.pattern.permute.xlu0 1
        %1166 = vperm.xlu0 %1165, %v1086
        %v1167 = vpop.permute.xlu0 %1166
        %1169 = vset.pattern.permute.xlu0 1
        %1170 = vperm.xlu0 %1169, %v1087
        %v1171 = vpop.permute.xlu0 %1170
        %v1173 = vlaneseq
        %v1174 = vshrl.u32 %v1173, 7
        %v1175 = vsub.s32 1, %v1174
        %v1176 = vrot.slane %v1088, %v1175
        %v1177 = vmul.f32 %v1143, %v1176
        %v1178 = vmul.f32 %v1147, %v1176
        %v1179 = vmul.f32 %v1151, %v1176
        %v1180 = vmul.f32 %v1155, %v1176
        %v1181 = vmul.f32 %v1159, %v1176
        %v1182 = vmul.f32 %v1163, %v1176
        %v1183 = vmul.f32 %v1167, %v1176
        %v1184 = vmul.f32 %v1171, %v1176
        %v1185 = vadd.f32 %v1133, %v1177
        %v1186 = vadd.f32 %v1134, %v1178
        %v1187 = vadd.f32 %v1135, %v1179
        %v1188 = vadd.f32 %v1136, %v1180
        %v1189 = vadd.f32 %v1137, %v1181
        %v1190 = vadd.f32 %v1138, %v1182
        %v1191 = vadd.f32 %v1139, %v1183
        %v1192 = vadd.f32 %v1140, %v1184
        %1193 = vset.pattern.permute.xlu0 2
        %1194 = vperm.xlu0 %1193, %v1080
        %v1195 = vpop.permute.xlu0 %1194
        %1197 = vset.pattern.permute.xlu0 2
        %1198 = vperm.xlu0 %1197, %v1081
        %v1199 = vpop.permute.xlu0 %1198
        %1201 = vset.pattern.permute.xlu0 2
        %1202 = vperm.xlu0 %1201, %v1082
        %v1203 = vpop.permute.xlu0 %1202
        %1205 = vset.pattern.permute.xlu0 2
        %1206 = vperm.xlu0 %1205, %v1083
        %v1207 = vpop.permute.xlu0 %1206
        %1209 = vset.pattern.permute.xlu0 2
        %1210 = vperm.xlu0 %1209, %v1084
        %v1211 = vpop.permute.xlu0 %1210
        %1213 = vset.pattern.permute.xlu0 2
        %1214 = vperm.xlu0 %1213, %v1085
        %v1215 = vpop.permute.xlu0 %1214
        %1217 = vset.pattern.permute.xlu0 2
        %1218 = vperm.xlu0 %1217, %v1086
        %v1219 = vpop.permute.xlu0 %1218
        %1221 = vset.pattern.permute.xlu0 2
        %1222 = vperm.xlu0 %1221, %v1087
        %v1223 = vpop.permute.xlu0 %1222
        %v1225 = vlaneseq
        %v1226 = vshrl.u32 %v1225, 7
        %v1227 = vsub.s32 2, %v1226
        %v1228 = vrot.slane %v1088, %v1227
        %v1229 = vmul.f32 %v1195, %v1228
        %v1230 = vmul.f32 %v1199, %v1228
        %v1231 = vmul.f32 %v1203, %v1228
        %v1232 = vmul.f32 %v1207, %v1228
        %v1233 = vmul.f32 %v1211, %v1228
        %v1234 = vmul.f32 %v1215, %v1228
        %v1235 = vmul.f32 %v1219, %v1228
        %v1236 = vmul.f32 %v1223, %v1228
        %v1237 = vadd.f32 %v1185, %v1229
        %v1238 = vadd.f32 %v1186, %v1230
        %v1239 = vadd.f32 %v1187, %v1231
        %v1240 = vadd.f32 %v1188, %v1232
        %v1241 = vadd.f32 %v1189, %v1233
        %v1242 = vadd.f32 %v1190, %v1234
        %v1243 = vadd.f32 %v1191, %v1235
        %v1244 = vadd.f32 %v1192, %v1236
        %v1245 = vlaneseq
        %v1246 = vshrl.u32 %v1245, 7
        %v1247 = vsub.s32 3, %v1246
        %v1248 = vrot.slane %v1088, %v1247
        %v1249 = vadd.f32 %v1237, %v1248
        %v1250 = vadd.f32 %v1238, %v1248
        %v1251 = vadd.f32 %v1239, %v1248
        %v1252 = vadd.f32 %v1240, %v1248
        %v1253 = vadd.f32 %v1241, %v1248
        %v1254 = vadd.f32 %v1242, %v1248
        %v1255 = vadd.f32 %v1243, %v1248
        %v1256 = vadd.f32 %v1244, %v1248
        %vm1257 = vcmask 23552
        %1258 = vst.msk [vmem:[%s721] sm:$0xff] %vm1257, %v1064
        %1259 = vst.msk [vmem:[%s721 + $0x8] sm:$0xff] %vm1257, %v1065
        %1260 = vst.msk [vmem:[%s721 + $0x10] sm:$0xff] %vm1257, %v1066
        %1261 = vst.msk [vmem:[%s721 + $0x18] sm:$0xff] %vm1257, %v1067
        %1262 = vst.msk [vmem:[%s721 + $0x20] sm:$0xff] %vm1257, %v1068
        %1263 = vst.msk [vmem:[%s721 + $0x28] sm:$0xff] %vm1257, %v1069
        %1264 = vst.msk [vmem:[%s721 + $0x30] sm:$0xff] %vm1257, %v1070
        %1265 = vst.msk [vmem:[%s721 + $0x38] sm:$0xff] %vm1257, %v1071
        %1266 = vst.msk [vmem:[%s726] sm:$0xff] %vm1257, %v1249
        %1267 = vst.msk [vmem:[%s726 + $0x8] sm:$0xff] %vm1257, %v1250
        %1268 = vst.msk [vmem:[%s726 + $0x10] sm:$0xff] %vm1257, %v1251
        %1269 = vst.msk [vmem:[%s726 + $0x18] sm:$0xff] %vm1257, %v1252
        %1270 = vst.msk [vmem:[%s726 + $0x20] sm:$0xff] %vm1257, %v1253
        %1271 = vst.msk [vmem:[%s726 + $0x28] sm:$0xff] %vm1257, %v1254
        %1272 = vst.msk [vmem:[%s726 + $0x30] sm:$0xff] %vm1257, %v1255
        %1273 = vst.msk [vmem:[%s726 + $0x38] sm:$0xff] %vm1257, %v1256
        %v1274 = vld [vmem:[%s11] sm:$0xff]
        %v1275 = vld [vmem:[%s11 + $0x8] sm:$0xff]
        %vm1276 = vcmask 523264
        %v1278 = vsel %vm1276, %v1274, 0
        %v1281 = vsel %vm1276, %v1275, 0
        %1283 = vmatprep.subr.mxu0 0.0
        %1284 = vmatpush1.msra.mxu0 %v1064
        %1285 = vmatprep.subr.mxu0 0.0
        %1286 = vmatpush1.msra.mxu0 %v1065
        %1287 = vmatprep.subr.mxu0 0.0
        %1288 = vmatpush1.msra.mxu0 %v1066
        %1289 = vmatprep.subr.mxu0 0.0
        %1290 = vmatpush1.msra.mxu0 %v1067
        %1291 = vmatprep.subr.mxu0 0.0
        %1292 = vmatpush1.msra.mxu0 %v1068
        %1293 = vmatprep.subr.mxu0 0.0
        %1294 = vmatpush1.msra.mxu0 %v1069
        %1295 = vmatprep.subr.mxu0 0.0
        %1296 = vmatpush1.msra.mxu0 %v1070
        %1297 = vmatprep.subr.mxu0 0.0
        %1298 = vmatpush1.msra.mxu0 %v1071
        %1299 = vmatprep.subr.mxu0 0.0
        %1300 = vmatpush1.msra.mxu0 0.0
        %1301 = vmatprep.subr.mxu0 0.0
        %1302 = vmatpush1.msra.mxu0 0.0
        %1303 = vmatprep.subr.mxu0 0.0
        %1304 = vmatpush1.msra.mxu0 0.0
        %1305 = vmatprep.subr.mxu0 0.0
        %1306 = vmatpush1.msra.mxu0 0.0
        %1307 = vmatprep.subr.mxu0 0.0
        %1308 = vmatpush1.msra.mxu0 0.0
        %1309 = vmatprep.subr.mxu0 0.0
        %1310 = vmatpush1.msra.mxu0 0.0
        %1311 = vmatprep.subr.mxu0 0.0
        %1312 = vmatpush1.msra.mxu0 0.0
        %1313 = vmatprep.subr.mxu0 0.0
        %1314 = vmatpush1.msra.mxu0 0.0
        %1315 = vmatprep.subr.mxu0 0.0
        %1316 = vmatpush1.msra.mxu0 0.0
        %1317 = vmatprep.subr.mxu0 0.0
        %1318 = vmatpush1.msra.mxu0 0.0
        %1319 = vmatprep.subr.mxu0 0.0
        %1320 = vmatpush1.msra.mxu0 0.0
        %1321 = vmatprep.subr.mxu0 0.0
        %1322 = vmatpush1.msra.mxu0 0.0
        %1323 = vmatprep.subr.mxu0 0.0
        %1324 = vmatpush1.msra.mxu0 0.0
        %1325 = vmatprep.subr.mxu0 0.0
        %1326 = vmatpush1.msra.mxu0 0.0
        %1327 = vmatprep.subr.mxu0 0.0
        %1328 = vmatpush1.msra.mxu0 0.0
        %1329 = vmatprep.subr.mxu0 0.0
        %1330 = vmatpush1.msra.mxu0 0.0
        %1331 = vmatprep.subr.mxu0 0.0
        %1332 = vmatpush1.msra.mxu0 0.0
        %1333 = vmatprep.subr.mxu0 0.0
        %1334 = vmatpush1.msra.mxu0 0.0
        %1335 = vmatprep.subr.mxu0 0.0
        %1336 = vmatpush1.msra.mxu0 0.0
        %1337 = vmatprep.subr.mxu0 0.0
        %1338 = vmatpush1.msra.mxu0 0.0
        %1339 = vmatprep.subr.mxu0 0.0
        %1340 = vmatpush1.msra.mxu0 0.0
        %1341 = vmatprep.subr.mxu0 0.0
        %1342 = vmatpush1.msra.mxu0 0.0
        %1343 = vmatprep.subr.mxu0 0.0
        %1344 = vmatpush1.msra.mxu0 0.0
        %1345 = vmatprep.subr.mxu0 0.0
        %1346 = vmatpush1.msra.mxu0 0.0
        %1347 = vmatprep.mubr.f32.mxu0 0.0
        %1348 = vmatmul.mubr.f32.gmra.mrb[0].mxu0 %v1278
        %v1349 = vpop.f32.mrb[0].mxu0
        %v1350 = vadd.f32 0.0, %v1349
        %v1351 = vpop.f32.mrb[0].mxu0
        %1352 = vmatprep.mubr.f32.mxu0 0.0
        %1353 = vmatmul.mubr.f32.gmra.mrb[0].mxu0 %v1281
        %v1354 = vpop.f32.mrb[0].mxu0
        %v1355 = vadd.f32 0.0, %v1354
        %v1356 = vpop.f32.mrb[0].mxu0
        %1357 = vdwg.mxu0
        %v1358 = vld [vmem:[%s15] sm:$0x1]
        %v1359 = vld [vmem:[%s15 + $0x1] sm:$0x1]
        %v1360 = vld [vmem:[%s15 + $0x2] sm:$0x1]
        %v1361 = vld [vmem:[%s15 + $0x3] sm:$0x1]
        %v1362 = vmul.f32 %v1350, 0.5
        %v1363 = vmul.f32 %v1355, 0.5
        %v1364 = vadd.f32 %v1362, 0.5
        %v1365 = vadd.f32 %v1363, 0.5
        %1367 = vset.pattern.permute.xlu0 0
        %1368 = vperm.xlu0 %1367, %v1364
        %v1369 = vpop.permute.xlu0 %1368
        %1372 = vset.pattern.permute.xlu0 0
        %1373 = vperm.xlu0 %1372, %v1365
        %v1374 = vpop.permute.xlu0 %1373
        %v1376 = vlaneseq
        %v1377 = vshrl.u32 %v1376, 7
        %v1378 = vsub.s32 0, %v1377
        %v1379 = vrot.slane %v1358, %v1378
        %v1380 = vmul.f32 %v1369, %v1379
        %v1381 = vmul.f32 %v1374, %v1379
        %1382 = vset.pattern.permute.xlu0 1
        %1383 = vperm.xlu0 %1382, %v1364
        %v1384 = vpop.permute.xlu0 %1383
        %1386 = vset.pattern.permute.xlu0 1
        %1387 = vperm.xlu0 %1386, %v1365
        %v1388 = vpop.permute.xlu0 %1387
        %v1390 = vlaneseq
        %v1391 = vshrl.u32 %v1390, 7
        %v1392 = vsub.s32 0, %v1391
        %v1393 = vrot.slane %v1359, %v1392
        %v1394 = vmul.f32 %v1384, %v1393
        %v1395 = vmul.f32 %v1388, %v1393
        %v1396 = vadd.f32 %v1380, %v1394
        %v1397 = vadd.f32 %v1381, %v1395
        %v1398 = vlaneseq
        %v1399 = vshrl.u32 %v1398, 7
        %v1400 = vsub.s32 0, %v1399
        %v1401 = vrot.slane %v1361, %v1400
        %v1402 = vadd.f32 %v1396, %v1401
        %v1403 = vadd.f32 %v1397, %v1401
        %v1404 = vand.u32 2147483647, %v1402
        %vm1405 = vcmp.le.f32.partialorder %v1404, 0.7853982
        %vm1406 = vcmp.lt.s32.totalorder %v1402, 0
        %v1407 = vand.u32 %v1402, 2139095040
        %v1408 = vshrl.u32 %v1407, 23
        %v1409 = vsub.s32 %v1408, 127
        %v1410 = vand.u32 2147483647, %v1402
        %v1411 = vand.u32 %v1410, 8388607
        %v1412 = vor.u32 %v1411, 8388608
        %v1413 = vsub.s32 0, %v1412
        %v1414 = vadd.s32 %v1409, 1
        %vm1415 = vcmp.gt.s32.totalorder %v1414, 0
        %v1416 = vsel %vm1415, %v1414, 0
        %v1417 = vshrl.u32 %v1416, 5
        %v1418 = vand.u32 %v1416, 31
        %v1419 = vsub.s32 32, %v1418
        %v1420 = vshrl.u32 683565275, %v1419
        %v1421 = vshll.u32 683565275, %v1418
        %v1422 = vshrl.u32 2475754826, %v1419
        %v1423 = vor.u32 %v1421, %v1422
        %v1424 = vshll.u32 2475754826, %v1418
        %v1425 = vshrl.u32 2131351028, %v1419
        %v1426 = vor.u32 %v1424, %v1425
        %v1427 = vshll.u32 2131351028, %v1418
        %v1428 = vshrl.u32 2102212464, %v1419
        %v1429 = vor.u32 %v1427, %v1428
        %v1430 = vshll.u32 2102212464, %v1418
        %v1431 = vshrl.u32 920167782, %v1419
        %v1432 = vor.u32 %v1430, %v1431
        %v1433 = vshll.u32 920167782, %v1418
        %v1434 = vshrl.u32 1326507024, %v1419
        %v1435 = vor.u32 %v1433, %v1434
        %vm1436 = vcmp.lt.s32.totalorder %v1417, 1
        %vm1437 = vcmp.lt.s32.totalorder %v1417, 2
        %vm1438 = vcmp.lt.s32.totalorder %v1417, 3
        %vm1439 = vcmp.lt.s32.totalorder %v1417, 4
        %v1440 = vsel %vm1436, %v1420, %v1423
        %v1441 = vsel %vm1439, %v1429, 2102212464
        %v1442 = vsel %vm1438, %v1426, %v1441
        %v1443 = vsel %vm1437, %v1440, %v1442
        %v1444 = vsel %vm1436, %v1423, %v1426
        %v1445 = vsel %vm1439, %v1432, 920167782
        %v1446 = vsel %vm1438, %v1429, %v1445
        %v1447 = vsel %vm1437, %v1444, %v1446
        %v1448 = vsel %vm1436, %v1426, %v1429
        %v1449 = vsel %vm1439, %v1435, 1326507024
        %v1450 = vsel %vm1438, %v1432, %v1449
        %v1451 = vsel %vm1437, %v1448, %v1450
        %v1452 = vshll.u32 %v1412, 8
        %v1453 = vmul.u32.u64.compose %v1452, %v1451
        %v1454 = vextract.low.u32 %v1453
        %v1455 = vextract.high.u32 %v1453
        %v1456 = vmul.u32.u64.compose %v1452, %v1447
        %v1457 = vextract.low.u32 %v1456
        %v1458 = vextract.high.u32 %v1456
        %v1459 = vmul.u32 %v1452, %v1443
        %v1460 = vadd.s32 %v1455, %v1457
        %vm1461 = vc.u32 %v1455, %v1457
        %v1462 = vadd.s32 %v1458, 1
        %v1463 = vsel %vm1461, %v1462, %v1458
        %v1464 = vadd.s32 %v1459, %v1463
        %v1465 = vadd.s32 %v1464, 536870912
        %v1466 = vshrl.u32 %v1465, 30
        %v1467 = vshll.u32 %v1466, 30
        %v1468 = vsub.s32 %v1464, %v1467
        %vm1469 = vcmp.lt.s32.totalorder %v1468, 0
        %v1470 = vsub.s32 0, %v1468
        %v1471 = vsel %vm1469, %v1470, %v1468
        %v1472 = vclz %v1471
        %v1473 = vsub.s32 %v1472, 2
        %vm1474 = vcmp.gt.s32.totalorder 0, %v1473
        %v1475 = vsel %vm1474, 0, %v1473
        %v1476 = vsub.s32 32, %v1475
        %v1477 = vshll.u32 %v1468, %v1475
        %v1478 = vshrl.u32 %v1460, %v1476
        %v1479 = vor.u32 %v1477, %v1478
        %v1480 = vsub.s32 4294967266, %v1475
        %v1481 = vadd.s32 %v1480, 127
        %v1482 = vshll.u32 %v1481, 23
        %v1483 = vor.u32 4788187, %v1482
        %v1484 = vand.u32 2147483647, %v1483
        %v1486 = vcvt.s32.f32 %v1479
        %v1487 = vmul.f32 %v1486, %v1484
        %v1488 = vxor.u32 %v1487, 2147483648
        %v1489 = vsel %vm1406, %v1488, %v1487
        %v1490 = vsub.s32 4, %v1466
        %v1491 = vsel %vm1406, %v1490, %v1466
        %v1492 = vsel %vm1405, %v1402, %v1489
        %v1493 = vsel %vm1405, 0, %v1491
        %v1494 = vcosq.f32.pop %v1492
        %v1495 = vsinq.f32.pop %v1492
        %vm1496 = vweird.f32 %v1402
        %v1497 = vadd.s32 %v1493, 3
        %v1498 = vand.u32 %v1497, 3
        %vm1499 = vcmp.lt.s32.totalorder %v1498, 2
        %vm1500 = vcmp.eq.s32.totalorder %v1498, 0
        %v1501 = vxor.u32 %v1495, 2147483648
        %v1502 = vsel %vm1500, %v1494, %v1501
        %vm1503 = vcmp.eq.s32.totalorder %v1498, 2
        %v1504 = vxor.u32 %v1494, 2147483648
        %v1505 = vsel %vm1503, %v1504, %v1495
        %v1506 = vsel %vm1499, %v1502, %v1505
        %v1507 = vsel %vm1496, nan, %v1506
        %v1508 = vand.u32 2147483647, %v1403
        %vm1509 = vcmp.le.f32.partialorder %v1508, 0.7853982
        %vm1510 = vcmp.lt.s32.totalorder %v1403, 0
        %v1511 = vand.u32 %v1403, 2139095040
        %v1512 = vshrl.u32 %v1511, 23
        %v1513 = vsub.s32 %v1512, 127
        %v1514 = vand.u32 2147483647, %v1403
        %v1515 = vand.u32 %v1514, 8388607
        %v1516 = vor.u32 %v1515, 8388608
        %v1517 = vsub.s32 0, %v1516
        %v1518 = vadd.s32 %v1513, 1
        %vm1519 = vcmp.gt.s32.totalorder %v1518, 0
        %v1520 = vsel %vm1519, %v1518, 0
        %v1521 = vshrl.u32 %v1520, 5
        %v1522 = vand.u32 %v1520, 31
        %v1523 = vsub.s32 32, %v1522
        %v1524 = vshrl.u32 683565275, %v1523
        %v1525 = vshll.u32 683565275, %v1522
        %v1526 = vshrl.u32 2475754826, %v1523
        %v1527 = vor.u32 %v1525, %v1526
        %v1528 = vshll.u32 2475754826, %v1522
        %v1529 = vshrl.u32 2131351028, %v1523
        %v1530 = vor.u32 %v1528, %v1529
        %v1531 = vshll.u32 2131351028, %v1522
        %v1532 = vshrl.u32 2102212464, %v1523
        %v1533 = vor.u32 %v1531, %v1532
        %v1534 = vshll.u32 2102212464, %v1522
        %v1535 = vshrl.u32 920167782, %v1523
        %v1536 = vor.u32 %v1534, %v1535
        %v1537 = vshll.u32 920167782, %v1522
        %v1538 = vshrl.u32 1326507024, %v1523
        %v1539 = vor.u32 %v1537, %v1538
        %vm1540 = vcmp.lt.s32.totalorder %v1521, 1
        %vm1541 = vcmp.lt.s32.totalorder %v1521, 2
        %vm1542 = vcmp.lt.s32.totalorder %v1521, 3
        %vm1543 = vcmp.lt.s32.totalorder %v1521, 4
        %v1544 = vsel %vm1540, %v1524, %v1527
        %v1545 = vsel %vm1543, %v1533, 2102212464
        %v1546 = vsel %vm1542, %v1530, %v1545
        %v1547 = vsel %vm1541, %v1544, %v1546
        %v1548 = vsel %vm1540, %v1527, %v1530
        %v1549 = vsel %vm1543, %v1536, 920167782
        %v1550 = vsel %vm1542, %v1533, %v1549
        %v1551 = vsel %vm1541, %v1548, %v1550
        %v1552 = vsel %vm1540, %v1530, %v1533
        %v1553 = vsel %vm1543, %v1539, 1326507024
        %v1554 = vsel %vm1542, %v1536, %v1553
        %v1555 = vsel %vm1541, %v1552, %v1554
        %v1556 = vshll.u32 %v1516, 8
        %v1557 = vmul.u32.u64.compose %v1556, %v1555
        %v1558 = vextract.low.u32 %v1557
        %v1559 = vextract.high.u32 %v1557
        %v1560 = vmul.u32.u64.compose %v1556, %v1551
        %v1561 = vextract.low.u32 %v1560
        %v1562 = vextract.high.u32 %v1560
        %v1563 = vmul.u32 %v1556, %v1547
        %v1564 = vadd.s32 %v1559, %v1561
        %vm1565 = vc.u32 %v1559, %v1561
        %v1566 = vadd.s32 %v1562, 1
        %v1567 = vsel %vm1565, %v1566, %v1562
        %v1568 = vadd.s32 %v1563, %v1567
        %v1569 = vadd.s32 %v1568, 536870912
        %v1570 = vshrl.u32 %v1569, 30
        %v1571 = vshll.u32 %v1570, 30
        %v1572 = vsub.s32 %v1568, %v1571
        %vm1573 = vcmp.lt.s32.totalorder %v1572, 0
        %v1574 = vsub.s32 0, %v1572
        %v1575 = vsel %vm1573, %v1574, %v1572
        %v1576 = vclz %v1575
        %v1577 = vsub.s32 %v1576, 2
        %vm1578 = vcmp.gt.s32.totalorder 0, %v1577
        %v1579 = vsel %vm1578, 0, %v1577
        %v1580 = vsub.s32 32, %v1579
        %v1581 = vshll.u32 %v1572, %v1579
        %v1582 = vshrl.u32 %v1564, %v1580
        %v1583 = vor.u32 %v1581, %v1582
        %v1584 = vsub.s32 4294967266, %v1579
        %v1585 = vadd.s32 %v1584, 127
        %v1586 = vshll.u32 %v1585, 23
        %v1587 = vor.u32 4788187, %v1586
        %v1588 = vand.u32 2147483647, %v1587
        %v1590 = vcvt.s32.f32 %v1583
        %v1591 = vmul.f32 %v1590, %v1588
        %v1592 = vxor.u32 %v1591, 2147483648
        %v1593 = vsel %vm1510, %v1592, %v1591
        %v1594 = vsub.s32 4, %v1570
        %v1595 = vsel %vm1510, %v1594, %v1570
        %v1596 = vsel %vm1509, %v1403, %v1593
        %v1597 = vsel %vm1509, 0, %v1595
        %v1598 = vcosq.f32.pop %v1596
        %v1599 = vsinq.f32.pop %v1596
        %vm1600 = vweird.f32 %v1403
        %v1601 = vadd.s32 %v1597, 3
        %v1602 = vand.u32 %v1601, 3
        %vm1603 = vcmp.lt.s32.totalorder %v1602, 2
        %vm1604 = vcmp.eq.s32.totalorder %v1602, 0
        %v1605 = vxor.u32 %v1599, 2147483648
        %v1606 = vsel %vm1604, %v1598, %v1605
        %vm1607 = vcmp.eq.s32.totalorder %v1602, 2
        %v1608 = vxor.u32 %v1598, 2147483648
        %v1609 = vsel %vm1607, %v1608, %v1599
        %v1610 = vsel %vm1603, %v1606, %v1609
        %v1611 = vsel %vm1600, nan, %v1610
        %1612 = vset.pattern.permute.xlu0 2
        %1613 = vperm.xlu0 %1612, %v1364
        %v1614 = vpop.permute.xlu0 %1613
        %1616 = vset.pattern.permute.xlu0 2
        %1617 = vperm.xlu0 %1616, %v1365
        %v1618 = vpop.permute.xlu0 %1617
        %v1620 = vlaneseq
        %v1621 = vshrl.u32 %v1620, 7
        %v1622 = vsub.s32 0, %v1621
        %v1623 = vrot.slane %v1360, %v1622
        %v1624 = vmul.f32 %v1614, %v1623
        %v1625 = vmul.f32 %v1618, %v1623
        %v1626 = vadd.f32 %v1624, %v1401
        %v1627 = vadd.f32 %v1625, %v1401
        %v1628 = vand.u32 2147483647, %v1626
        %vm1629 = vcmp.le.f32.partialorder %v1628, 0.7853982
        %vm1630 = vcmp.lt.s32.totalorder %v1626, 0
        %v1631 = vand.u32 %v1626, 2139095040
        %v1632 = vshrl.u32 %v1631, 23
        %v1633 = vsub.s32 %v1632, 127
        %v1634 = vand.u32 2147483647, %v1626
        %v1635 = vand.u32 %v1634, 8388607
        %v1636 = vor.u32 %v1635, 8388608
        %v1637 = vsub.s32 0, %v1636
        %v1638 = vadd.s32 %v1633, 1
        %vm1639 = vcmp.gt.s32.totalorder %v1638, 0
        %v1640 = vsel %vm1639, %v1638, 0
        %v1641 = vshrl.u32 %v1640, 5
        %v1642 = vand.u32 %v1640, 31
        %v1643 = vsub.s32 32, %v1642
        %v1644 = vshrl.u32 683565275, %v1643
        %v1645 = vshll.u32 683565275, %v1642
        %v1646 = vshrl.u32 2475754826, %v1643
        %v1647 = vor.u32 %v1645, %v1646
        %v1648 = vshll.u32 2475754826, %v1642
        %v1649 = vshrl.u32 2131351028, %v1643
        %v1650 = vor.u32 %v1648, %v1649
        %v1651 = vshll.u32 2131351028, %v1642
        %v1652 = vshrl.u32 2102212464, %v1643
        %v1653 = vor.u32 %v1651, %v1652
        %v1654 = vshll.u32 2102212464, %v1642
        %v1655 = vshrl.u32 920167782, %v1643
        %v1656 = vor.u32 %v1654, %v1655
        %v1657 = vshll.u32 920167782, %v1642
        %v1658 = vshrl.u32 1326507024, %v1643
        %v1659 = vor.u32 %v1657, %v1658
        %vm1660 = vcmp.lt.s32.totalorder %v1641, 1
        %vm1661 = vcmp.lt.s32.totalorder %v1641, 2
        %vm1662 = vcmp.lt.s32.totalorder %v1641, 3
        %vm1663 = vcmp.lt.s32.totalorder %v1641, 4
        %v1664 = vsel %vm1660, %v1644, %v1647
        %v1665 = vsel %vm1663, %v1653, 2102212464
        %v1666 = vsel %vm1662, %v1650, %v1665
        %v1667 = vsel %vm1661, %v1664, %v1666
        %v1668 = vsel %vm1660, %v1647, %v1650
        %v1669 = vsel %vm1663, %v1656, 920167782
        %v1670 = vsel %vm1662, %v1653, %v1669
        %v1671 = vsel %vm1661, %v1668, %v1670
        %v1672 = vsel %vm1660, %v1650, %v1653
        %v1673 = vsel %vm1663, %v1659, 1326507024
        %v1674 = vsel %vm1662, %v1656, %v1673
        %v1675 = vsel %vm1661, %v1672, %v1674
        %v1676 = vshll.u32 %v1636, 8
        %v1677 = vmul.u32.u64.compose %v1676, %v1675
        %v1678 = vextract.low.u32 %v1677
        %v1679 = vextract.high.u32 %v1677
        %v1680 = vmul.u32.u64.compose %v1676, %v1671
        %v1681 = vextract.low.u32 %v1680
        %v1682 = vextract.high.u32 %v1680
        %v1683 = vmul.u32 %v1676, %v1667
        %v1684 = vadd.s32 %v1679, %v1681
        %vm1685 = vc.u32 %v1679, %v1681
        %v1686 = vadd.s32 %v1682, 1
        %v1687 = vsel %vm1685, %v1686, %v1682
        %v1688 = vadd.s32 %v1683, %v1687
        %v1689 = vadd.s32 %v1688, 536870912
        %v1690 = vshrl.u32 %v1689, 30
        %v1691 = vshll.u32 %v1690, 30
        %v1692 = vsub.s32 %v1688, %v1691
        %vm1693 = vcmp.lt.s32.totalorder %v1692, 0
        %v1694 = vsub.s32 0, %v1692
        %v1695 = vsel %vm1693, %v1694, %v1692
        %v1696 = vclz %v1695
        %v1697 = vsub.s32 %v1696, 2
        %vm1698 = vcmp.gt.s32.totalorder 0, %v1697
        %v1699 = vsel %vm1698, 0, %v1697
        %v1700 = vsub.s32 32, %v1699
        %v1701 = vshll.u32 %v1692, %v1699
        %v1702 = vshrl.u32 %v1684, %v1700
        %v1703 = vor.u32 %v1701, %v1702
        %v1704 = vsub.s32 4294967266, %v1699
        %v1705 = vadd.s32 %v1704, 127
        %v1706 = vshll.u32 %v1705, 23
        %v1707 = vor.u32 4788187, %v1706
        %v1708 = vand.u32 2147483647, %v1707
        %v1710 = vcvt.s32.f32 %v1703
        %v1711 = vmul.f32 %v1710, %v1708
        %v1712 = vxor.u32 %v1711, 2147483648
        %v1713 = vsel %vm1630, %v1712, %v1711
        %v1714 = vsub.s32 4, %v1690
        %v1715 = vsel %vm1630, %v1714, %v1690
        %v1716 = vsel %vm1629, %v1626, %v1713
        %v1717 = vsel %vm1629, 0, %v1715
        %v1718 = vcosq.f32.pop %v1716
        %v1719 = vsinq.f32.pop %v1716
        %vm1720 = vweird.f32 %v1626
        %v1721 = vadd.s32 %v1717, 3
        %v1722 = vand.u32 %v1721, 3
        %vm1723 = vcmp.lt.s32.totalorder %v1722, 2
        %vm1724 = vcmp.eq.s32.totalorder %v1722, 0
        %v1725 = vxor.u32 %v1719, 2147483648
        %v1726 = vsel %vm1724, %v1718, %v1725
        %vm1727 = vcmp.eq.s32.totalorder %v1722, 2
        %v1728 = vxor.u32 %v1718, 2147483648
        %v1729 = vsel %vm1727, %v1728, %v1719
        %v1730 = vsel %vm1723, %v1726, %v1729
        %v1731 = vsel %vm1720, nan, %v1730
        %v1732 = vand.u32 2147483647, %v1627
        %vm1733 = vcmp.le.f32.partialorder %v1732, 0.7853982
        %vm1734 = vcmp.lt.s32.totalorder %v1627, 0
        %v1735 = vand.u32 %v1627, 2139095040
        %v1736 = vshrl.u32 %v1735, 23
        %v1737 = vsub.s32 %v1736, 127
        %v1738 = vand.u32 2147483647, %v1627
        %v1739 = vand.u32 %v1738, 8388607
        %v1740 = vor.u32 %v1739, 8388608
        %v1741 = vsub.s32 0, %v1740
        %v1742 = vadd.s32 %v1737, 1
        %vm1743 = vcmp.gt.s32.totalorder %v1742, 0
        %v1744 = vsel %vm1743, %v1742, 0
        %v1745 = vshrl.u32 %v1744, 5
        %v1746 = vand.u32 %v1744, 31
        %v1747 = vsub.s32 32, %v1746
        %v1748 = vshrl.u32 683565275, %v1747
        %v1749 = vshll.u32 683565275, %v1746
        %v1750 = vshrl.u32 2475754826, %v1747
        %v1751 = vor.u32 %v1749, %v1750
        %v1752 = vshll.u32 2475754826, %v1746
        %v1753 = vshrl.u32 2131351028, %v1747
        %v1754 = vor.u32 %v1752, %v1753
        %v1755 = vshll.u32 2131351028, %v1746
        %v1756 = vshrl.u32 2102212464, %v1747
        %v1757 = vor.u32 %v1755, %v1756
        %v1758 = vshll.u32 2102212464, %v1746
        %v1759 = vshrl.u32 920167782, %v1747
        %v1760 = vor.u32 %v1758, %v1759
        %v1761 = vshll.u32 920167782, %v1746
        %v1762 = vshrl.u32 1326507024, %v1747
        %v1763 = vor.u32 %v1761, %v1762
        %vm1764 = vcmp.lt.s32.totalorder %v1745, 1
        %vm1765 = vcmp.lt.s32.totalorder %v1745, 2
        %vm1766 = vcmp.lt.s32.totalorder %v1745, 3
        %vm1767 = vcmp.lt.s32.totalorder %v1745, 4
        %v1768 = vsel %vm1764, %v1748, %v1751
        %v1769 = vsel %vm1767, %v1757, 2102212464
        %v1770 = vsel %vm1766, %v1754, %v1769
        %v1771 = vsel %vm1765, %v1768, %v1770
        %v1772 = vsel %vm1764, %v1751, %v1754
        %v1773 = vsel %vm1767, %v1760, 920167782
        %v1774 = vsel %vm1766, %v1757, %v1773
        %v1775 = vsel %vm1765, %v1772, %v1774
        %v1776 = vsel %vm1764, %v1754, %v1757
        %v1777 = vsel %vm1767, %v1763, 1326507024
        %v1778 = vsel %vm1766, %v1760, %v1777
        %v1779 = vsel %vm1765, %v1776, %v1778
        %v1780 = vshll.u32 %v1740, 8
        %v1781 = vmul.u32.u64.compose %v1780, %v1779
        %v1782 = vextract.low.u32 %v1781
        %v1783 = vextract.high.u32 %v1781
        %v1784 = vmul.u32.u64.compose %v1780, %v1775
        %v1785 = vextract.low.u32 %v1784
        %v1786 = vextract.high.u32 %v1784
        %v1787 = vmul.u32 %v1780, %v1771
        %v1788 = vadd.s32 %v1783, %v1785
        %vm1789 = vc.u32 %v1783, %v1785
        %v1790 = vadd.s32 %v1786, 1
        %v1791 = vsel %vm1789, %v1790, %v1786
        %v1792 = vadd.s32 %v1787, %v1791
        %v1793 = vadd.s32 %v1792, 536870912
        %v1794 = vshrl.u32 %v1793, 30
        %v1795 = vshll.u32 %v1794, 30
        %v1796 = vsub.s32 %v1792, %v1795
        %vm1797 = vcmp.lt.s32.totalorder %v1796, 0
        %v1798 = vsub.s32 0, %v1796
        %v1799 = vsel %vm1797, %v1798, %v1796
        %v1800 = vclz %v1799
        %v1801 = vsub.s32 %v1800, 2
        %vm1802 = vcmp.gt.s32.totalorder 0, %v1801
        %v1803 = vsel %vm1802, 0, %v1801
        %v1804 = vsub.s32 32, %v1803
        %v1805 = vshll.u32 %v1796, %v1803
        %v1806 = vshrl.u32 %v1788, %v1804
        %v1807 = vor.u32 %v1805, %v1806
        %v1808 = vsub.s32 4294967266, %v1803
        %v1809 = vadd.s32 %v1808, 127
        %v1810 = vshll.u32 %v1809, 23
        %v1811 = vor.u32 4788187, %v1810
        %v1812 = vand.u32 2147483647, %v1811
        %v1814 = vcvt.s32.f32 %v1807
        %v1815 = vmul.f32 %v1814, %v1812
        %v1816 = vxor.u32 %v1815, 2147483648
        %v1817 = vsel %vm1734, %v1816, %v1815
        %v1818 = vsub.s32 4, %v1794
        %v1819 = vsel %vm1734, %v1818, %v1794
        %v1820 = vsel %vm1733, %v1627, %v1817
        %v1821 = vsel %vm1733, 0, %v1819
        %v1822 = vcosq.f32.pop %v1820
        %v1823 = vsinq.f32.pop %v1820
        %vm1824 = vweird.f32 %v1627
        %v1825 = vadd.s32 %v1821, 3
        %v1826 = vand.u32 %v1825, 3
        %vm1827 = vcmp.lt.s32.totalorder %v1826, 2
        %vm1828 = vcmp.eq.s32.totalorder %v1826, 0
        %v1829 = vxor.u32 %v1823, 2147483648
        %v1830 = vsel %vm1828, %v1822, %v1829
        %vm1831 = vcmp.eq.s32.totalorder %v1826, 2
        %v1832 = vxor.u32 %v1822, 2147483648
        %v1833 = vsel %vm1831, %v1832, %v1823
        %v1834 = vsel %vm1827, %v1830, %v1833
        %v1835 = vsel %vm1824, nan, %v1834
        %v1836 = vld [vmem:[%s10] sm:$0xff]
        %v1837 = vld [vmem:[%s10 + $0x8] sm:$0xff]
        %v1838 = vadd.f32 %v1836, %v1507
        %v1839 = vadd.f32 %v1837, %v1611
        %v1840 = vadd.f32 %v1838, %v1731
        %v1841 = vadd.f32 %v1839, %v1835
        %v1842 = vld [vmem:[%s15 + $0x8] sm:$0xff]
        %v1843 = vld [vmem:[%s15 + $0x10] sm:$0xff]
        %v1844 = vld [vmem:[%s716] sm:$0xff]
        %v1845 = vld [vmem:[%s716 + $0x8] sm:$0xff]
        %v1846 = vld [vmem:[%s8] sm:$0xff]
        %v1847 = vld [vmem:[%s8 + $0x8] sm:$0xff]
        %v1848 = vld [vmem:[%s8 + $0x10] sm:$0xff]
        %v1849 = vld [vmem:[%s8 + $0x18] sm:$0xff]
        %v1850 = vld [vmem:[%s8 + $0x20] sm:$0xff]
        %v1851 = vld [vmem:[%s8 + $0x28] sm:$0xff]
        %v1852 = vld [vmem:[%s8 + $0x30] sm:$0xff]
        %v1853 = vld [vmem:[%s8 + $0x38] sm:$0xff]
        %v1854 = vld [vmem:[%s9] sm:$0x1]
        %v1856 = vlaneseq
        %v1857 = vshrl.u32 %v1856, 7
        %v1858 = vsub.s32 0, %v1857
        %v1859 = vrot.slane %v1854, %v1858
        %v1862 = vsel %vm1276, %v1844, 0
        %v1865 = vsel %vm1276, %v1845, 0
        %1867 = vmatprep.subr.mxu0 0.0
        %1868 = vmatpush1.msra.mxu0 %v1846
        %1869 = vmatprep.subr.mxu0 0.0
        %1870 = vmatpush1.msra.mxu0 %v1847
        %1871 = vmatprep.subr.mxu0 0.0
        %1872 = vmatpush1.msra.mxu0 %v1848
        %1873 = vmatprep.subr.mxu0 0.0
        %1874 = vmatpush1.msra.mxu0 %v1849
        %1875 = vmatprep.subr.mxu0 0.0
        %1876 = vmatpush1.msra.mxu0 %v1850
        %1877 = vmatprep.subr.mxu0 0.0
        %1878 = vmatpush1.msra.mxu0 %v1851
        %1879 = vmatprep.subr.mxu0 0.0
        %1880 = vmatpush1.msra.mxu0 %v1852
        %1881 = vmatprep.subr.mxu0 0.0
        %1882 = vmatpush1.msra.mxu0 %v1853
        %1883 = vmatprep.subr.mxu0 0.0
        %1884 = vmatpush1.msra.mxu0 0.0
        %1885 = vmatprep.subr.mxu0 0.0
        %1886 = vmatpush1.msra.mxu0 0.0
        %1887 = vmatprep.subr.mxu0 0.0
        %1888 = vmatpush1.msra.mxu0 0.0
        %1889 = vmatprep.subr.mxu0 0.0
        %1890 = vmatpush1.msra.mxu0 0.0
        %1891 = vmatprep.subr.mxu0 0.0
        %1892 = vmatpush1.msra.mxu0 0.0
        %1893 = vmatprep.subr.mxu0 0.0
        %1894 = vmatpush1.msra.mxu0 0.0
        %1895 = vmatprep.subr.mxu0 0.0
        %1896 = vmatpush1.msra.mxu0 0.0
        %1897 = vmatprep.subr.mxu0 0.0
        %1898 = vmatpush1.msra.mxu0 0.0
        %1899 = vmatprep.subr.mxu0 0.0
        %1900 = vmatpush1.msra.mxu0 0.0
        %1901 = vmatprep.subr.mxu0 0.0
        %1902 = vmatpush1.msra.mxu0 0.0
        %1903 = vmatprep.subr.mxu0 0.0
        %1904 = vmatpush1.msra.mxu0 0.0
        %1905 = vmatprep.subr.mxu0 0.0
        %1906 = vmatpush1.msra.mxu0 0.0
        %1907 = vmatprep.subr.mxu0 0.0
        %1908 = vmatpush1.msra.mxu0 0.0
        %1909 = vmatprep.subr.mxu0 0.0
        %1910 = vmatpush1.msra.mxu0 0.0
        %1911 = vmatprep.subr.mxu0 0.0
        %1912 = vmatpush1.msra.mxu0 0.0
        %1913 = vmatprep.subr.mxu0 0.0
        %1914 = vmatpush1.msra.mxu0 0.0
        %1915 = vmatprep.subr.mxu0 0.0
        %1916 = vmatpush1.msra.mxu0 0.0
        %1917 = vmatprep.subr.mxu0 0.0
        %1918 = vmatpush1.msra.mxu0 0.0
        %1919 = vmatprep.subr.mxu0 0.0
        %1920 = vmatpush1.msra.mxu0 0.0
        %1921 = vmatprep.subr.mxu0 0.0
        %1922 = vmatpush1.msra.mxu0 0.0
        %1923 = vmatprep.subr.mxu0 0.0
        %1924 = vmatpush1.msra.mxu0 0.0
        %1925 = vmatprep.subr.mxu0 0.0
        %1926 = vmatpush1.msra.mxu0 0.0
        %1927 = vmatprep.subr.mxu0 0.0
        %1928 = vmatpush1.msra.mxu0 0.0
        %1929 = vmatprep.subr.mxu0 0.0
        %1930 = vmatpush1.msra.mxu0 0.0
        %1931 = vmatprep.mubr.f32.mxu0 0.0
        %1932 = vmatmul.mubr.f32.gmra.mrb[0].mxu0 %v1862
        %v1933 = vpop.f32.mrb[0].mxu0
        %v1934 = vadd.f32 %v1859, %v1933
        %v1935 = vpop.f32.mrb[0].mxu0
        %1936 = vmatprep.mubr.f32.mxu0 0.0
        %1937 = vmatmul.mubr.f32.gmra.mrb[0].mxu0 %v1865
        %v1938 = vpop.f32.mrb[0].mxu0
        %v1939 = vadd.f32 %v1859, %v1938
        %v1940 = vpop.f32.mrb[0].mxu0
        %1941 = vdwg.mxu0
        %v1942 = vadd.f32 %v1934, %v1842
        %v1943 = vadd.f32 %v1939, %v1843
        %vm1944 = vcmask 261120
        %1945 = vst.msk [vmem:[%s681] sm:$0xff] %vm1944, %v1840
        %1946 = vst.msk [vmem:[%s681 + $0x8] sm:$0xff] %vm1944, %v1841
        %1947 = vst.msk [vmem:[%s681 + $0x10] sm:$0xff] %vm1944, %v1942
        %1948 = vst.msk [vmem:[%s681 + $0x18] sm:$0xff] %vm1944, %v1943
        %v1949 = vld [vmem:[%s13] sm:$0xff]
        %v1950 = vld [vmem:[%s13 + $0x8] sm:$0xff]
        %v1951 = vld [vmem:[%s13 + $0x10] sm:$0xff]
        %v1952 = vld [vmem:[%s13 + $0x18] sm:$0xff]
        %v1954 = vsel %vm1944, %v1840, 0
        %v1957 = vsel %vm1944, %v1841, 0
        %1959 = vmatprep.subr.mxu0 0.0
        %1960 = vmatpush1.msra.mxu0 %v1949
        %1961 = vmatprep.subr.mxu0 0.0
        %1962 = vmatpush1.msra.mxu0 %v1950
        %1963 = vmatprep.subr.mxu0 0.0
        %1964 = vmatpush1.msra.mxu0 %v1951
        %1965 = vmatprep.subr.mxu0 0.0
        %1966 = vmatpush1.msra.mxu0 %v1952
        %1967 = vmatprep.subr.mxu0 0.0
        %1968 = vmatpush1.msra.mxu0 0.0
        %1969 = vmatprep.subr.mxu0 0.0
        %1970 = vmatpush1.msra.mxu0 0.0
        %1971 = vmatprep.subr.mxu0 0.0
        %1972 = vmatpush1.msra.mxu0 0.0
        %1973 = vmatprep.subr.mxu0 0.0
        %1974 = vmatpush1.msra.mxu0 0.0
        %1975 = vmatprep.subr.mxu0 0.0
        %1976 = vmatpush1.msra.mxu0 0.0
        %1977 = vmatprep.subr.mxu0 0.0
        %1978 = vmatpush1.msra.mxu0 0.0
        %1979 = vmatprep.subr.mxu0 0.0
        %1980 = vmatpush1.msra.mxu0 0.0
        %1981 = vmatprep.subr.mxu0 0.0
        %1982 = vmatpush1.msra.mxu0 0.0
        %1983 = vmatprep.subr.mxu0 0.0
        %1984 = vmatpush1.msra.mxu0 0.0
        %1985 = vmatprep.subr.mxu0 0.0
        %1986 = vmatpush1.msra.mxu0 0.0
        %1987 = vmatprep.subr.mxu0 0.0
        %1988 = vmatpush1.msra.mxu0 0.0
        %1989 = vmatprep.subr.mxu0 0.0
        %1990 = vmatpush1.msra.mxu0 0.0
        %1991 = vmatprep.subr.mxu0 0.0
        %1992 = vmatpush1.msra.mxu0 0.0
        %1993 = vmatprep.subr.mxu0 0.0
        %1994 = vmatpush1.msra.mxu0 0.0
        %1995 = vmatprep.subr.mxu0 0.0
        %1996 = vmatpush1.msra.mxu0 0.0
        %1997 = vmatprep.subr.mxu0 0.0
        %1998 = vmatpush1.msra.mxu0 0.0
        %1999 = vmatprep.subr.mxu0 0.0
        %2000 = vmatpush1.msra.mxu0 0.0
        %2001 = vmatprep.subr.mxu0 0.0
        %2002 = vmatpush1.msra.mxu0 0.0
        %2003 = vmatprep.subr.mxu0 0.0
        %2004 = vmatpush1.msra.mxu0 0.0
        %2005 = vmatprep.subr.mxu0 0.0
        %2006 = vmatpush1.msra.mxu0 0.0
        %2007 = vmatprep.subr.mxu0 0.0
        %2008 = vmatpush1.msra.mxu0 0.0
        %2009 = vmatprep.subr.mxu0 0.0
        %2010 = vmatpush1.msra.mxu0 0.0
        %2011 = vmatprep.subr.mxu0 0.0
        %2012 = vmatpush1.msra.mxu0 0.0
        %2013 = vmatprep.subr.mxu0 0.0
        %2014 = vmatpush1.msra.mxu0 0.0
        %2015 = vmatprep.subr.mxu0 0.0
        %2016 = vmatpush1.msra.mxu0 0.0
        %2017 = vmatprep.subr.mxu0 0.0
        %2018 = vmatpush1.msra.mxu0 0.0
        %2019 = vmatprep.subr.mxu0 0.0
        %2020 = vmatpush1.msra.mxu0 0.0
        %2021 = vmatprep.subr.mxu0 0.0
        %2022 = vmatpush1.msra.mxu0 0.0
        %2023 = vmatprep.mubr.f32.mxu0 0.0
        %2024 = vmatmul.mubr.f32.gmra.mrb[0].mxu0 %v1954
        %v2025 = vpop.f32.mrb[0].mxu0
        %v2026 = vadd.f32 0.0, %v2025
        %v2027 = vpop.f32.mrb[0].mxu0
        %2028 = vmatprep.mubr.f32.mxu0 0.0
        %2029 = vmatmul.mubr.f32.gmra.mrb[0].mxu0 %v1957
        %v2030 = vpop.f32.mrb[0].mxu0
        %v2031 = vadd.f32 0.0, %v2030
        %v2032 = vpop.f32.mrb[0].mxu0
        %2033 = vdwg.mxu0
        %v2034 = vld [vmem:[%s12] sm:$0xff]
        %v2035 = vld [vmem:[%s12 + $0x8] sm:$0xff]
        %v2036 = vld [vmem:[%s12 + $0x10] sm:$0xff]
        %v2037 = vld [vmem:[%s12 + $0x18] sm:$0xff]
        %v2038 = vld [vmem:[%s12 + $0x20] sm:$0xff]
        %v2039 = vld [vmem:[%s12 + $0x28] sm:$0xff]
        %v2040 = vld [vmem:[%s12 + $0x30] sm:$0xff]
        %v2041 = vld [vmem:[%s12 + $0x38] sm:$0xff]
        %v2042 = vld [vmem:[%s14] sm:$0x1]
        %v2044 = vlaneseq
        %v2045 = vshrl.u32 %v2044, 7
        %v2046 = vsub.s32 0, %v2045
        %v2047 = vrot.slane %v2042, %v2046
        %vm2049 = vcmask 130048
        %v2051 = vsel %vm2049, %v2034, 0
        %v2054 = vsel %vm2049, %v2035, 0
        %v2057 = vsel %vm2049, %v2036, 0
        %v2060 = vsel %vm2049, %v2037, 0
        %v2063 = vsel %vm2049, %v2038, 0
        %v2066 = vsel %vm2049, %v2039, 0
        %v2069 = vsel %vm2049, %v2040, 0
        %v2072 = vsel %vm2049, %v2041, 0
        %2074 = vmatprep.subr.mxu0 0.0
        %2075 = vmatpush1.msra.mxu0 %v2026
        %2076 = vmatprep.subr.mxu0 0.0
        %2077 = vmatpush1.msra.mxu0 %v2031
        %2078 = vmatprep.subr.mxu0 0.0
        %2079 = vmatpush1.msra.mxu0 0.0
        %2080 = vmatprep.subr.mxu0 0.0
        %2081 = vmatpush1.msra.mxu0 0.0
        %2082 = vmatprep.subr.mxu0 0.0
        %2083 = vmatpush1.msra.mxu0 0.0
        %2084 = vmatprep.subr.mxu0 0.0
        %2085 = vmatpush1.msra.mxu0 0.0
        %2086 = vmatprep.subr.mxu0 0.0
        %2087 = vmatpush1.msra.mxu0 0.0
        %2088 = vmatprep.subr.mxu0 0.0
        %2089 = vmatpush1.msra.mxu0 0.0
        %2090 = vmatprep.subr.mxu0 0.0
        %2091 = vmatpush1.msra.mxu0 0.0
        %2092 = vmatprep.subr.mxu0 0.0
        %2093 = vmatpush1.msra.mxu0 0.0
        %2094 = vmatprep.subr.mxu0 0.0
        %2095 = vmatpush1.msra.mxu0 0.0
        %2096 = vmatprep.subr.mxu0 0.0
        %2097 = vmatpush1.msra.mxu0 0.0
        %2098 = vmatprep.subr.mxu0 0.0
        %2099 = vmatpush1.msra.mxu0 0.0
        %2100 = vmatprep.subr.mxu0 0.0
        %2101 = vmatpush1.msra.mxu0 0.0
        %2102 = vmatprep.subr.mxu0 0.0
        %2103 = vmatpush1.msra.mxu0 0.0
        %2104 = vmatprep.subr.mxu0 0.0
        %2105 = vmatpush1.msra.mxu0 0.0
        %2106 = vmatprep.subr.mxu0 0.0
        %2107 = vmatpush1.msra.mxu0 0.0
        %2108 = vmatprep.subr.mxu0 0.0
        %2109 = vmatpush1.msra.mxu0 0.0
        %2110 = vmatprep.subr.mxu0 0.0
        %2111 = vmatpush1.msra.mxu0 0.0
        %2112 = vmatprep.subr.mxu0 0.0
        %2113 = vmatpush1.msra.mxu0 0.0
        %2114 = vmatprep.subr.mxu0 0.0
        %2115 = vmatpush1.msra.mxu0 0.0
        %2116 = vmatprep.subr.mxu0 0.0
        %2117 = vmatpush1.msra.mxu0 0.0
        %2118 = vmatprep.subr.mxu0 0.0
        %2119 = vmatpush1.msra.mxu0 0.0
        %2120 = vmatprep.subr.mxu0 0.0
        %2121 = vmatpush1.msra.mxu0 0.0
        %2122 = vmatprep.subr.mxu0 0.0
        %2123 = vmatpush1.msra.mxu0 0.0
        %2124 = vmatprep.subr.mxu0 0.0
        %2125 = vmatpush1.msra.mxu0 0.0
        %2126 = vmatprep.subr.mxu0 0.0
        %2127 = vmatpush1.msra.mxu0 0.0
        %2128 = vmatprep.subr.mxu0 0.0
        %2129 = vmatpush1.msra.mxu0 0.0
        %2130 = vmatprep.subr.mxu0 0.0
        %2131 = vmatpush1.msra.mxu0 0.0
        %2132 = vmatprep.subr.mxu0 0.0
        %2133 = vmatpush1.msra.mxu0 0.0
        %2134 = vmatprep.subr.mxu0 0.0
        %2135 = vmatpush1.msra.mxu0 0.0
        %2136 = vmatprep.subr.mxu0 0.0
        %2137 = vmatpush1.msra.mxu0 0.0
        %2138 = vmatprep.mubr.f32.mxu0 0.0
        %2139 = vmatmul.mubr.f32.gmra.mrb[0].mxu0 %v2051
        %v2140 = vpop.f32.mrb[0].mxu0
        %v2141 = vadd.f32 %v2047, %v2140
        %v2142 = vpop.f32.mrb[0].mxu0
        %2143 = vmatprep.mubr.f32.mxu0 0.0
        %2144 = vmatmul.mubr.f32.gmra.mrb[0].mxu0 %v2054
        %v2145 = vpop.f32.mrb[0].mxu0
        %v2146 = vadd.f32 %v2047, %v2145
        %v2147 = vpop.f32.mrb[0].mxu0
        %2148 = vmatprep.mubr.f32.mxu0 0.0
        %2149 = vmatmul.mubr.f32.gmra.mrb[0].mxu0 %v2057
        %v2150 = vpop.f32.mrb[0].mxu0
        %v2151 = vadd.f32 %v2047, %v2150
        %v2152 = vpop.f32.mrb[0].mxu0
        %2153 = vmatprep.mubr.f32.mxu0 0.0
        %2154 = vmatmul.mubr.f32.gmra.mrb[0].mxu0 %v2060
        %v2155 = vpop.f32.mrb[0].mxu0
        %v2156 = vadd.f32 %v2047, %v2155
        %v2157 = vpop.f32.mrb[0].mxu0
        %2158 = vmatprep.mubr.f32.mxu0 0.0
        %2159 = vmatmul.mubr.f32.gmra.mrb[0].mxu0 %v2063
        %v2160 = vpop.f32.mrb[0].mxu0
        %v2161 = vadd.f32 %v2047, %v2160
        %v2162 = vpop.f32.mrb[0].mxu0
        %2163 = vmatprep.mubr.f32.mxu0 0.0
        %2164 = vmatmul.mubr.f32.gmra.mrb[0].mxu0 %v2066
        %v2165 = vpop.f32.mrb[0].mxu0
        %v2166 = vadd.f32 %v2047, %v2165
        %v2167 = vpop.f32.mrb[0].mxu0
        %2168 = vmatprep.mubr.f32.mxu0 0.0
        %2169 = vmatmul.mubr.f32.gmra.mrb[0].mxu0 %v2069
        %v2170 = vpop.f32.mrb[0].mxu0
        %v2171 = vadd.f32 %v2047, %v2170
        %v2172 = vpop.f32.mrb[0].mxu0
        %2173 = vmatprep.mubr.f32.mxu0 0.0
        %2174 = vmatmul.mubr.f32.gmra.mrb[0].mxu0 %v2072
        %v2175 = vpop.f32.mrb[0].mxu0
        %v2176 = vadd.f32 %v2047, %v2175
        %v2177 = vpop.f32.mrb[0].mxu0
        %2178 = vdwg.mxu0
        %vm2179 = vcmask 64512
        %2180 = vst.msk [vmem:[%s731] sm:$0xff] %vm2179, %v2141
        %2181 = vst.msk [vmem:[%s731 + $0x8] sm:$0xff] %vm2179, %v2146
        %2182 = vst.msk [vmem:[%s731 + $0x10] sm:$0xff] %vm2179, %v2151
        %2183 = vst.msk [vmem:[%s731 + $0x18] sm:$0xff] %vm2179, %v2156
        %2184 = vst.msk [vmem:[%s731 + $0x20] sm:$0xff] %vm2179, %v2161
        %2185 = vst.msk [vmem:[%s731 + $0x28] sm:$0xff] %vm2179, %v2166
        %2186 = vst.msk [vmem:[%s731 + $0x30] sm:$0xff] %vm2179, %v2171
        %2187 = vst.msk [vmem:[%s731 + $0x38] sm:$0xff] %vm2179, %v2176
        %p2188 = scmp.lt.s32.totalorder %s34, 1
        %s2189 = scalar_select %p2188, %s34, 1
        %s2190 = smul.addr %s2189, 8
        %s2191 = smul.addr %s2190, 8
        %s2192 = scalar_lea.vmem %s16, %s2191
        %p2193 = scmp.lt.s32.totalorder %s34, 1
        %s2194 = scalar_select %p2193, %s34, 1
        %s2195 = smul.addr %s2194, 8
        %s2196 = smul.addr %s2195, 8
        %s2197 = scalar_lea.vmem %s17, %s2196
        %s2198 = sand.u32 %s460, 1
        %s2199 = scalar_lea.sflag [#allocation3], %s2198
        %s2200 = sand.u32 %s460, 1
        %s2201 = smul.addr %s2200, 32
        %s2202 = scalar_lea.vmem [#allocation2], %s2201
        %p2203 = scmp.lt.s32.totalorder %s34, 1
        %s2204 = scalar_select %p2203, %s34, 1
        %s2205 = smul.addr %s2204, 8
        %s2206 = smul.addr %s2205, 8
        %s2207 = scalar_lea.vmem %s19, %s2206
        // Predicated region
        $region85: #{cvthead_forward.1} parent=83 // pred_check
          %p2208 = pneg %p418
        $region86: #{cvthead_forward.1} parent=83 // pred_check_branch
          %2210 = sbr.rel (%p2208) target = $region88
        $region87: #{cvthead_forward.1} parent=83 // pred_region
          _
        $region88: #{cvthead_forward.1} parent=83 // pred_fallthru
          _
        // Predicated region
        $region89: #{cvthead_forward.1} parent=83 // pred_check
          %p2211 = pneg %p444
        $region90: #{cvthead_forward.1} parent=83 // pred_check_branch
          %2213 = sbr.rel (%p2211) target = $region92
        $region91: #{cvthead_forward.1} parent=83 // pred_region
          _
        $region92: #{cvthead_forward.1} parent=83 // pred_fallthru
          _
        // Predicated region
        $region93: #{cvthead_forward.1} parent=83 // pred_check
          %p2214 = pneg %p470
        $region94: #{cvthead_forward.1} parent=83 // pred_check_branch
          %2216 = sbr.rel (%p2214) target = $region96
        $region95: #{cvthead_forward.1} parent=83 // pred_region
          %s2218 = ssub.s32 512, 512
          %2219 = vsyncadd %s2199, %s2218
          %s2220 = smul.addr %s34, 4
          %s2221 = smul.addr %s2220, 128
          %s2222 = scalar_lea.hbm %s18, %s2221
          %s2223 = sshll.u32 %s2202, 4
          %s2224 = int_to_ptr.vmem [resolvable:$true] %s2223
          %2229 = dma.vmem_to_hbm [thread:$0]  %s2224, 512, %s2222, %s2199, 128, 128, 8
        $region96: #{cvthead_forward.1} parent=83 // pred_fallthru
          _
        // Predicated region
        $region97: #{cvthead_forward.1} parent=83 // pred_check
          %p2230 = pneg %p496
        $region98: #{cvthead_forward.1} parent=83 // pred_check_branch
          %2232 = sbr.rel (%p2230) target = $region100
        $region99: #{cvthead_forward.1} parent=83 // pred_region
          _
        $region100: #{cvthead_forward.1} parent=83 // pred_fallthru
          _
      $region84: #{cvthead_forward.1} parent=5 // pred_fallthru
        _
      %p2233 = scmp.le.s32.totalorder 2, %s29
      // Predicated region
      $region101: #{cvthead_forward.1} parent=5 // pred_check
        %p2234 = pneg %p2233
      $region102: #{cvthead_forward.1} parent=5 // pred_check_branch
        %2236 = sbr.rel (%p2234) target = $region104
      $region103: #{cvthead_forward.1} parent=5 // pred_region
        %s2237 = ssub.s32 %s29, 2
        // Predicated region
        $region105: #{cvthead_forward.1} parent=103 // pred_check
          %p2238 = pneg %p424
        $region106: #{cvthead_forward.1} parent=103 // pred_check_branch
          %2240 = sbr.rel (%p2238) target = $region108
        $region107: #{cvthead_forward.1} parent=103 // pred_region
          %p2241 = scmp.lt.s32.totalorder %s35, 1
          %s2242 = scalar_select %p2241, %s35, 1
          %s2243 = smul.addr %s2242, 8
          %s2244 = smul.addr %s2243, 8
          %s2245 = scalar_lea.vmem %s16, %s2244
        $region108: #{cvthead_forward.1} parent=103 // pred_fallthru
          _
        // Predicated region
        $region109: #{cvthead_forward.1} parent=103 // pred_check
          %p2246 = pneg %p450
        $region110: #{cvthead_forward.1} parent=103 // pred_check_branch
          %2248 = sbr.rel (%p2246) target = $region112
        $region111: #{cvthead_forward.1} parent=103 // pred_region
          %p2249 = scmp.lt.s32.totalorder %s35, 1
          %s2250 = scalar_select %p2249, %s35, 1
          %s2251 = smul.addr %s2250, 8
          %s2252 = smul.addr %s2251, 8
          %s2253 = scalar_lea.vmem %s17, %s2252
        $region112: #{cvthead_forward.1} parent=103 // pred_fallthru
          _
        // Predicated region
        $region113: #{cvthead_forward.1} parent=103 // pred_check
          %p2254 = pneg %p476
        $region114: #{cvthead_forward.1} parent=103 // pred_check_branch
          %2256 = sbr.rel (%p2254) target = $region116
        $region115: #{cvthead_forward.1} parent=103 // pred_region
          %s2257 = sand.u32 %s461, 1
          %s2258 = scalar_lea.sflag [#allocation3], %s2257
          %s2259 = sand.u32 %s461, 1
          %s2260 = smul.addr %s2259, 32
          %s2261 = scalar_lea.vmem [#allocation2], %s2260
          %2262 = dma.done %s2258, 512
        $region116: #{cvthead_forward.1} parent=103 // pred_fallthru
          _
        // Predicated region
        $region117: #{cvthead_forward.1} parent=103 // pred_check
          %p2263 = pneg %p502
        $region118: #{cvthead_forward.1} parent=103 // pred_check_branch
          %2265 = sbr.rel (%p2263) target = $region120
        $region119: #{cvthead_forward.1} parent=103 // pred_region
          %p2266 = scmp.lt.s32.totalorder %s35, 1
          %s2267 = scalar_select %p2266, %s35, 1
          %s2268 = smul.addr %s2267, 8
          %s2269 = smul.addr %s2268, 8
          %s2270 = scalar_lea.vmem %s19, %s2269
        $region120: #{cvthead_forward.1} parent=103 // pred_fallthru
          _
      $region104: #{cvthead_forward.1} parent=5 // pred_fallthru
        _
    $region6: #{cvthead_forward.1} parent=1 // loop_footer
      %s33 = sadd.s32 1, %s29
    $region7: #{cvthead_forward.1} parent=1 // loop_footer_branch
      %28 = sbr.rel target = $region3
    $region8: #{cvthead_forward.1} parent=1 // loop_exit
      _
    %2271 = vsyncpa [#allocation3], 1
    %s2272 = scalar_lea.sflag [#allocation3], 1
    %2273 = vsyncpa %s2272, 1

</llo_original>
